<compile_context>
chip_gen: v5e
topology: v5e:2x2
jax: 0.10.0
libtpu: 0.0.40
codegen_flags: <defaults>
</compile_context>

<pallas_src>
import jax
import jax.numpy as jnp
from jax.experimental import pallas as pl
from jax.experimental.pallas import tpu as pltpu

DILATIONS = (3, 5, 7)
PAD = 8  # spatial halo width; must be >= max(DILATIONS)


def _relu6(v):
    return jnp.clip(v, 0.0, 6.0)


def _fold_conv_bn(w, b, bn, eps=1e-5):
    """Fold conv bias + eval-mode BatchNorm into (scaled weight, bias)."""
    gamma, beta, mean, var = bn
    s = gamma / jnp.sqrt(var + eps)
    w_f = w * s.reshape((-1,) + (1,) * (w.ndim - 1))  # scale out-channel axis
    b_f = (b - mean) * s + beta
    return w_f, b_f


def mutilscal_forward(x_nchw, p, *, pool_ratio):
    """MutilScal forward. x_nchw: [B, C, H, W] f32 -> [B, C, P, P]."""
    B, C, H, W = x_nchw.shape
    Cr = p["w01"].shape[0]
    P = pool_ratio
    assert H % P == 0 and W % P == 0, "adaptive pool assumes divisible spatial"
    assert max(DILATIONS) <= PAD
    kh, kw = H // P, W // P
    PP = P * P
    Hp, Wp = H + 2 * PAD, W + 2 * PAD
    S = Hp * Wp                                  # flat padded spatial extent
    DMAX = max(DILATIONS)
    BRD = -(-(DMAX * (Wp + 1)) // 128) * 128     # lane-aligned scratch border

    # ---- fold conv bias + BN into each conv, channel-major weights ----
    w01, b01 = _fold_conv_bn(p["w01"], p["b01"], p["bn01"])
    w01_k = w01[:, :, 0, 0].astype(jnp.bfloat16)            # [Cr, C]
    b01_k = b01.reshape(Cr, 1)

    dww_l, dwb_l, bexp_l = [], [], []
    wbd = jnp.zeros((3 * C, 3 * Cr), jnp.float32)           # block-diag expand
    for i in range(3):
        wd, bd = _fold_conv_bn(p["wdw"][i], p["bdw"][i], p["bndw"][i])
        dww_l.append(wd[:, 0].reshape(Cr, 9))                # tap t = ki*3+kj
        dwb_l.append(bd)
        we, be = _fold_conv_bn(p["wexp"][i], p["bexp"][i], p["bnexp"][i])
        wbd = wbd.at[i * C:(i + 1) * C, i * Cr:(i + 1) * Cr].set(we[:, :, 0, 0])
        bexp_l.append(be)
    dww_k = jnp.concatenate(dww_l, axis=0)                   # [3*Cr, 9] f32
    dwb_k = jnp.concatenate(dwb_l, axis=0).reshape(3 * Cr, 1)
    wbd_k = wbd.astype(jnp.bfloat16)                         # [3*C, 3*Cr]
    bexp_k = jnp.concatenate(bexp_l, axis=0).reshape(3 * C, 1)

    w3, b3 = _fold_conv_bn(p["w3"], p["b3"], p["bn3"])
    w3_k = w3[:, :, 0, 0].astype(jnp.bfloat16)               # [C, C]
    b3_k = b3.reshape(C, 1)

    # ---- centre mask + pool matrix on flat padded coordinates ----
    rr = jnp.arange(Hp)[:, None]
    cc = jnp.arange(Wp)[None, :]
    valid = (rr >= PAD) & (rr < PAD + H) & (cc >= PAD) & (cc < PAD + W)
    mask_k = valid.astype(jnp.float32).reshape(1, S)
    cell = ((rr - PAD) // kh) * P + (cc - PAD) // kw
    cell = jnp.where(valid, cell, -1).reshape(S)
    pool_k = ((cell[:, None] == jnp.arange(PP)[None, :]).astype(jnp.float32)
              / (kh * kw)).astype(jnp.bfloat16)              # [S, PP]

    # ---- zero-padded, channel-major, spatially-flattened input ----
    xp = jnp.pad(x_nchw, ((0, 0), (0, 0), (PAD, PAD), (PAD, PAD)))
    xp = xp.reshape(B, C, S)

    def kernel(x_ref, mask_ref, w01_ref, b01_ref, dww_ref, dwb_ref, wbd_ref,
               bexp_ref, w3_ref, b3_ref, pool_ref, o_ref, pad_ref):
        x = x_ref[0]                             # [C, S] f32, zero spatial halo
        x_bf = x.astype(jnp.bfloat16)

        # conv0_1 (1x1) + BN + ReLU6; mask the spatial halo back to exact zero
        # so the dilated depthwise convs see true zero padding.
        a01 = jnp.dot(w01_ref[...], x_bf, preferred_element_type=jnp.float32)
        a01 = _relu6(a01 + b01_ref[...]) * mask_ref[...]     # [Cr, S]

        # Bordered flat scratch shared by the three dilated depthwise convs.
        # Borders are zeroed every step (kept finite; only halo outputs, which
        # are killed by the gate, ever read them).
        pad_ref[:, :BRD] = jnp.zeros((Cr, BRD), jnp.float32)
        pad_ref[:, BRD + S:] = jnp.zeros((Cr, BRD), jnp.float32)
        pad_ref[:, BRD:BRD + S] = a01

        accs = []
        for pth, d in enumerate(DILATIONS):
            taps = dww_ref[pth * Cr:(pth + 1) * Cr, :]       # [Cr, 9] hoisted
            bias = dwb_ref[pth * Cr:(pth + 1) * Cr, :]       # [Cr, 1]
            acc = jnp.zeros((Cr, S), jnp.float32)
            t = 0
            for di in (-1, 0, 1):
                for dj in (-1, 0, 1):
                    s = (di * Wp + dj) * d                   # flat 2-D shift
                    win = pad_ref[:, BRD + s:BRD + s + S]    # [Cr, S]
                    acc = acc + win * taps[:, t:t + 1]
                    t += 1
            accs.append(_relu6(acc + bias))                  # BN + ReLU6
        acc_all = jnp.concatenate(accs, axis=0)              # [3*Cr, S]

        # Fused block-diagonal 1x1 expand convs + per-path BN + ReLU6 + sum.
        e = jnp.dot(wbd_ref[...], acc_all.astype(jnp.bfloat16),
                    preferred_element_type=jnp.float32)      # [3*C, S]
        e = _relu6(e + bexp_ref[...])
        attn = e[:C] + e[C:2 * C] + e[2 * C:]

        # conv3 (1x1) + BN + ReLU6.
        attn = jnp.dot(w3_ref[...], attn.astype(jnp.bfloat16),
                       preferred_element_type=jnp.float32)
        attn = _relu6(attn + b3_ref[...])                    # [C, S]

        # Fused attention gate; halo of x is exactly zero so halo garbage dies.
        gated = attn * x

        # AdaptiveAvgPool2d(P) as one MXU matmul over the flat spatial axis.
        pooled = jnp.dot(gated.astype(jnp.bfloat16), pool_ref[...],
                         preferred_element_type=jnp.float32)  # [C, PP]
        o_ref[0] = pooled.astype(o_ref.dtype)

    flops = B * (2 * Cr * C * S              # conv0_1
                 + 3 * 9 * 2 * Cr * S        # 3 depthwise convs, 9 taps
                 + 2 * (3 * C) * (3 * Cr) * S  # fused expand
                 + 2 * C * C * S             # conv3
                 + C * S                     # gate multiply
                 + 2 * C * PP * S)           # pooling matmul
    bytes_accessed = (4 * B * C * S + 4 * B * C * PP + 4 * S + 2 * S * PP
                      + 2 * (Cr * C + 9 * C * Cr + C * C) + 4 * 27 * Cr
                      + 4 * (Cr + 3 * Cr + 3 * C + C))

    out = pl.pallas_call(
        kernel,
        out_shape=jax.ShapeDtypeStruct((B, C, PP), x_nchw.dtype),
        grid=(B,),
        in_specs=[
            pl.BlockSpec((1, C, S), lambda b: (b, 0, 0)),     # x (per batch)
            pl.BlockSpec((1, S), lambda b: (0, 0)),           # centre mask
            pl.BlockSpec((Cr, C), lambda b: (0, 0)),          # w01
            pl.BlockSpec((Cr, 1), lambda b: (0, 0)),          # b01
            pl.BlockSpec((3 * Cr, 9), lambda b: (0, 0)),      # depthwise taps
            pl.BlockSpec((3 * Cr, 1), lambda b: (0, 0)),      # depthwise bias
            pl.BlockSpec((3 * C, 3 * Cr), lambda b: (0, 0)),  # block-diag expand
            pl.BlockSpec((3 * C, 1), lambda b: (0, 0)),       # expand bias
            pl.BlockSpec((C, C), lambda b: (0, 0)),           # w3
            pl.BlockSpec((C, 1), lambda b: (0, 0)),           # b3
            pl.BlockSpec((S, PP), lambda b: (0, 0)),          # pool matrix
        ],
        out_specs=pl.BlockSpec((1, C, PP), lambda b: (b, 0, 0)),
        scratch_shapes=[pltpu.VMEM((Cr, BRD + S + BRD), jnp.float32)],
        compiler_params=pltpu.CompilerParams(
            dimension_semantics=("parallel",),   # batch across TCs on v7x
            # Well under v7x's 64 MiB physical VMEM; raise when spatial tiling
            # lands (128 MiB available on v5e/v6e).
            vmem_limit_bytes=48 * 1024 * 1024,
        ),
        cost_estimate=pl.CostEstimate(
            flops=flops, transcendentals=0, bytes_accessed=bytes_accessed),
    )(xp, mask_k, w01_k, b01_k, dww_k, dwb_k, wbd_k, bexp_k, w3_k, b3_k, pool_k)

    # [B, C, P*P] -> [B, C, P, P] (already channel-major; reshape only).
    return out.reshape(B, C, P, P)


# ----------------------------- pure-JAX reference -----------------------------
def _conv2d(x, w, b, *, padding=0, dilation=1, groups=1):
    out = jax.lax.conv_general_dilated(
        x, w, window_strides=(1, 1),
        padding=[(padding, padding), (padding, padding)],
        rhs_dilation=(dilation, dilation),
        dimension_numbers=("NCHW", "OIHW", "NCHW"),
        feature_group_count=groups,
        precision=jax.lax.Precision.HIGHEST)
    return out + b[None, :, None, None]


def _bn(x, bn, eps=1e-5):
    gamma, beta, mean, var = bn
    s = gamma / jnp.sqrt(var + eps)
    return x * s[None, :, None, None] + (beta - mean * s)[None, :, None, None]


def reference(x, p, *, pool_ratio):
    """Pure-JAX (lax.conv) reference of the PyTorch MutilScal forward."""
    a01 = _relu6(_bn(_conv2d(x, p["w01"], p["b01"]), p["bn01"]))
    branches = []
    for i, d in enumerate(DILATIONS):
        a2 = _relu6(_bn(_conv2d(a01, p["wdw"][i], p["bdw"][i], padding=d,
                                dilation=d, groups=a01.shape[1]), p["bndw"][i]))
        a3 = _relu6(_bn(_conv2d(a2, p["wexp"][i], p["bexp"][i]), p["bnexp"][i]))
        branches.append(a3)
    attn = branches[0] + branches[1] + branches[2]
    attn = _relu6(_bn(_conv2d(attn, p["w3"], p["b3"]), p["bn3"]))
    attn = attn * x
    B, C, H, W = attn.shape
    P = pool_ratio
    return attn.reshape(B, C, P, H // P, P, W // P).mean(axis=(3, 5))


def make_params(key, C, Cr):
    ks = iter(jax.random.split(key, 64))

    def conv_w(shape, scale=0.15):
        return scale * jax.random.normal(next(ks), shape, jnp.float32)

    def conv_b(n):
        return 0.05 * jax.random.normal(next(ks), (n,), jnp.float32)

    def bn(n):
        gamma = 1.0 + 0.1 * jax.random.normal(next(ks), (n,), jnp.float32)
        beta = 0.1 * jax.random.normal(next(ks), (n,), jnp.float32)
        mean = 0.1 * jax.random.normal(next(ks), (n,), jnp.float32)
        var = jax.random.uniform(next(ks), (n,), jnp.float32, 0.5, 1.5)
        return (gamma, beta, mean, var)

    return {
        "w01": conv_w((Cr, C, 1, 1)), "b01": conv_b(Cr), "bn01": bn(Cr),
        "wdw": [conv_w((Cr, 1, 3, 3)) for _ in range(3)],
        "bdw": [conv_b(Cr) for _ in range(3)],
        "bndw": [bn(Cr) for _ in range(3)],
        "wexp": [conv_w((C, Cr, 1, 1)) for _ in range(3)],
        "bexp": [conv_b(C) for _ in range(3)],
        "bnexp": [bn(C) for _ in range(3)],
        "w3": conv_w((C, C, 1, 1)), "b3": conv_b(C), "bn3": bn(C),
    }


if __name__ == "__main__":
    # MutilScal(dim=32, fc_ratio=4, dilation=[3,5,7], pool_ratio=4) at small
    # shapes; dim divisible by fc_ratio, H/W divisible by pool_ratio, and
    # H, W large enough for the dilation-7 depthwise conv to be non-degenerate.
    B, C, H, W = 2, 32, 16, 16
    FC_RATIO, POOL = 4, 4
    Cr = C // FC_RATIO

    key = jax.random.PRNGKey(0)
    kx, kp = jax.random.split(key)
    x = jax.random.normal(kx, (B, C, H, W), dtype=jnp.float32)
    params = make_params(kp, C, Cr)

    out = mutilscal_forward(x, params, pool_ratio=POOL)
    out = jax.block_until_ready(out)

    ref = reference(x, params, pool_ratio=POOL)
    assert out.shape == (B, C, POOL, POOL), out.shape
    # bf16 MXU operands (f32 accumulate) vs the f32-HIGHEST reference.
    assert jnp.allclose(out, ref, atol=8e-2, rtol=8e-2), \
        f"max abs err {float(jnp.max(jnp.abs(out - ref)))}"
    print("KERNEL_OK")
</pallas_src>

<mosaic_0001>
module attributes {stable_mosaic.version = 11 : i64} {
  func.func @kernel(%arg0: i32, %arg1: memref<1x32x1024xf32, #tpu.memory_space<vmem>>, %arg2: memref<1x1024xf32, #tpu.memory_space<vmem>>, %arg3: memref<8x32xbf16, #tpu.memory_space<vmem>>, %arg4: memref<8x1xf32, #tpu.memory_space<vmem>>, %arg5: memref<24x9xf32, #tpu.memory_space<vmem>>, %arg6: memref<24x1xf32, #tpu.memory_space<vmem>>, %arg7: memref<96x24xbf16, #tpu.memory_space<vmem>>, %arg8: memref<96x1xf32, #tpu.memory_space<vmem>>, %arg9: memref<32x32xbf16, #tpu.memory_space<vmem>>, %arg10: memref<32x1xf32, #tpu.memory_space<vmem>>, %arg11: memref<1024x16xbf16, #tpu.memory_space<vmem>>, %arg12: memref<1x32x16xf32, #tpu.memory_space<vmem>>, %arg13: memref<8x1536xf32, #tpu.memory_space<vmem>>) attributes {dimension_semantics = [#tpu.dimension_semantics<parallel>], iteration_bounds = array<i64: 2>, scalar_prefetch = 0 : i64, scratch_operands = 1 : i64, tpu.core_type = #tpu.core_type<tc>, window_params = [{transform_indices = @transform_0, window_bounds = array<i64: 1, 32, 1024>}, {pipeline_mode = #tpu.pipeline_mode<synchronous>, transform_indices = @transform_1, window_bounds = array<i64: 1, 1024>}, {pipeline_mode = #tpu.pipeline_mode<synchronous>, transform_indices = @transform_2, window_bounds = array<i64: 8, 32>}, {pipeline_mode = #tpu.pipeline_mode<synchronous>, transform_indices = @transform_3, window_bounds = array<i64: 8, 1>}, {pipeline_mode = #tpu.pipeline_mode<synchronous>, transform_indices = @transform_4, window_bounds = array<i64: 24, 9>}, {pipeline_mode = #tpu.pipeline_mode<synchronous>, transform_indices = @transform_5, window_bounds = array<i64: 24, 1>}, {pipeline_mode = #tpu.pipeline_mode<synchronous>, transform_indices = @transform_6, window_bounds = array<i64: 96, 24>}, {pipeline_mode = #tpu.pipeline_mode<synchronous>, transform_indices = @transform_7, window_bounds = array<i64: 96, 1>}, {pipeline_mode = #tpu.pipeline_mode<synchronous>, transform_indices = @transform_8, window_bounds = array<i64: 32, 32>}, {pipeline_mode = #tpu.pipeline_mode<synchronous>, transform_indices = @transform_9, window_bounds = array<i64: 32, 1>}, {pipeline_mode = #tpu.pipeline_mode<synchronous>, transform_indices = @transform_10, window_bounds = array<i64: 1024, 16>}, {transform_indices = @transform_11, window_bounds = array<i64: 1, 32, 16>}]} {
    %c0 = arith.constant 0 : index
    %c0_0 = arith.constant 0 : index
    %c0_1 = arith.constant 0 : index
    %0 = vector.load %arg1[%c0, %c0_0, %c0_1] : memref<1x32x1024xf32, #tpu.memory_space<vmem>>, vector<1x32x1024xf32>
    %1 = vector.shape_cast %0 : vector<1x32x1024xf32> to vector<32x1024xf32>
    %2 = arith.truncf %1 : vector<32x1024xf32> to vector<32x1024xbf16>
    %c0_2 = arith.constant 0 : index
    %c0_3 = arith.constant 0 : index
    %3 = vector.load %arg3[%c0_2, %c0_3] : memref<8x32xbf16, #tpu.memory_space<vmem>>, vector<8x32xbf16>
    %cst = arith.constant dense<0.000000e+00> : vector<8x1024xf32>
    %4 = tpu.matmul %3, %2, %cst {dimension_numbers = #tpu.dot_dimension_numbers<[1], [0], [0], [1], [0, 0, 1, 1], [], []>} : vector<8x32xbf16>, vector<32x1024xbf16>, vector<8x1024xf32> -> vector<8x1024xf32>
    %c0_4 = arith.constant 0 : index
    %c0_5 = arith.constant 0 : index
    %5 = vector.load %arg4[%c0_4, %c0_5] : memref<8x1xf32, #tpu.memory_space<vmem>>, vector<8x1xf32>
    %6 = vector.broadcast %5 : vector<8x1xf32> to vector<8x1024xf32>
    %7 = arith.addf %4, %6 : vector<8x1024xf32>
    %cst_6 = arith.constant 0.000000e+00 : f32
    %cst_7 = arith.constant 6.000000e+00 : f32
    %8 = vector.broadcast %cst_6 : f32 to vector<8x1024xf32>
    %9 = arith.maximumf %8, %7 : vector<8x1024xf32>
    %10 = vector.broadcast %cst_7 : f32 to vector<8x1024xf32>
    %11 = arith.minimumf %10, %9 : vector<8x1024xf32>
    %c0_8 = arith.constant 0 : index
    %c0_9 = arith.constant 0 : index
    %12 = vector.load %arg2[%c0_8, %c0_9] : memref<1x1024xf32, #tpu.memory_space<vmem>>, vector<1x1024xf32>
    %13 = vector.broadcast %12 : vector<1x1024xf32> to vector<8x1024xf32>
    %14 = arith.mulf %11, %13 : vector<8x1024xf32>
    %cst_10 = arith.constant 0.000000e+00 : f32
    %15 = vector.broadcast %cst_10 : f32 to vector<8x256xf32>
    %c0_11 = arith.constant 0 : index
    %c0_12 = arith.constant 0 : index
    %16 = vector.load %arg13[%c0_11, %c0_12] : memref<8x1536xf32, #tpu.memory_space<vmem>>, vector<8x256xf32>
    tpu.vector_store %arg13[%c0_11, %c0_12], %15 {strides = array<i32>} : memref<8x1536xf32, #tpu.memory_space<vmem>>, vector<8x256xf32>,
    %cst_13 = arith.constant 0.000000e+00 : f32
    %17 = vector.broadcast %cst_13 : f32 to vector<8x256xf32>
    %c0_14 = arith.constant 0 : index
    %c1280 = arith.constant 1280 : index
    %18 = vector.load %arg13[%c0_14, %c1280] : memref<8x1536xf32, #tpu.memory_space<vmem>>, vector<8x256xf32>
    tpu.vector_store %arg13[%c0_14, %c1280], %17 {strides = array<i32>} : memref<8x1536xf32, #tpu.memory_space<vmem>>, vector<8x256xf32>,
    %c0_15 = arith.constant 0 : index
    %c256 = arith.constant 256 : index
    %19 = vector.load %arg13[%c0_15, %c256] : memref<8x1536xf32, #tpu.memory_space<vmem>>, vector<8x1024xf32>
    tpu.vector_store %arg13[%c0_15, %c256], %14 {strides = array<i32>} : memref<8x1536xf32, #tpu.memory_space<vmem>>, vector<8x1024xf32>,
    %c0_16 = arith.constant 0 : index
    %c0_17 = arith.constant 0 : index
    %20 = vector.load %arg5[%c0_16, %c0_17] : memref<24x9xf32, #tpu.memory_space<vmem>>, vector<8x9xf32>
    %c0_18 = arith.constant 0 : index
    %c0_19 = arith.constant 0 : index
    %21 = vector.load %arg6[%c0_18, %c0_19] : memref<24x1xf32, #tpu.memory_space<vmem>>, vector<8x1xf32>
    %cst_20 = arith.constant 0.000000e+00 : f32
    %22 = vector.broadcast %cst_20 : f32 to vector<8x1024xf32>
    %c0_21 = arith.constant 0 : index
    %c157 = arith.constant 157 : index
    %23 = vector.load %arg13[%c0_21, %c157] : memref<8x1536xf32, #tpu.memory_space<vmem>>, vector<8x1024xf32>
    %24 = vector.extract_strided_slice %20 {offsets = [0, 0], sizes = [8, 1], strides = [1, 1]} : vector<8x9xf32> to vector<8x1xf32>
    %25 = vector.broadcast %24 : vector<8x1xf32> to vector<8x1024xf32>
    %26 = arith.mulf %23, %25 : vector<8x1024xf32>
    %27 = arith.addf %22, %26 : vector<8x1024xf32>
    %c0_22 = arith.constant 0 : index
    %c160 = arith.constant 160 : index
    %28 = vector.load %arg13[%c0_22, %c160] : memref<8x1536xf32, #tpu.memory_space<vmem>>, vector<8x1024xf32>
    %29 = vector.extract_strided_slice %20 {offsets = [0, 1], sizes = [8, 1], strides = [1, 1]} : vector<8x9xf32> to vector<8x1xf32>
    %30 = vector.broadcast %29 : vector<8x1xf32> to vector<8x1024xf32>
    %31 = arith.mulf %28, %30 : vector<8x1024xf32>
    %32 = arith.addf %27, %31 : vector<8x1024xf32>
    %c0_23 = arith.constant 0 : index
    %c163 = arith.constant 163 : index
    %33 = vector.load %arg13[%c0_23, %c163] : memref<8x1536xf32, #tpu.memory_space<vmem>>, vector<8x1024xf32>
    %34 = vector.extract_strided_slice %20 {offsets = [0, 2], sizes = [8, 1], strides = [1, 1]} : vector<8x9xf32> to vector<8x1xf32>
    %35 = vector.broadcast %34 : vector<8x1xf32> to vector<8x1024xf32>
    %36 = arith.mulf %33, %35 : vector<8x1024xf32>
    %37 = arith.addf %32, %36 : vector<8x1024xf32>
    %c0_24 = arith.constant 0 : index
    %c253 = arith.constant 253 : index
    %38 = vector.load %arg13[%c0_24, %c253] : memref<8x1536xf32, #tpu.memory_space<vmem>>, vector<8x1024xf32>
    %39 = vector.extract_strided_slice %20 {offsets = [0, 3], sizes = [8, 1], strides = [1, 1]} : vector<8x9xf32> to vector<8x1xf32>
    %40 = vector.broadcast %39 : vector<8x1xf32> to vector<8x1024xf32>
    %41 = arith.mulf %38, %40 : vector<8x1024xf32>
    %42 = arith.addf %37, %41 : vector<8x1024xf32>
    %c0_25 = arith.constant 0 : index
    %c256_26 = arith.constant 256 : index
    %43 = vector.load %arg13[%c0_25, %c256_26] : memref<8x1536xf32, #tpu.memory_space<vmem>>, vector<8x1024xf32>
    %44 = vector.extract_strided_slice %20 {offsets = [0, 4], sizes = [8, 1], strides = [1, 1]} : vector<8x9xf32> to vector<8x1xf32>
    %45 = vector.broadcast %44 : vector<8x1xf32> to vector<8x1024xf32>
    %46 = arith.mulf %43, %45 : vector<8x1024xf32>
    %47 = arith.addf %42, %46 : vector<8x1024xf32>
    %c0_27 = arith.constant 0 : index
    %c259 = arith.constant 259 : index
    %48 = vector.load %arg13[%c0_27, %c259] : memref<8x1536xf32, #tpu.memory_space<vmem>>, vector<8x1024xf32>
    %49 = vector.extract_strided_slice %20 {offsets = [0, 5], sizes = [8, 1], strides = [1, 1]} : vector<8x9xf32> to vector<8x1xf32>
    %50 = vector.broadcast %49 : vector<8x1xf32> to vector<8x1024xf32>
    %51 = arith.mulf %48, %50 : vector<8x1024xf32>
    %52 = arith.addf %47, %51 : vector<8x1024xf32>
    %c0_28 = arith.constant 0 : index
    %c349 = arith.constant 349 : index
    %53 = vector.load %arg13[%c0_28, %c349] : memref<8x1536xf32, #tpu.memory_space<vmem>>, vector<8x1024xf32>
    %54 = vector.extract_strided_slice %20 {offsets = [0, 6], sizes = [8, 1], strides = [1, 1]} : vector<8x9xf32> to vector<8x1xf32>
    %55 = vector.broadcast %54 : vector<8x1xf32> to vector<8x1024xf32>
    %56 = arith.mulf %53, %55 : vector<8x1024xf32>
    %57 = arith.addf %52, %56 : vector<8x1024xf32>
    %c0_29 = arith.constant 0 : index
    %c352 = arith.constant 352 : index
    %58 = vector.load %arg13[%c0_29, %c352] : memref<8x1536xf32, #tpu.memory_space<vmem>>, vector<8x1024xf32>
    %59 = vector.extract_strided_slice %20 {offsets = [0, 7], sizes = [8, 1], strides = [1, 1]} : vector<8x9xf32> to vector<8x1xf32>
    %60 = vector.broadcast %59 : vector<8x1xf32> to vector<8x1024xf32>
    %61 = arith.mulf %58, %60 : vector<8x1024xf32>
    %62 = arith.addf %57, %61 : vector<8x1024xf32>
    %c0_30 = arith.constant 0 : index
    %c355 = arith.constant 355 : index
    %63 = vector.load %arg13[%c0_30, %c355] : memref<8x1536xf32, #tpu.memory_space<vmem>>, vector<8x1024xf32>
    %64 = vector.extract_strided_slice %20 {offsets = [0, 8], sizes = [8, 1], strides = [1, 1]} : vector<8x9xf32> to vector<8x1xf32>
    %65 = vector.broadcast %64 : vector<8x1xf32> to vector<8x1024xf32>
    %66 = arith.mulf %63, %65 : vector<8x1024xf32>
    %67 = arith.addf %62, %66 : vector<8x1024xf32>
    %68 = vector.broadcast %21 : vector<8x1xf32> to vector<8x1024xf32>
    %69 = arith.addf %67, %68 : vector<8x1024xf32>
    %cst_31 = arith.constant 0.000000e+00 : f32
    %cst_32 = arith.constant 6.000000e+00 : f32
    %70 = vector.broadcast %cst_31 : f32 to vector<8x1024xf32>
    %71 = arith.maximumf %70, %69 : vector<8x1024xf32>
    %72 = vector.broadcast %cst_32 : f32 to vector<8x1024xf32>
    %73 = arith.minimumf %72, %71 : vector<8x1024xf32>
    %c8 = arith.constant 8 : index
    %c0_33 = arith.constant 0 : index
    %74 = vector.load %arg5[%c8, %c0_33] : memref<24x9xf32, #tpu.memory_space<vmem>>, vector<8x9xf32>
    %c8_34 = arith.constant 8 : index
    %c0_35 = arith.constant 0 : index
    %75 = vector.load %arg6[%c8_34, %c0_35] : memref<24x1xf32, #tpu.memory_space<vmem>>, vector<8x1xf32>
    %cst_36 = arith.constant 0.000000e+00 : f32
    %76 = vector.broadcast %cst_36 : f32 to vector<8x1024xf32>
    %c0_37 = arith.constant 0 : index
    %c91 = arith.constant 91 : index
    %77 = vector.load %arg13[%c0_37, %c91] : memref<8x1536xf32, #tpu.memory_space<vmem>>, vector<8x1024xf32>
    %78 = vector.extract_strided_slice %74 {offsets = [0, 0], sizes = [8, 1], strides = [1, 1]} : vector<8x9xf32> to vector<8x1xf32>
    %79 = vector.broadcast %78 : vector<8x1xf32> to vector<8x1024xf32>
    %80 = arith.mulf %77, %79 : vector<8x1024xf32>
    %81 = arith.addf %76, %80 : vector<8x1024xf32>
    %c0_38 = arith.constant 0 : index
    %c96 = arith.constant 96 : index
    %82 = vector.load %arg13[%c0_38, %c96] : memref<8x1536xf32, #tpu.memory_space<vmem>>, vector<8x1024xf32>
    %83 = vector.extract_strided_slice %74 {offsets = [0, 1], sizes = [8, 1], strides = [1, 1]} : vector<8x9xf32> to vector<8x1xf32>
    %84 = vector.broadcast %83 : vector<8x1xf32> to vector<8x1024xf32>
    %85 = arith.mulf %82, %84 : vector<8x1024xf32>
    %86 = arith.addf %81, %85 : vector<8x1024xf32>
    %c0_39 = arith.constant 0 : index
    %c101 = arith.constant 101 : index
    %87 = vector.load %arg13[%c0_39, %c101] : memref<8x1536xf32, #tpu.memory_space<vmem>>, vector<8x1024xf32>
    %88 = vector.extract_strided_slice %74 {offsets = [0, 2], sizes = [8, 1], strides = [1, 1]} : vector<8x9xf32> to vector<8x1xf32>
    %89 = vector.broadcast %88 : vector<8x1xf32> to vector<8x1024xf32>
    %90 = arith.mulf %87, %89 : vector<8x1024xf32>
    %91 = arith.addf %86, %90 : vector<8x1024xf32>
    %c0_40 = arith.constant 0 : index
    %c251 = arith.constant 251 : index
    %92 = vector.load %arg13[%c0_40, %c251] : memref<8x1536xf32, #tpu.memory_space<vmem>>, vector<8x1024xf32>
    %93 = vector.extract_strided_slice %74 {offsets = [0, 3], sizes = [8, 1], strides = [1, 1]} : vector<8x9xf32> to vector<8x1xf32>
    %94 = vector.broadcast %93 : vector<8x1xf32> to vector<8x1024xf32>
    %95 = arith.mulf %92, %94 : vector<8x1024xf32>
    %96 = arith.addf %91, %95 : vector<8x1024xf32>
    %c0_41 = arith.constant 0 : index
    %c256_42 = arith.constant 256 : index
    %97 = vector.load %arg13[%c0_41, %c256_42] : memref<8x1536xf32, #tpu.memory_space<vmem>>, vector<8x1024xf32>
    %98 = vector.extract_strided_slice %74 {offsets = [0, 4], sizes = [8, 1], strides = [1, 1]} : vector<8x9xf32> to vector<8x1xf32>
    %99 = vector.broadcast %98 : vector<8x1xf32> to vector<8x1024xf32>
    %100 = arith.mulf %97, %99 : vector<8x1024xf32>
    %101 = arith.addf %96, %100 : vector<8x1024xf32>
    %c0_43 = arith.constant 0 : index
    %c261 = arith.constant 261 : index
    %102 = vector.load %arg13[%c0_43, %c261] : memref<8x1536xf32, #tpu.memory_space<vmem>>, vector<8x1024xf32>
    %103 = vector.extract_strided_slice %74 {offsets = [0, 5], sizes = [8, 1], strides = [1, 1]} : vector<8x9xf32> to vector<8x1xf32>
    %104 = vector.broadcast %103 : vector<8x1xf32> to vector<8x1024xf32>
    %105 = arith.mulf %102, %104 : vector<8x1024xf32>
    %106 = arith.addf %101, %105 : vector<8x1024xf32>
    %c0_44 = arith.constant 0 : index
    %c411 = arith.constant 411 : index
    %107 = vector.load %arg13[%c0_44, %c411] : memref<8x1536xf32, #tpu.memory_space<vmem>>, vector<8x1024xf32>
    %108 = vector.extract_strided_slice %74 {offsets = [0, 6], sizes = [8, 1], strides = [1, 1]} : vector<8x9xf32> to vector<8x1xf32>
    %109 = vector.broadcast %108 : vector<8x1xf32> to vector<8x1024xf32>
    %110 = arith.mulf %107, %109 : vector<8x1024xf32>
    %111 = arith.addf %106, %110 : vector<8x1024xf32>
    %c0_45 = arith.constant 0 : index
    %c416 = arith.constant 416 : index
    %112 = vector.load %arg13[%c0_45, %c416] : memref<8x1536xf32, #tpu.memory_space<vmem>>, vector<8x1024xf32>
    %113 = vector.extract_strided_slice %74 {offsets = [0, 7], sizes = [8, 1], strides = [1, 1]} : vector<8x9xf32> to vector<8x1xf32>
    %114 = vector.broadcast %113 : vector<8x1xf32> to vector<8x1024xf32>
    %115 = arith.mulf %112, %114 : vector<8x1024xf32>
    %116 = arith.addf %111, %115 : vector<8x1024xf32>
    %c0_46 = arith.constant 0 : index
    %c421 = arith.constant 421 : index
    %117 = vector.load %arg13[%c0_46, %c421] : memref<8x1536xf32, #tpu.memory_space<vmem>>, vector<8x1024xf32>
    %118 = vector.extract_strided_slice %74 {offsets = [0, 8], sizes = [8, 1], strides = [1, 1]} : vector<8x9xf32> to vector<8x1xf32>
    %119 = vector.broadcast %118 : vector<8x1xf32> to vector<8x1024xf32>
    %120 = arith.mulf %117, %119 : vector<8x1024xf32>
    %121 = arith.addf %116, %120 : vector<8x1024xf32>
    %122 = vector.broadcast %75 : vector<8x1xf32> to vector<8x1024xf32>
    %123 = arith.addf %121, %122 : vector<8x1024xf32>
    %cst_47 = arith.constant 0.000000e+00 : f32
    %cst_48 = arith.constant 6.000000e+00 : f32
    %124 = vector.broadcast %cst_47 : f32 to vector<8x1024xf32>
    %125 = arith.maximumf %124, %123 : vector<8x1024xf32>
    %126 = vector.broadcast %cst_48 : f32 to vector<8x1024xf32>
    %127 = arith.minimumf %126, %125 : vector<8x1024xf32>
    %c16 = arith.constant 16 : index
    %c0_49 = arith.constant 0 : index
    %128 = vector.load %arg5[%c16, %c0_49] : memref<24x9xf32, #tpu.memory_space<vmem>>, vector<8x9xf32>
    %c16_50 = arith.constant 16 : index
    %c0_51 = arith.constant 0 : index
    %129 = vector.load %arg6[%c16_50, %c0_51] : memref<24x1xf32, #tpu.memory_space<vmem>>, vector<8x1xf32>
    %cst_52 = arith.constant 0.000000e+00 : f32
    %130 = vector.broadcast %cst_52 : f32 to vector<8x1024xf32>
    %c0_53 = arith.constant 0 : index
    %c25 = arith.constant 25 : index
    %131 = vector.load %arg13[%c0_53, %c25] : memref<8x1536xf32, #tpu.memory_space<vmem>>, vector<8x1024xf32>
    %132 = vector.extract_strided_slice %128 {offsets = [0, 0], sizes = [8, 1], strides = [1, 1]} : vector<8x9xf32> to vector<8x1xf32>
    %133 = vector.broadcast %132 : vector<8x1xf32> to vector<8x1024xf32>
    %134 = arith.mulf %131, %133 : vector<8x1024xf32>
    %135 = arith.addf %130, %134 : vector<8x1024xf32>
    %c0_54 = arith.constant 0 : index
    %c32 = arith.constant 32 : index
    %136 = vector.load %arg13[%c0_54, %c32] : memref<8x1536xf32, #tpu.memory_space<vmem>>, vector<8x1024xf32>
    %137 = vector.extract_strided_slice %128 {offsets = [0, 1], sizes = [8, 1], strides = [1, 1]} : vector<8x9xf32> to vector<8x1xf32>
    %138 = vector.broadcast %137 : vector<8x1xf32> to vector<8x1024xf32>
    %139 = arith.mulf %136, %138 : vector<8x1024xf32>
    %140 = arith.addf %135, %139 : vector<8x1024xf32>
    %c0_55 = arith.constant 0 : index
    %c39 = arith.constant 39 : index
    %141 = vector.load %arg13[%c0_55, %c39] : memref<8x1536xf32, #tpu.memory_space<vmem>>, vector<8x1024xf32>
    %142 = vector.extract_strided_slice %128 {offsets = [0, 2], sizes = [8, 1], strides = [1, 1]} : vector<8x9xf32> to vector<8x1xf32>
    %143 = vector.broadcast %142 : vector<8x1xf32> to vector<8x1024xf32>
    %144 = arith.mulf %141, %143 : vector<8x1024xf32>
    %145 = arith.addf %140, %144 : vector<8x1024xf32>
    %c0_56 = arith.constant 0 : index
    %c249 = arith.constant 249 : index
    %146 = vector.load %arg13[%c0_56, %c249] : memref<8x1536xf32, #tpu.memory_space<vmem>>, vector<8x1024xf32>
    %147 = vector.extract_strided_slice %128 {offsets = [0, 3], sizes = [8, 1], strides = [1, 1]} : vector<8x9xf32> to vector<8x1xf32>
    %148 = vector.broadcast %147 : vector<8x1xf32> to vector<8x1024xf32>
    %149 = arith.mulf %146, %148 : vector<8x1024xf32>
    %150 = arith.addf %145, %149 : vector<8x1024xf32>
    %c0_57 = arith.constant 0 : index
    %c256_58 = arith.constant 256 : index
    %151 = vector.load %arg13[%c0_57, %c256_58] : memref<8x1536xf32, #tpu.memory_space<vmem>>, vector<8x1024xf32>
    %152 = vector.extract_strided_slice %128 {offsets = [0, 4], sizes = [8, 1], strides = [1, 1]} : vector<8x9xf32> to vector<8x1xf32>
    %153 = vector.broadcast %152 : vector<8x1xf32> to vector<8x1024xf32>
    %154 = arith.mulf %151, %153 : vector<8x1024xf32>
    %155 = arith.addf %150, %154 : vector<8x1024xf32>
    %c0_59 = arith.constant 0 : index
    %c263 = arith.constant 263 : index
    %156 = vector.load %arg13[%c0_59, %c263] : memref<8x1536xf32, #tpu.memory_space<vmem>>, vector<8x1024xf32>
    %157 = vector.extract_strided_slice %128 {offsets = [0, 5], sizes = [8, 1], strides = [1, 1]} : vector<8x9xf32> to vector<8x1xf32>
    %158 = vector.broadcast %157 : vector<8x1xf32> to vector<8x1024xf32>
    %159 = arith.mulf %156, %158 : vector<8x1024xf32>
    %160 = arith.addf %155, %159 : vector<8x1024xf32>
    %c0_60 = arith.constant 0 : index
    %c473 = arith.constant 473 : index
    %161 = vector.load %arg13[%c0_60, %c473] : memref<8x1536xf32, #tpu.memory_space<vmem>>, vector<8x1024xf32>
    %162 = vector.extract_strided_slice %128 {offsets = [0, 6], sizes = [8, 1], strides = [1, 1]} : vector<8x9xf32> to vector<8x1xf32>
    %163 = vector.broadcast %162 : vector<8x1xf32> to vector<8x1024xf32>
    %164 = arith.mulf %161, %163 : vector<8x1024xf32>
    %165 = arith.addf %160, %164 : vector<8x1024xf32>
    %c0_61 = arith.constant 0 : index
    %c480 = arith.constant 480 : index
    %166 = vector.load %arg13[%c0_61, %c480] : memref<8x1536xf32, #tpu.memory_space<vmem>>, vector<8x1024xf32>
    %167 = vector.extract_strided_slice %128 {offsets = [0, 7], sizes = [8, 1], strides = [1, 1]} : vector<8x9xf32> to vector<8x1xf32>
    %168 = vector.broadcast %167 : vector<8x1xf32> to vector<8x1024xf32>
    %169 = arith.mulf %166, %168 : vector<8x1024xf32>
    %170 = arith.addf %165, %169 : vector<8x1024xf32>
    %c0_62 = arith.constant 0 : index
    %c487 = arith.constant 487 : index
    %171 = vector.load %arg13[%c0_62, %c487] : memref<8x1536xf32, #tpu.memory_space<vmem>>, vector<8x1024xf32>
    %172 = vector.extract_strided_slice %128 {offsets = [0, 8], sizes = [8, 1], strides = [1, 1]} : vector<8x9xf32> to vector<8x1xf32>
    %173 = vector.broadcast %172 : vector<8x1xf32> to vector<8x1024xf32>
    %174 = arith.mulf %171, %173 : vector<8x1024xf32>
    %175 = arith.addf %170, %174 : vector<8x1024xf32>
    %176 = vector.broadcast %129 : vector<8x1xf32> to vector<8x1024xf32>
    %177 = arith.addf %175, %176 : vector<8x1024xf32>
    %cst_63 = arith.constant 0.000000e+00 : f32
    %cst_64 = arith.constant 6.000000e+00 : f32
    %178 = vector.broadcast %cst_63 : f32 to vector<8x1024xf32>
    %179 = arith.maximumf %178, %177 : vector<8x1024xf32>
    %180 = vector.broadcast %cst_64 : f32 to vector<8x1024xf32>
    %181 = arith.minimumf %180, %179 : vector<8x1024xf32>
    %182 = tpu.concatenate %73, %127, %181 in 0 : vector<8x1024xf32>, vector<8x1024xf32>, vector<8x1024xf32> -> vector<24x1024xf32>
    %c0_65 = arith.constant 0 : index
    %c0_66 = arith.constant 0 : index
    %183 = vector.load %arg7[%c0_65, %c0_66] : memref<96x24xbf16, #tpu.memory_space<vmem>>, vector<96x24xbf16>
    %184 = arith.truncf %182 : vector<24x1024xf32> to vector<24x1024xbf16>
    %cst_67 = arith.constant dense<0.000000e+00> : vector<96x1024xf32>
    %185 = tpu.matmul %183, %184, %cst_67 {dimension_numbers = #tpu.dot_dimension_numbers<[1], [0], [0], [1], [0, 0, 1, 1], [], []>} : vector<96x24xbf16>, vector<24x1024xbf16>, vector<96x1024xf32> -> vector<96x1024xf32>
    %c0_68 = arith.constant 0 : index
    %c0_69 = arith.constant 0 : index
    %186 = vector.load %arg8[%c0_68, %c0_69] : memref<96x1xf32, #tpu.memory_space<vmem>>, vector<96x1xf32>
    %187 = vector.broadcast %186 : vector<96x1xf32> to vector<96x1024xf32>
    %188 = arith.addf %185, %187 : vector<96x1024xf32>
    %cst_70 = arith.constant 0.000000e+00 : f32
    %cst_71 = arith.constant 6.000000e+00 : f32
    %189 = vector.broadcast %cst_70 : f32 to vector<96x1024xf32>
    %190 = arith.maximumf %189, %188 : vector<96x1024xf32>
    %191 = vector.broadcast %cst_71 : f32 to vector<96x1024xf32>
    %192 = arith.minimumf %191, %190 : vector<96x1024xf32>
    %193 = vector.extract_strided_slice %192 {offsets = [0, 0], sizes = [32, 1024], strides = [1, 1]} : vector<96x1024xf32> to vector<32x1024xf32>
    %194 = vector.extract_strided_slice %192 {offsets = [32, 0], sizes = [32, 1024], strides = [1, 1]} : vector<96x1024xf32> to vector<32x1024xf32>
    %195 = arith.addf %193, %194 : vector<32x1024xf32>
    %196 = vector.extract_strided_slice %192 {offsets = [64, 0], sizes = [32, 1024], strides = [1, 1]} : vector<96x1024xf32> to vector<32x1024xf32>
    %197 = arith.addf %195, %196 : vector<32x1024xf32>
    %c0_72 = arith.constant 0 : index
    %c0_73 = arith.constant 0 : index
    %198 = vector.load %arg9[%c0_72, %c0_73] : memref<32x32xbf16, #tpu.memory_space<vmem>>, vector<32x32xbf16>
    %199 = arith.truncf %197 : vector<32x1024xf32> to vector<32x1024xbf16>
    %cst_74 = arith.constant dense<0.000000e+00> : vector<32x1024xf32>
    %200 = tpu.matmul %198, %199, %cst_74 {dimension_numbers = #tpu.dot_dimension_numbers<[1], [0], [0], [1], [0, 0, 1, 1], [], []>} : vector<32x32xbf16>, vector<32x1024xbf16>, vector<32x1024xf32> -> vector<32x1024xf32>
    %c0_75 = arith.constant 0 : index
    %c0_76 = arith.constant 0 : index
    %201 = vector.load %arg10[%c0_75, %c0_76] : memref<32x1xf32, #tpu.memory_space<vmem>>, vector<32x1xf32>
    %202 = vector.broadcast %201 : vector<32x1xf32> to vector<32x1024xf32>
    %203 = arith.addf %200, %202 : vector<32x1024xf32>
    %cst_77 = arith.constant 0.000000e+00 : f32
    %cst_78 = arith.constant 6.000000e+00 : f32
    %204 = vector.broadcast %cst_77 : f32 to vector<32x1024xf32>
    %205 = arith.maximumf %204, %203 : vector<32x1024xf32>
    %206 = vector.broadcast %cst_78 : f32 to vector<32x1024xf32>
    %207 = arith.minimumf %206, %205 : vector<32x1024xf32>
    %208 = arith.mulf %207, %1 : vector<32x1024xf32>
    %209 = arith.truncf %208 : vector<32x1024xf32> to vector<32x1024xbf16>
    %c0_79 = arith.constant 0 : index
    %c0_80 = arith.constant 0 : index
    %210 = vector.load %arg11[%c0_79, %c0_80] : memref<1024x16xbf16, #tpu.memory_space<vmem>>, vector<1024x16xbf16>
    %cst_81 = arith.constant dense<0.000000e+00> : vector<32x16xf32>
    %211 = tpu.matmul %209, %210, %cst_81 {dimension_numbers = #tpu.dot_dimension_numbers<[1], [0], [0], [1], [0, 0, 1, 1], [], []>} : vector<32x1024xbf16>, vector<1024x16xbf16>, vector<32x16xf32> -> vector<32x16xf32>
    %c0_82 = arith.constant 0 : index
    %c0_83 = arith.constant 0 : index
    %c0_84 = arith.constant 0 : index
    %212 = vector.load %arg12[%c0_82, %c0_83, %c0_84] : memref<1x32x16xf32, #tpu.memory_space<vmem>>, vector<1x32x16xf32>
    %213 = vector.shape_cast %212 : vector<1x32x16xf32> to vector<32x16xf32>
    %214 = vector.shape_cast %211 : vector<32x16xf32> to vector<1x32x16xf32>
    tpu.vector_store %arg12[%c0_82, %c0_83, %c0_84], %214 {strides = array<i32>} : memref<1x32x16xf32, #tpu.memory_space<vmem>>, vector<1x32x16xf32>,
    return
  }
  func.func @transform_0(%arg0: i32) -> (i32, i32, i32) {
    %c0_i32 = arith.constant 0 : i32
    %c0_i32_0 = arith.constant 0 : i32
    %c0_i32_1 = arith.constant 0 : i32
    return %arg0, %c0_i32, %c0_i32_0 : i32, i32, i32
  }
  func.func @transform_1(%arg0: i32) -> (i32, i32) {
    %c0_i32 = arith.constant 0 : i32
    %c0_i32_0 = arith.constant 0 : i32
    %c0_i32_1 = arith.constant 0 : i32
    return %c0_i32, %c0_i32_0 : i32, i32
  }
  func.func @transform_2(%arg0: i32) -> (i32, i32) {
    %c0_i32 = arith.constant 0 : i32
    %c0_i32_0 = arith.constant 0 : i32
    %c0_i32_1 = arith.constant 0 : i32
    return %c0_i32, %c0_i32_0 : i32, i32
  }
  func.func @transform_3(%arg0: i32) -> (i32, i32) {
    %c0_i32 = arith.constant 0 : i32
    %c0_i32_0 = arith.constant 0 : i32
    %c0_i32_1 = arith.constant 0 : i32
    return %c0_i32, %c0_i32_0 : i32, i32
  }
  func.func @transform_4(%arg0: i32) -> (i32, i32) {
    %c0_i32 = arith.constant 0 : i32
    %c0_i32_0 = arith.constant 0 : i32
    %c0_i32_1 = arith.constant 0 : i32
    return %c0_i32, %c0_i32_0 : i32, i32
  }
  func.func @transform_5(%arg0: i32) -> (i32, i32) {
    %c0_i32 = arith.constant 0 : i32
    %c0_i32_0 = arith.constant 0 : i32
    %c0_i32_1 = arith.constant 0 : i32
    return %c0_i32, %c0_i32_0 : i32, i32
  }
  func.func @transform_6(%arg0: i32) -> (i32, i32) {
    %c0_i32 = arith.constant 0 : i32
    %c0_i32_0 = arith.constant 0 : i32
    %c0_i32_1 = arith.constant 0 : i32
    return %c0_i32, %c0_i32_0 : i32, i32
  }
  func.func @transform_7(%arg0: i32) -> (i32, i32) {
    %c0_i32 = arith.constant 0 : i32
    %c0_i32_0 = arith.constant 0 : i32
    %c0_i32_1 = arith.constant 0 : i32
    return %c0_i32, %c0_i32_0 : i32, i32
  }
  func.func @transform_8(%arg0: i32) -> (i32, i32) {
    %c0_i32 = arith.constant 0 : i32
    %c0_i32_0 = arith.constant 0 : i32
    %c0_i32_1 = arith.constant 0 : i32
    return %c0_i32, %c0_i32_0 : i32, i32
  }
  func.func @transform_9(%arg0: i32) -> (i32, i32) {
    %c0_i32 = arith.constant 0 : i32
    %c0_i32_0 = arith.constant 0 : i32
    %c0_i32_1 = arith.constant 0 : i32
    return %c0_i32, %c0_i32_0 : i32, i32
  }
  func.func @transform_10(%arg0: i32) -> (i32, i32) {
    %c0_i32 = arith.constant 0 : i32
    %c0_i32_0 = arith.constant 0 : i32
    %c0_i32_1 = arith.constant 0 : i32
    return %c0_i32, %c0_i32_0 : i32, i32
  }
  func.func @transform_11(%arg0: i32) -> (i32, i32, i32) {
    %c0_i32 = arith.constant 0 : i32
    %c0_i32_0 = arith.constant 0 : i32
    %c0_i32_1 = arith.constant 0 : i32
    return %arg0, %c0_i32, %c0_i32_0 : i32, i32, i32
  }
}

</mosaic_0001>

<llo_original>
// kernel: tpu_custom_call.1
$region0: #{tpu_custom_call.1}
  #allocation0 [shape = 'u32[]', space=smem, size = 0x4, offset = 0x4, fixed_abs, tag = 'smem constant byte address 0x4 - core index']
  #allocation1 [shape = 'u32[72,128]{1,0:T(1,128)}', space=vmem, size = 0x9000, scoped, tag = 'internal scratch']
  #allocation2 [shape = 'f32[8,1536]{1,0:T(8,128)}', space=vmem, size = 0xc000, scoped, tag = 'scratch operand']
  %s0 = inlined_call_operand.vmem [shape: f32[2,32,1024], index: 0, kind: input, shape index: {}]
  %s1 = inlined_call_operand.vmem [shape: f32[1,1024], index: 1, kind: input, shape index: {}]
  %s2 = inlined_call_operand.vmem [shape: bf16[8,32], index: 2, kind: input, shape index: {}]
  %s3 = inlined_call_operand.vmem [shape: f32[8,1], index: 3, kind: input, shape index: {}]
  %s4 = inlined_call_operand.vmem [shape: f32[24,9], index: 4, kind: input, shape index: {}]
  %s5 = inlined_call_operand.vmem [shape: f32[24,1], index: 5, kind: input, shape index: {}]
  %s6 = inlined_call_operand.vmem [shape: bf16[96,24], index: 6, kind: input, shape index: {}]
  %s7 = inlined_call_operand.vmem [shape: f32[96,1], index: 7, kind: input, shape index: {}]
  %s8 = inlined_call_operand.vmem [shape: bf16[32,32], index: 8, kind: input, shape index: {}]
  %s9 = inlined_call_operand.vmem [shape: f32[32,1], index: 9, kind: input, shape index: {}]
  %s10 = inlined_call_operand.vmem [shape: bf16[1024,16], index: 10, kind: input, shape index: {}]
  %s11 = inlined_call_operand.vmem [shape: f32[2,32,16], index: 11, kind: output, shape index: {}]
  %s12 = sld [smem:[#allocation0]]
  $region77: #{tpu_custom_call.1} parent=0
    _
  %s14 = ssub.s32 1, %s12
  %s15 = scalar_select 0, %s14, %s12
  loop: start=0, step=1, limit=4
  $region2: #{tpu_custom_call.1} parent=0 // loop_pre_header
    _
  $region3: #{tpu_custom_call.1} parent=0 // loop_header
    %s17 = sphi 0, %s21
    %p18 = scmp.ge.s32.totalorder %s17, 4
    %s27 = sphi 0, %s29
    %s30 = sphi 0, %s27
    %s31 = sphi 0, %s30
    %s47 = sphi 0, %s31
    %s51 = sphi 0, %s51
    %s53 = sphi 0, %s51
    %s54 = sphi 0, %s53
    %s68 = sphi 0, %s54
    %s72 = sphi 0, %s72
    %s74 = sphi 0, %s72
    %s75 = sphi 0, %s74
    %s89 = sphi 0, %s75
    %s93 = sphi 0, %s93
    %s95 = sphi 0, %s93
    %s96 = sphi 0, %s95
    %s110 = sphi 0, %s96
    %s114 = sphi 0, %s114
    %s116 = sphi 0, %s114
    %s117 = sphi 0, %s116
    %s131 = sphi 0, %s117
    %s135 = sphi 0, %s135
    %s137 = sphi 0, %s135
    %s138 = sphi 0, %s137
    %s152 = sphi 0, %s138
    %s156 = sphi 0, %s156
    %s158 = sphi 0, %s156
    %s159 = sphi 0, %s158
    %s173 = sphi 0, %s159
    %s177 = sphi 0, %s177
    %s179 = sphi 0, %s177
    %s180 = sphi 0, %s179
    %s194 = sphi 0, %s180
    %s198 = sphi 0, %s198
    %s200 = sphi 0, %s198
    %s201 = sphi 0, %s200
    %s215 = sphi 0, %s201
    %s219 = sphi 0, %s219
    %s221 = sphi 0, %s219
    %s222 = sphi 0, %s221
    %s236 = sphi 0, %s222
    %s240 = sphi 0, %s240
    %s242 = sphi 0, %s240
    %s243 = sphi 0, %s242
    %s257 = sphi 0, %s243
    %s263 = sphi 0, %s265
    %s266 = sphi 0, %s263
    %s267 = sphi 0, %s266
    %s283 = sphi 0, %s267
  $region4: #{tpu_custom_call.1} parent=0 // loop_header_branch
    %20 = sbr.rel (%p18) target = $region8
  $region5: #{tpu_custom_call.1} parent=0 // loop_body
    %s22 = ssub.s32 %s17, 1
    %s23 = ssub.s32 %s17, 2
    %s24 = sadd.s32 %s17, 1
    %s25 = ssub.s32 %s17, %s24
    %p26 = scmp.eq.s32.totalorder %s25, 0
    %s28 = sadd.s32 %s27, 1
    %s29 = scalar_select %p26, %s27, %s28
    %p32 = pneg %p26
    %p33 = scmp.eq.s32.totalorder %s17, 1
    %p34 = por %p32, %p33
    %p35 = scmp.ne.s32.totalorder %s27, %s30
    %p36 = scmp.eq.s32.totalorder %s17, 0
    %p37 = por %p35, %p36
    %p38 = scmp.ne.s32.totalorder %s27, %s30
    %p39 = scmp.eq.s32.totalorder %s22, 1
    %p40 = por %p38, %p39
    %p41 = scmp.ne.s32.totalorder %s30, %s31
    %p42 = scmp.eq.s32.totalorder %s22, 0
    %p43 = por %p41, %p42
    %p44 = scmp.ne.s32.totalorder %s30, %s31
    %p45 = scmp.eq.s32.totalorder %s23, 1
    %p46 = por %p44, %p45
    %p48 = scmp.ne.s32.totalorder %s31, %s47
    %p49 = scmp.eq.s32.totalorder %s23, 0
    %p50 = por %p48, %p49
    %s52 = sadd.s32 %s51, 1
    %p55 = scmp.eq.s32.totalorder %s17, 1
    %p56 = scmp.ne.s32.totalorder %s51, %s53
    %p57 = scmp.eq.s32.totalorder %s17, 0
    %p58 = por %p56, %p57
    %p59 = scmp.ne.s32.totalorder %s51, %s53
    %p60 = scmp.eq.s32.totalorder %s22, 1
    %p61 = por %p59, %p60
    %p62 = scmp.ne.s32.totalorder %s53, %s54
    %p63 = scmp.eq.s32.totalorder %s22, 0
    %p64 = por %p62, %p63
    %p65 = scmp.ne.s32.totalorder %s53, %s54
    %p66 = scmp.eq.s32.totalorder %s23, 1
    %p67 = por %p65, %p66
    %p69 = scmp.ne.s32.totalorder %s54, %s68
    %p70 = scmp.eq.s32.totalorder %s23, 0
    %p71 = por %p69, %p70
    %s73 = sadd.s32 %s72, 1
    %p76 = scmp.eq.s32.totalorder %s17, 1
    %p77 = scmp.ne.s32.totalorder %s72, %s74
    %p78 = scmp.eq.s32.totalorder %s17, 0
    %p79 = por %p77, %p78
    %p80 = scmp.ne.s32.totalorder %s72, %s74
    %p81 = scmp.eq.s32.totalorder %s22, 1
    %p82 = por %p80, %p81
    %p83 = scmp.ne.s32.totalorder %s74, %s75
    %p84 = scmp.eq.s32.totalorder %s22, 0
    %p85 = por %p83, %p84
    %p86 = scmp.ne.s32.totalorder %s74, %s75
    %p87 = scmp.eq.s32.totalorder %s23, 1
    %p88 = por %p86, %p87
    %p90 = scmp.ne.s32.totalorder %s75, %s89
    %p91 = scmp.eq.s32.totalorder %s23, 0
    %p92 = por %p90, %p91
    %s94 = sadd.s32 %s93, 1
    %p97 = scmp.eq.s32.totalorder %s17, 1
    %p98 = scmp.ne.s32.totalorder %s93, %s95
    %p99 = scmp.eq.s32.totalorder %s17, 0
    %p100 = por %p98, %p99
    %p101 = scmp.ne.s32.totalorder %s93, %s95
    %p102 = scmp.eq.s32.totalorder %s22, 1
    %p103 = por %p101, %p102
    %p104 = scmp.ne.s32.totalorder %s95, %s96
    %p105 = scmp.eq.s32.totalorder %s22, 0
    %p106 = por %p104, %p105
    %p107 = scmp.ne.s32.totalorder %s95, %s96
    %p108 = scmp.eq.s32.totalorder %s23, 1
    %p109 = por %p107, %p108
    %p111 = scmp.ne.s32.totalorder %s96, %s110
    %p112 = scmp.eq.s32.totalorder %s23, 0
    %p113 = por %p111, %p112
    %s115 = sadd.s32 %s114, 1
    %p118 = scmp.eq.s32.totalorder %s17, 1
    %p119 = scmp.ne.s32.totalorder %s114, %s116
    %p120 = scmp.eq.s32.totalorder %s17, 0
    %p121 = por %p119, %p120
    %p122 = scmp.ne.s32.totalorder %s114, %s116
    %p123 = scmp.eq.s32.totalorder %s22, 1
    %p124 = por %p122, %p123
    %p125 = scmp.ne.s32.totalorder %s116, %s117
    %p126 = scmp.eq.s32.totalorder %s22, 0
    %p127 = por %p125, %p126
    %p128 = scmp.ne.s32.totalorder %s116, %s117
    %p129 = scmp.eq.s32.totalorder %s23, 1
    %p130 = por %p128, %p129
    %p132 = scmp.ne.s32.totalorder %s117, %s131
    %p133 = scmp.eq.s32.totalorder %s23, 0
    %p134 = por %p132, %p133
    %s136 = sadd.s32 %s135, 1
    %p139 = scmp.eq.s32.totalorder %s17, 1
    %p140 = scmp.ne.s32.totalorder %s135, %s137
    %p141 = scmp.eq.s32.totalorder %s17, 0
    %p142 = por %p140, %p141
    %p143 = scmp.ne.s32.totalorder %s135, %s137
    %p144 = scmp.eq.s32.totalorder %s22, 1
    %p145 = por %p143, %p144
    %p146 = scmp.ne.s32.totalorder %s137, %s138
    %p147 = scmp.eq.s32.totalorder %s22, 0
    %p148 = por %p146, %p147
    %p149 = scmp.ne.s32.totalorder %s137, %s138
    %p150 = scmp.eq.s32.totalorder %s23, 1
    %p151 = por %p149, %p150
    %p153 = scmp.ne.s32.totalorder %s138, %s152
    %p154 = scmp.eq.s32.totalorder %s23, 0
    %p155 = por %p153, %p154
    %s157 = sadd.s32 %s156, 1
    %p160 = scmp.eq.s32.totalorder %s17, 1
    %p161 = scmp.ne.s32.totalorder %s156, %s158
    %p162 = scmp.eq.s32.totalorder %s17, 0
    %p163 = por %p161, %p162
    %p164 = scmp.ne.s32.totalorder %s156, %s158
    %p165 = scmp.eq.s32.totalorder %s22, 1
    %p166 = por %p164, %p165
    %p167 = scmp.ne.s32.totalorder %s158, %s159
    %p168 = scmp.eq.s32.totalorder %s22, 0
    %p169 = por %p167, %p168
    %p170 = scmp.ne.s32.totalorder %s158, %s159
    %p171 = scmp.eq.s32.totalorder %s23, 1
    %p172 = por %p170, %p171
    %p174 = scmp.ne.s32.totalorder %s159, %s173
    %p175 = scmp.eq.s32.totalorder %s23, 0
    %p176 = por %p174, %p175
    %s178 = sadd.s32 %s177, 1
    %p181 = scmp.eq.s32.totalorder %s17, 1
    %p182 = scmp.ne.s32.totalorder %s177, %s179
    %p183 = scmp.eq.s32.totalorder %s17, 0
    %p184 = por %p182, %p183
    %p185 = scmp.ne.s32.totalorder %s177, %s179
    %p186 = scmp.eq.s32.totalorder %s22, 1
    %p187 = por %p185, %p186
    %p188 = scmp.ne.s32.totalorder %s179, %s180
    %p189 = scmp.eq.s32.totalorder %s22, 0
    %p190 = por %p188, %p189
    %p191 = scmp.ne.s32.totalorder %s179, %s180
    %p192 = scmp.eq.s32.totalorder %s23, 1
    %p193 = por %p191, %p192
    %p195 = scmp.ne.s32.totalorder %s180, %s194
    %p196 = scmp.eq.s32.totalorder %s23, 0
    %p197 = por %p195, %p196
    %s199 = sadd.s32 %s198, 1
    %p202 = scmp.eq.s32.totalorder %s17, 1
    %p203 = scmp.ne.s32.totalorder %s198, %s200
    %p204 = scmp.eq.s32.totalorder %s17, 0
    %p205 = por %p203, %p204
    %p206 = scmp.ne.s32.totalorder %s198, %s200
    %p207 = scmp.eq.s32.totalorder %s22, 1
    %p208 = por %p206, %p207
    %p209 = scmp.ne.s32.totalorder %s200, %s201
    %p210 = scmp.eq.s32.totalorder %s22, 0
    %p211 = por %p209, %p210
    %p212 = scmp.ne.s32.totalorder %s200, %s201
    %p213 = scmp.eq.s32.totalorder %s23, 1
    %p214 = por %p212, %p213
    %p216 = scmp.ne.s32.totalorder %s201, %s215
    %p217 = scmp.eq.s32.totalorder %s23, 0
    %p218 = por %p216, %p217
    %s220 = sadd.s32 %s219, 1
    %p223 = scmp.eq.s32.totalorder %s17, 1
    %p224 = scmp.ne.s32.totalorder %s219, %s221
    %p225 = scmp.eq.s32.totalorder %s17, 0
    %p226 = por %p224, %p225
    %p227 = scmp.ne.s32.totalorder %s219, %s221
    %p228 = scmp.eq.s32.totalorder %s22, 1
    %p229 = por %p227, %p228
    %p230 = scmp.ne.s32.totalorder %s221, %s222
    %p231 = scmp.eq.s32.totalorder %s22, 0
    %p232 = por %p230, %p231
    %p233 = scmp.ne.s32.totalorder %s221, %s222
    %p234 = scmp.eq.s32.totalorder %s23, 1
    %p235 = por %p233, %p234
    %p237 = scmp.ne.s32.totalorder %s222, %s236
    %p238 = scmp.eq.s32.totalorder %s23, 0
    %p239 = por %p237, %p238
    %s241 = sadd.s32 %s240, 1
    %p244 = scmp.eq.s32.totalorder %s17, 1
    %p245 = scmp.ne.s32.totalorder %s240, %s242
    %p246 = scmp.eq.s32.totalorder %s17, 0
    %p247 = por %p245, %p246
    %p248 = scmp.ne.s32.totalorder %s240, %s242
    %p249 = scmp.eq.s32.totalorder %s22, 1
    %p250 = por %p248, %p249
    %p251 = scmp.ne.s32.totalorder %s242, %s243
    %p252 = scmp.eq.s32.totalorder %s22, 0
    %p253 = por %p251, %p252
    %p254 = scmp.ne.s32.totalorder %s242, %s243
    %p255 = scmp.eq.s32.totalorder %s23, 1
    %p256 = por %p254, %p255
    %p258 = scmp.ne.s32.totalorder %s243, %s257
    %p259 = scmp.eq.s32.totalorder %s23, 0
    %p260 = por %p258, %p259
    %s261 = ssub.s32 %s17, %s24
    %p262 = scmp.eq.s32.totalorder %s261, 0
    %s264 = sadd.s32 %s263, 1
    %s265 = scalar_select %p262, %s263, %s264
    %p268 = pneg %p262
    %p269 = scmp.eq.s32.totalorder %s17, 1
    %p270 = por %p268, %p269
    %p271 = scmp.ne.s32.totalorder %s263, %s266
    %p272 = scmp.eq.s32.totalorder %s17, 0
    %p273 = por %p271, %p272
    %p274 = scmp.ne.s32.totalorder %s263, %s266
    %p275 = scmp.eq.s32.totalorder %s22, 1
    %p276 = por %p274, %p275
    %p277 = scmp.ne.s32.totalorder %s266, %s267
    %p278 = scmp.eq.s32.totalorder %s22, 0
    %p279 = por %p277, %p278
    %p280 = scmp.ne.s32.totalorder %s266, %s267
    %p281 = scmp.eq.s32.totalorder %s23, 1
    %p282 = por %p280, %p281
    %p284 = scmp.ne.s32.totalorder %s267, %s283
    %p285 = scmp.eq.s32.totalorder %s23, 0
    %p286 = por %p284, %p285
    %p287 = scmp.le.s32.totalorder 1, %s17
    %p288 = scmp.lt.s32.totalorder %s17, 3
    %p289 = pnand %p287, %p288
    %p290 = pneg %p289
    // Predicated region
    $region9: #{tpu_custom_call.1} parent=5 // pred_check
      _
    $region10: #{tpu_custom_call.1} parent=5 // pred_check_branch
      %292 = sbr.rel (%p289) target = $region12
    $region11: #{tpu_custom_call.1} parent=5 // pred_region
      %s293 = ssub.s32 %s17, 1
      // Predicated region
      $region13: #{tpu_custom_call.1} parent=11 // pred_check
        %p294 = pneg %p64
      $region14: #{tpu_custom_call.1} parent=11 // pred_check_branch
        %296 = sbr.rel (%p294) target = $region16
      $region15: #{tpu_custom_call.1} parent=11 // pred_region
        _
      $region16: #{tpu_custom_call.1} parent=11 // pred_fallthru
        _
      // Predicated region
      $region17: #{tpu_custom_call.1} parent=11 // pred_check
        %p297 = pneg %p85
      $region18: #{tpu_custom_call.1} parent=11 // pred_check_branch
        %299 = sbr.rel (%p297) target = $region20
      $region19: #{tpu_custom_call.1} parent=11 // pred_region
        _
      $region20: #{tpu_custom_call.1} parent=11 // pred_fallthru
        _
      // Predicated region
      $region21: #{tpu_custom_call.1} parent=11 // pred_check
        %p300 = pneg %p106
      $region22: #{tpu_custom_call.1} parent=11 // pred_check_branch
        %302 = sbr.rel (%p300) target = $region24
      $region23: #{tpu_custom_call.1} parent=11 // pred_region
        _
      $region24: #{tpu_custom_call.1} parent=11 // pred_fallthru
        _
      // Predicated region
      $region25: #{tpu_custom_call.1} parent=11 // pred_check
        %p303 = pneg %p127
      $region26: #{tpu_custom_call.1} parent=11 // pred_check_branch
        %305 = sbr.rel (%p303) target = $region28
      $region27: #{tpu_custom_call.1} parent=11 // pred_region
        _
      $region28: #{tpu_custom_call.1} parent=11 // pred_fallthru
        _
      // Predicated region
      $region29: #{tpu_custom_call.1} parent=11 // pred_check
        %p306 = pneg %p148
      $region30: #{tpu_custom_call.1} parent=11 // pred_check_branch
        %308 = sbr.rel (%p306) target = $region32
      $region31: #{tpu_custom_call.1} parent=11 // pred_region
        _
      $region32: #{tpu_custom_call.1} parent=11 // pred_fallthru
        _
      // Predicated region
      $region33: #{tpu_custom_call.1} parent=11 // pred_check
        %p309 = pneg %p169
      $region34: #{tpu_custom_call.1} parent=11 // pred_check_branch
        %311 = sbr.rel (%p309) target = $region36
      $region35: #{tpu_custom_call.1} parent=11 // pred_region
        _
      $region36: #{tpu_custom_call.1} parent=11 // pred_fallthru
        _
      // Predicated region
      $region37: #{tpu_custom_call.1} parent=11 // pred_check
        %p312 = pneg %p190
      $region38: #{tpu_custom_call.1} parent=11 // pred_check_branch
        %314 = sbr.rel (%p312) target = $region40
      $region39: #{tpu_custom_call.1} parent=11 // pred_region
        _
      $region40: #{tpu_custom_call.1} parent=11 // pred_fallthru
        _
      // Predicated region
      $region41: #{tpu_custom_call.1} parent=11 // pred_check
        %p315 = pneg %p211
      $region42: #{tpu_custom_call.1} parent=11 // pred_check_branch
        %317 = sbr.rel (%p315) target = $region44
      $region43: #{tpu_custom_call.1} parent=11 // pred_region
        _
      $region44: #{tpu_custom_call.1} parent=11 // pred_fallthru
        _
      // Predicated region
      $region45: #{tpu_custom_call.1} parent=11 // pred_check
        %p318 = pneg %p232
      $region46: #{tpu_custom_call.1} parent=11 // pred_check_branch
        %320 = sbr.rel (%p318) target = $region48
      $region47: #{tpu_custom_call.1} parent=11 // pred_region
        _
      $region48: #{tpu_custom_call.1} parent=11 // pred_fallthru
        _
      // Predicated region
      $region49: #{tpu_custom_call.1} parent=11 // pred_check
        %p321 = pneg %p253
      $region50: #{tpu_custom_call.1} parent=11 // pred_check_branch
        %323 = sbr.rel (%p321) target = $region52
      $region51: #{tpu_custom_call.1} parent=11 // pred_region
        _
      $region52: #{tpu_custom_call.1} parent=11 // pred_fallthru
        _
    $region12: #{tpu_custom_call.1} parent=5 // pred_fallthru
      _
    %p324 = scmp.lt.s32.totalorder %s17, 2
    // Predicated region
    $region53: #{tpu_custom_call.1} parent=5 // pred_check
      %p325 = pneg %p324
    $region54: #{tpu_custom_call.1} parent=5 // pred_check_branch
      %327 = sbr.rel (%p325) target = $region56
    $region55: #{tpu_custom_call.1} parent=5 // pred_region
      // Predicated region
      $region57: #{tpu_custom_call.1} parent=55 // pred_check
        %p328 = pneg %p37
      $region58: #{tpu_custom_call.1} parent=55 // pred_check_branch
        %330 = sbr.rel (%p328) target = $region60
      $region59: #{tpu_custom_call.1} parent=55 // pred_region
        %p331 = scmp.lt.s32.totalorder %s17, 1
        %s332 = scalar_select %p331, %s17, 1
        %s333 = smul.addr %s332, 32
        %s334 = smul.addr %s333, 8
        %s335 = scalar_lea.vmem %s0, %s334
      $region60: #{tpu_custom_call.1} parent=55 // pred_fallthru
        _
    $region56: #{tpu_custom_call.1} parent=5 // pred_fallthru
      _
    %p336 = scmp.le.s32.totalorder 1, %s17
    %p337 = scmp.lt.s32.totalorder %s17, 3
    %p338 = pnand %p336, %p337
    %p339 = pneg %p338
    // Predicated region
    $region61: #{tpu_custom_call.1} parent=5 // pred_check
      _
    $region62: #{tpu_custom_call.1} parent=5 // pred_check_branch
      %341 = sbr.rel (%p338) target = $region64
    $region63: #{tpu_custom_call.1} parent=5 // pred_region
      %s342 = ssub.s32 %s17, 1
      %p343 = scmp.lt.s32.totalorder %s22, 1
      %s344 = scalar_select %p343, %s22, 1
      %s345 = smul.addr %s344, 32
      %s346 = smul.addr %s345, 8
      %s347 = scalar_lea.vmem %s0, %s346
      %p348 = pneg %p43
      %p349 = pneg %p40
      %p350 = pneg %p64
      %p351 = pneg %p61
      %p352 = pneg %p85
      %p353 = pneg %p82
      %p354 = pneg %p106
      %p355 = pneg %p103
      %p356 = pneg %p127
      %p357 = pneg %p124
      %p358 = pneg %p148
      %p359 = pneg %p145
      %p360 = pneg %p169
      %p361 = pneg %p166
      %p362 = pneg %p190
      %p363 = pneg %p187
      %p364 = pneg %p211
      %p365 = pneg %p208
      %p366 = pneg %p232
      %p367 = pneg %p229
      %p368 = pneg %p253
      %p369 = pneg %p250
      %p370 = pneg %p279
      %p371 = pneg %p276
      %p372 = scmp.lt.s32.totalorder %s22, 1
      %s373 = scalar_select %p372, %s22, 1
      %s374 = smul.addr %s373, 4
      %s375 = smul.addr %s374, 8
      %s376 = scalar_lea.vmem %s11, %s375
      %p377 = scmp.lt.s32.totalorder %s22, 1
      %s378 = scalar_select %p377, %s22, 1
      %s379 = smul.addr %s378, 32
      %s380 = smul.addr %s379, 8
      %s381 = scalar_lea.vmem %s0, %s380
      %p382 = scmp.lt.s32.totalorder %s22, 1
      %s383 = scalar_select %p382, %s22, 1
      %s384 = smul.addr %s383, 4
      %s385 = smul.addr %s384, 8
      %s386 = scalar_lea.vmem %s11, %s385
      %v388 = vld [vmem:[%s381] sm:$0xff]
      %v389 = vld [vmem:[%s381 + $0x8] sm:$0xff]
      %v390 = vld [vmem:[%s381 + $0x10] sm:$0xff]
      %v391 = vld [vmem:[%s381 + $0x18] sm:$0xff]
      %v392 = vld [vmem:[%s381 + $0x20] sm:$0xff]
      %v393 = vld [vmem:[%s381 + $0x28] sm:$0xff]
      %v394 = vld [vmem:[%s381 + $0x30] sm:$0xff]
      %v395 = vld [vmem:[%s381 + $0x38] sm:$0xff]
      %v396 = vld [vmem:[%s381 + $0x40] sm:$0xff]
      %v397 = vld [vmem:[%s381 + $0x48] sm:$0xff]
      %v398 = vld [vmem:[%s381 + $0x50] sm:$0xff]
      %v399 = vld [vmem:[%s381 + $0x58] sm:$0xff]
      %v400 = vld [vmem:[%s381 + $0x60] sm:$0xff]
      %v401 = vld [vmem:[%s381 + $0x68] sm:$0xff]
      %v402 = vld [vmem:[%s381 + $0x70] sm:$0xff]
      %v403 = vld [vmem:[%s381 + $0x78] sm:$0xff]
      %v404 = vld [vmem:[%s381 + $0x80] sm:$0xff]
      %v405 = vld [vmem:[%s381 + $0x88] sm:$0xff]
      %v406 = vld [vmem:[%s381 + $0x90] sm:$0xff]
      %v407 = vld [vmem:[%s381 + $0x98] sm:$0xff]
      %v408 = vld [vmem:[%s381 + $0xa0] sm:$0xff]
      %v409 = vld [vmem:[%s381 + $0xa8] sm:$0xff]
      %v410 = vld [vmem:[%s381 + $0xb0] sm:$0xff]
      %v411 = vld [vmem:[%s381 + $0xb8] sm:$0xff]
      %v412 = vld [vmem:[%s381 + $0xc0] sm:$0xff]
      %v413 = vld [vmem:[%s381 + $0xc8] sm:$0xff]
      %v414 = vld [vmem:[%s381 + $0xd0] sm:$0xff]
      %v415 = vld [vmem:[%s381 + $0xd8] sm:$0xff]
      %v416 = vld [vmem:[%s381 + $0xe0] sm:$0xff]
      %v417 = vld [vmem:[%s381 + $0xe8] sm:$0xff]
      %v418 = vld [vmem:[%s381 + $0xf0] sm:$0xff]
      %v419 = vld [vmem:[%s381 + $0xf8] sm:$0xff]
      %v420 = vpack.c.bf16 %v396, %v388
      %v421 = vpack.c.bf16 %v397, %v389
      %v422 = vpack.c.bf16 %v398, %v390
      %v423 = vpack.c.bf16 %v399, %v391
      %v424 = vpack.c.bf16 %v400, %v392
      %v425 = vpack.c.bf16 %v401, %v393
      %v426 = vpack.c.bf16 %v402, %v394
      %v427 = vpack.c.bf16 %v403, %v395
      %v428 = vpack.c.bf16 %v412, %v404
      %v429 = vpack.c.bf16 %v413, %v405
      %v430 = vpack.c.bf16 %v414, %v406
      %v431 = vpack.c.bf16 %v415, %v407
      %v432 = vpack.c.bf16 %v416, %v408
      %v433 = vpack.c.bf16 %v417, %v409
      %v434 = vpack.c.bf16 %v418, %v410
      %v435 = vpack.c.bf16 %v419, %v411
      %v436 = vld [vmem:[%s2] sm:$0xf]
      %v437 = vld [vmem:[%s3] sm:$0xff]
      %439 = vset.pattern.permute.xlu0 0
      %440 = vperm.xlu0 %439, %v437
      %v441 = vpop.permute.xlu0 %440
      %vm443 = vcmask 261120
      %v445 = vsel %vm443, %v436, 0
      %447 = vmatpush.bf16.msra.mxu0 0
      %448 = vmatpush.bf16.msra.mxu0 0
      %449 = vmatpush.bf16.msra.mxu0 0
      %450 = vmatpush.bf16.msra.mxu0 0
      %451 = vmatpush.bf16.msra.mxu0 0
      %452 = vmatpush.bf16.msra.mxu0 0
      %453 = vmatpush.bf16.msra.mxu0 %v428
      %454 = vmatpush.bf16.msra.mxu0 %v420
      %455 = vmatmul.bf16.gmra.mxu0 %v445
      %v456 = vpop.f32.mrf.mxu0
      %v457 = vadd.f32 %v441, %v456
      %v458 = vpop.f32.mrf.mxu0
      %459 = vdwg.mxu0
      %460 = vmatpush.bf16.msra.mxu0 0
      %461 = vmatpush.bf16.msra.mxu0 0
      %462 = vmatpush.bf16.msra.mxu0 0
      %463 = vmatpush.bf16.msra.mxu0 0
      %464 = vmatpush.bf16.msra.mxu0 0
      %465 = vmatpush.bf16.msra.mxu0 0
      %466 = vmatpush.bf16.msra.mxu0 %v429
      %467 = vmatpush.bf16.msra.mxu0 %v421
      %468 = vmatmul.bf16.gmra.mxu0 %v445
      %v469 = vpop.f32.mrf.mxu0
      %v470 = vadd.f32 %v441, %v469
      %v471 = vpop.f32.mrf.mxu0
      %472 = vdwg.mxu0
      %473 = vmatpush.bf16.msra.mxu0 0
      %474 = vmatpush.bf16.msra.mxu0 0
      %475 = vmatpush.bf16.msra.mxu0 0
      %476 = vmatpush.bf16.msra.mxu0 0
      %477 = vmatpush.bf16.msra.mxu0 0
      %478 = vmatpush.bf16.msra.mxu0 0
      %479 = vmatpush.bf16.msra.mxu0 %v430
      %480 = vmatpush.bf16.msra.mxu0 %v422
      %481 = vmatmul.bf16.gmra.mxu0 %v445
      %v482 = vpop.f32.mrf.mxu0
      %v483 = vadd.f32 %v441, %v482
      %v484 = vpop.f32.mrf.mxu0
      %485 = vdwg.mxu0
      %486 = vmatpush.bf16.msra.mxu0 0
      %487 = vmatpush.bf16.msra.mxu0 0
      %488 = vmatpush.bf16.msra.mxu0 0
      %489 = vmatpush.bf16.msra.mxu0 0
      %490 = vmatpush.bf16.msra.mxu0 0
      %491 = vmatpush.bf16.msra.mxu0 0
      %492 = vmatpush.bf16.msra.mxu0 %v431
      %493 = vmatpush.bf16.msra.mxu0 %v423
      %494 = vmatmul.bf16.gmra.mxu0 %v445
      %v495 = vpop.f32.mrf.mxu0
      %v496 = vadd.f32 %v441, %v495
      %v497 = vpop.f32.mrf.mxu0
      %498 = vdwg.mxu0
      %499 = vmatpush.bf16.msra.mxu0 0
      %500 = vmatpush.bf16.msra.mxu0 0
      %501 = vmatpush.bf16.msra.mxu0 0
      %502 = vmatpush.bf16.msra.mxu0 0
      %503 = vmatpush.bf16.msra.mxu0 0
      %504 = vmatpush.bf16.msra.mxu0 0
      %505 = vmatpush.bf16.msra.mxu0 %v432
      %506 = vmatpush.bf16.msra.mxu0 %v424
      %507 = vmatmul.bf16.gmra.mxu0 %v445
      %v508 = vpop.f32.mrf.mxu0
      %v509 = vadd.f32 %v441, %v508
      %v510 = vpop.f32.mrf.mxu0
      %511 = vdwg.mxu0
      %512 = vmatpush.bf16.msra.mxu0 0
      %513 = vmatpush.bf16.msra.mxu0 0
      %514 = vmatpush.bf16.msra.mxu0 0
      %515 = vmatpush.bf16.msra.mxu0 0
      %516 = vmatpush.bf16.msra.mxu0 0
      %517 = vmatpush.bf16.msra.mxu0 0
      %518 = vmatpush.bf16.msra.mxu0 %v433
      %519 = vmatpush.bf16.msra.mxu0 %v425
      %520 = vmatmul.bf16.gmra.mxu0 %v445
      %v521 = vpop.f32.mrf.mxu0
      %v522 = vadd.f32 %v441, %v521
      %v523 = vpop.f32.mrf.mxu0
      %524 = vdwg.mxu0
      %525 = vmatpush.bf16.msra.mxu0 0
      %526 = vmatpush.bf16.msra.mxu0 0
      %527 = vmatpush.bf16.msra.mxu0 0
      %528 = vmatpush.bf16.msra.mxu0 0
      %529 = vmatpush.bf16.msra.mxu0 0
      %530 = vmatpush.bf16.msra.mxu0 0
      %531 = vmatpush.bf16.msra.mxu0 %v434
      %532 = vmatpush.bf16.msra.mxu0 %v426
      %533 = vmatmul.bf16.gmra.mxu0 %v445
      %v534 = vpop.f32.mrf.mxu0
      %v535 = vadd.f32 %v441, %v534
      %v536 = vpop.f32.mrf.mxu0
      %537 = vdwg.mxu0
      %538 = vmatpush.bf16.msra.mxu0 0
      %539 = vmatpush.bf16.msra.mxu0 0
      %540 = vmatpush.bf16.msra.mxu0 0
      %541 = vmatpush.bf16.msra.mxu0 0
      %542 = vmatpush.bf16.msra.mxu0 0
      %543 = vmatpush.bf16.msra.mxu0 0
      %544 = vmatpush.bf16.msra.mxu0 %v435
      %545 = vmatpush.bf16.msra.mxu0 %v427
      %546 = vmatmul.bf16.gmra.mxu0 %v445
      %v547 = vpop.f32.mrf.mxu0
      %v548 = vadd.f32 %v441, %v547
      %v549 = vpop.f32.mrf.mxu0
      %550 = vdwg.mxu0
      %v551 = vmax.f32 %v457, 0.0
      %v552 = vmax.f32 %v470, 0.0
      %v553 = vmax.f32 %v483, 0.0
      %v554 = vmax.f32 %v496, 0.0
      %v555 = vmax.f32 %v509, 0.0
      %v556 = vmax.f32 %v522, 0.0
      %v557 = vmax.f32 %v535, 0.0
      %v558 = vmax.f32 %v548, 0.0
      %v559 = vmin.f32 %v551, 6.0
      %v560 = vmin.f32 %v552, 6.0
      %v561 = vmin.f32 %v553, 6.0
      %v562 = vmin.f32 %v554, 6.0
      %v563 = vmin.f32 %v555, 6.0
      %v564 = vmin.f32 %v556, 6.0
      %v565 = vmin.f32 %v557, 6.0
      %v566 = vmin.f32 %v558, 6.0
      %v567 = vld [vmem:[%s1] sm:$0xff]
      %v569 = vperm.slane %v567, 0
      %v570 = vperm.slane %v567, 1
      %v571 = vperm.slane %v567, 2
      %v572 = vperm.slane %v567, 3
      %v573 = vperm.slane %v567, 4
      %v574 = vperm.slane %v567, 5
      %v575 = vperm.slane %v567, 6
      %v576 = vperm.slane %v567, 7
      %v585 = vmul.f32 %v559, %v569
      %v586 = vmul.f32 %v560, %v570
      %v587 = vmul.f32 %v561, %v571
      %v588 = vmul.f32 %v562, %v572
      %v589 = vmul.f32 %v563, %v573
      %v590 = vmul.f32 %v564, %v574
      %v591 = vmul.f32 %v565, %v575
      %v592 = vmul.f32 %v566, %v576
      %593 = vst [vmem:[#allocation2] sm:$0xff] 0.0
      %594 = vst [vmem:[#allocation2 + $0x8] sm:$0xff] 0.0
      %595 = vst [vmem:[#allocation2 + $0x50] sm:$0xff] 0.0
      %596 = vst [vmem:[#allocation2 + $0x58] sm:$0xff] 0.0
      %597 = vst [vmem:[#allocation2 + $0x10] sm:$0xff] %v585
      %598 = vst [vmem:[#allocation2 + $0x18] sm:$0xff] %v586
      %599 = vst [vmem:[#allocation2 + $0x20] sm:$0xff] %v587
      %600 = vst [vmem:[#allocation2 + $0x28] sm:$0xff] %v588
      %601 = vst [vmem:[#allocation2 + $0x30] sm:$0xff] %v589
      %602 = vst [vmem:[#allocation2 + $0x38] sm:$0xff] %v590
      %603 = vst [vmem:[#allocation2 + $0x40] sm:$0xff] %v591
      %604 = vst [vmem:[#allocation2 + $0x48] sm:$0xff] %v592
      %v605 = vld [vmem:[%s4] sm:$0xff]
      %v606 = vld [vmem:[%s5] sm:$0xff]
      %v607 = vld [vmem:[#allocation2 + $0x8] sm:$0xff]
      %v608 = vld [vmem:[#allocation2 + $0x10] sm:$0xff]
      %v609 = vld [vmem:[#allocation2 + $0x18] sm:$0xff]
      %v610 = vld [vmem:[#allocation2 + $0x20] sm:$0xff]
      %v611 = vld [vmem:[#allocation2 + $0x28] sm:$0xff]
      %v612 = vld [vmem:[#allocation2 + $0x30] sm:$0xff]
      %v613 = vld [vmem:[#allocation2 + $0x38] sm:$0xff]
      %v614 = vld [vmem:[#allocation2 + $0x40] sm:$0xff]
      %v615 = vld [vmem:[#allocation2 + $0x48] sm:$0xff]
      %617 = vset.pattern.permute.xlu0 0
      %618 = vperm.xlu0 %617, %v605
      %v619 = vpop.permute.xlu0 %618
      %v621 = vmul.f32 %v607, %v619
      %v622 = vmul.f32 %v608, %v619
      %v623 = vmul.f32 %v609, %v619
      %v624 = vmul.f32 %v610, %v619
      %v625 = vmul.f32 %v611, %v619
      %v626 = vmul.f32 %v612, %v619
      %v627 = vmul.f32 %v613, %v619
      %v628 = vmul.f32 %v614, %v619
      %v629 = vmul.f32 %v615, %v619
      %v630 = vadd.f32 %v621, 0.0
      %v631 = vadd.f32 %v622, 0.0
      %v632 = vadd.f32 %v623, 0.0
      %v633 = vadd.f32 %v624, 0.0
      %v634 = vadd.f32 %v625, 0.0
      %v635 = vadd.f32 %v626, 0.0
      %v636 = vadd.f32 %v627, 0.0
      %v637 = vadd.f32 %v628, 0.0
      %v638 = vadd.f32 %v629, 0.0
      %639 = vset.pattern.permute.xlu0 1
      %640 = vperm.xlu0 %639, %v605
      %v641 = vpop.permute.xlu0 %640
      %v643 = vmul.f32 %v607, %v641
      %v644 = vmul.f32 %v608, %v641
      %v645 = vmul.f32 %v609, %v641
      %v646 = vmul.f32 %v610, %v641
      %v647 = vmul.f32 %v611, %v641
      %v648 = vmul.f32 %v612, %v641
      %v649 = vmul.f32 %v613, %v641
      %v650 = vmul.f32 %v614, %v641
      %v651 = vmul.f32 %v615, %v641
      %661 = vrot.lane.b32.xlu0 %v643, 125
      %v662 = vpop.permute.xlu0 %661
      %663 = vrot.lane.b32.xlu0 %v644, 125
      %v664 = vpop.permute.xlu0 %663
      %665 = vrot.lane.b32.xlu0 %v645, 125
      %v666 = vpop.permute.xlu0 %665
      %667 = vrot.lane.b32.xlu0 %v646, 125
      %v668 = vpop.permute.xlu0 %667
      %669 = vrot.lane.b32.xlu0 %v647, 125
      %v670 = vpop.permute.xlu0 %669
      %671 = vrot.lane.b32.xlu0 %v648, 125
      %v672 = vpop.permute.xlu0 %671
      %673 = vrot.lane.b32.xlu0 %v649, 125
      %v674 = vpop.permute.xlu0 %673
      %675 = vrot.lane.b32.xlu0 %v650, 125
      %v676 = vpop.permute.xlu0 %675
      %677 = vrot.lane.b32.xlu0 %v651, 125
      %v678 = vpop.permute.xlu0 %677
      %vm679 = vcmask 1022976
      %v680 = vsel %vm679, %v662, %v664
      %v681 = vsel %vm679, %v664, %v666
      %v682 = vsel %vm679, %v666, %v668
      %v683 = vsel %vm679, %v668, %v670
      %v684 = vsel %vm679, %v670, %v672
      %v685 = vsel %vm679, %v672, %v674
      %v686 = vsel %vm679, %v674, %v676
      %v687 = vsel %vm679, %v676, %v678
      %v697 = vadd.f32 %v630, %v680
      %v698 = vadd.f32 %v631, %v681
      %v699 = vadd.f32 %v632, %v682
      %v700 = vadd.f32 %v633, %v683
      %v701 = vadd.f32 %v634, %v684
      %v702 = vadd.f32 %v635, %v685
      %v703 = vadd.f32 %v636, %v686
      %v704 = vadd.f32 %v637, %v687
      %v705 = vadd.f32 %v638, %v678
      %706 = vset.pattern.permute.xlu0 2
      %707 = vperm.xlu0 %706, %v605
      %v708 = vpop.permute.xlu0 %707
      %v710 = vmul.f32 %v607, %v708
      %v711 = vmul.f32 %v608, %v708
      %v712 = vmul.f32 %v609, %v708
      %v713 = vmul.f32 %v610, %v708
      %v714 = vmul.f32 %v611, %v708
      %v715 = vmul.f32 %v612, %v708
      %v716 = vmul.f32 %v613, %v708
      %v717 = vmul.f32 %v614, %v708
      %v718 = vmul.f32 %v615, %v708
      %728 = vrot.lane.b32.xlu0 %v710, 122
      %v729 = vpop.permute.xlu0 %728
      %730 = vrot.lane.b32.xlu0 %v711, 122
      %v731 = vpop.permute.xlu0 %730
      %732 = vrot.lane.b32.xlu0 %v712, 122
      %v733 = vpop.permute.xlu0 %732
      %734 = vrot.lane.b32.xlu0 %v713, 122
      %v735 = vpop.permute.xlu0 %734
      %736 = vrot.lane.b32.xlu0 %v714, 122
      %v737 = vpop.permute.xlu0 %736
      %738 = vrot.lane.b32.xlu0 %v715, 122
      %v739 = vpop.permute.xlu0 %738
      %740 = vrot.lane.b32.xlu0 %v716, 122
      %v741 = vpop.permute.xlu0 %740
      %742 = vrot.lane.b32.xlu0 %v717, 122
      %v743 = vpop.permute.xlu0 %742
      %744 = vrot.lane.b32.xlu0 %v718, 122
      %v745 = vpop.permute.xlu0 %744
      %vm746 = vcmask 998400
      %v747 = vsel %vm746, %v729, %v731
      %v748 = vsel %vm746, %v731, %v733
      %v749 = vsel %vm746, %v733, %v735
      %v750 = vsel %vm746, %v735, %v737
      %v751 = vsel %vm746, %v737, %v739
      %v752 = vsel %vm746, %v739, %v741
      %v753 = vsel %vm746, %v741, %v743
      %v754 = vsel %vm746, %v743, %v745
      %v764 = vadd.f32 %v697, %v747
      %v765 = vadd.f32 %v698, %v748
      %v766 = vadd.f32 %v699, %v749
      %v767 = vadd.f32 %v700, %v750
      %v768 = vadd.f32 %v701, %v751
      %v769 = vadd.f32 %v702, %v752
      %v770 = vadd.f32 %v703, %v753
      %v771 = vadd.f32 %v704, %v754
      %v772 = vadd.f32 %v705, %v745
      %773 = vset.pattern.permute.xlu0 3
      %774 = vperm.xlu0 %773, %v605
      %v775 = vpop.permute.xlu0 %774
      %v777 = vmul.f32 %v607, %v775
      %v778 = vmul.f32 %v608, %v775
      %v779 = vmul.f32 %v609, %v775
      %v780 = vmul.f32 %v610, %v775
      %v781 = vmul.f32 %v611, %v775
      %v782 = vmul.f32 %v612, %v775
      %v783 = vmul.f32 %v613, %v775
      %v784 = vmul.f32 %v614, %v775
      %v785 = vmul.f32 %v615, %v775
      %795 = vrot.lane.b32.xlu0 %v777, 32
      %v796 = vpop.permute.xlu0 %795
      %797 = vrot.lane.b32.xlu0 %v778, 32
      %v798 = vpop.permute.xlu0 %797
      %799 = vrot.lane.b32.xlu0 %v779, 32
      %v800 = vpop.permute.xlu0 %799
      %801 = vrot.lane.b32.xlu0 %v780, 32
      %v802 = vpop.permute.xlu0 %801
      %803 = vrot.lane.b32.xlu0 %v781, 32
      %v804 = vpop.permute.xlu0 %803
      %805 = vrot.lane.b32.xlu0 %v782, 32
      %v806 = vpop.permute.xlu0 %805
      %807 = vrot.lane.b32.xlu0 %v783, 32
      %v808 = vpop.permute.xlu0 %807
      %809 = vrot.lane.b32.xlu0 %v784, 32
      %v810 = vpop.permute.xlu0 %809
      %811 = vrot.lane.b32.xlu0 %v785, 32
      %v812 = vpop.permute.xlu0 %811
      %v813 = vsel %vm443, %v796, %v798
      %v814 = vsel %vm443, %v798, %v800
      %v815 = vsel %vm443, %v800, %v802
      %v816 = vsel %vm443, %v802, %v804
      %v817 = vsel %vm443, %v804, %v806
      %v818 = vsel %vm443, %v806, %v808
      %v819 = vsel %vm443, %v808, %v810
      %v820 = vsel %vm443, %v810, %v812
      %v830 = vadd.f32 %v764, %v813
      %v831 = vadd.f32 %v765, %v814
      %v832 = vadd.f32 %v766, %v815
      %v833 = vadd.f32 %v767, %v816
      %v834 = vadd.f32 %v768, %v817
      %v835 = vadd.f32 %v769, %v818
      %v836 = vadd.f32 %v770, %v819
      %v837 = vadd.f32 %v771, %v820
      %v838 = vadd.f32 %v772, %v812
      %839 = vset.pattern.permute.xlu0 4
      %840 = vperm.xlu0 %839, %v605
      %v841 = vpop.permute.xlu0 %840
      %v843 = vmul.f32 %v608, %v841
      %v844 = vmul.f32 %v609, %v841
      %v845 = vmul.f32 %v610, %v841
      %v846 = vmul.f32 %v611, %v841
      %v847 = vmul.f32 %v612, %v841
      %v848 = vmul.f32 %v613, %v841
      %v849 = vmul.f32 %v614, %v841
      %v850 = vmul.f32 %v615, %v841
      %859 = vrot.lane.b32.xlu0 %v843, 29
      %v860 = vpop.permute.xlu0 %859
      %861 = vrot.lane.b32.xlu0 %v844, 29
      %v862 = vpop.permute.xlu0 %861
      %863 = vrot.lane.b32.xlu0 %v845, 29
      %v864 = vpop.permute.xlu0 %863
      %865 = vrot.lane.b32.xlu0 %v846, 29
      %v866 = vpop.permute.xlu0 %865
      %867 = vrot.lane.b32.xlu0 %v847, 29
      %v868 = vpop.permute.xlu0 %867
      %869 = vrot.lane.b32.xlu0 %v848, 29
      %v870 = vpop.permute.xlu0 %869
      %871 = vrot.lane.b32.xlu0 %v849, 29
      %v872 = vpop.permute.xlu0 %871
      %873 = vrot.lane.b32.xlu0 %v850, 29
      %v874 = vpop.permute.xlu0 %873
      %vm875 = vcmask 236544
      %v876 = vsel %vm875, %v860, %v862
      %v877 = vsel %vm875, %v862, %v864
      %v878 = vsel %vm875, %v864, %v866
      %v879 = vsel %vm875, %v866, %v868
      %v880 = vsel %vm875, %v868, %v870
      %v881 = vsel %vm875, %v870, %v872
      %v882 = vsel %vm875, %v872, %v874
      %v892 = vadd.f32 %v830, %v860
      %v893 = vadd.f32 %v831, %v876
      %v894 = vadd.f32 %v832, %v877
      %v895 = vadd.f32 %v833, %v878
      %v896 = vadd.f32 %v834, %v879
      %v897 = vadd.f32 %v835, %v880
      %v898 = vadd.f32 %v836, %v881
      %v899 = vadd.f32 %v837, %v882
      %v900 = vadd.f32 %v838, %v874
      %v901 = vld [vmem:[#allocation2 + $0x10] sm:$0xff]
      %v902 = vld [vmem:[#allocation2 + $0x18] sm:$0xff]
      %v903 = vld [vmem:[#allocation2 + $0x20] sm:$0xff]
      %v904 = vld [vmem:[#allocation2 + $0x28] sm:$0xff]
      %v905 = vld [vmem:[#allocation2 + $0x30] sm:$0xff]
      %v906 = vld [vmem:[#allocation2 + $0x38] sm:$0xff]
      %v907 = vld [vmem:[#allocation2 + $0x40] sm:$0xff]
      %v908 = vld [vmem:[#allocation2 + $0x48] sm:$0xff]
      %v909 = vld [vmem:[#allocation2 + $0x50] sm:$0xff]
      %910 = vset.pattern.permute.xlu0 5
      %911 = vperm.xlu0 %910, %v605
      %v912 = vpop.permute.xlu0 %911
      %v914 = vmul.f32 %v901, %v912
      %v915 = vmul.f32 %v902, %v912
      %v916 = vmul.f32 %v903, %v912
      %v917 = vmul.f32 %v904, %v912
      %v918 = vmul.f32 %v905, %v912
      %v919 = vmul.f32 %v906, %v912
      %v920 = vmul.f32 %v907, %v912
      %v921 = vmul.f32 %v908, %v912
      %v922 = vmul.f32 %v909, %v912
      %932 = vrot.lane.b32.xlu0 %v914, 26
      %v933 = vpop.permute.xlu0 %932
      %934 = vrot.lane.b32.xlu0 %v915, 26
      %v935 = vpop.permute.xlu0 %934
      %936 = vrot.lane.b32.xlu0 %v916, 26
      %v937 = vpop.permute.xlu0 %936
      %938 = vrot.lane.b32.xlu0 %v917, 26
      %v939 = vpop.permute.xlu0 %938
      %940 = vrot.lane.b32.xlu0 %v918, 26
      %v941 = vpop.permute.xlu0 %940
      %942 = vrot.lane.b32.xlu0 %v919, 26
      %v943 = vpop.permute.xlu0 %942
      %944 = vrot.lane.b32.xlu0 %v920, 26
      %v945 = vpop.permute.xlu0 %944
      %946 = vrot.lane.b32.xlu0 %v921, 26
      %v947 = vpop.permute.xlu0 %946
      %948 = vrot.lane.b32.xlu0 %v922, 26
      %v949 = vpop.permute.xlu0 %948
      %vm950 = vcmask 211968
      %v951 = vsel %vm950, %v933, %v935
      %v952 = vsel %vm950, %v935, %v937
      %v953 = vsel %vm950, %v937, %v939
      %v954 = vsel %vm950, %v939, %v941
      %v955 = vsel %vm950, %v941, %v943
      %v956 = vsel %vm950, %v943, %v945
      %v957 = vsel %vm950, %v945, %v947
      %v958 = vsel %vm950, %v947, %v949
      %v968 = vadd.f32 %v892, %v933
      %v969 = vadd.f32 %v893, %v951
      %v970 = vadd.f32 %v894, %v952
      %v971 = vadd.f32 %v895, %v953
      %v972 = vadd.f32 %v896, %v954
      %v973 = vadd.f32 %v897, %v955
      %v974 = vadd.f32 %v898, %v956
      %v975 = vadd.f32 %v899, %v957
      %v976 = vadd.f32 %v900, %v958
      %977 = vset.pattern.permute.xlu0 6
      %978 = vperm.xlu0 %977, %v605
      %v979 = vpop.permute.xlu0 %978
      %v981 = vmul.f32 %v901, %v979
      %v982 = vmul.f32 %v902, %v979
      %v983 = vmul.f32 %v903, %v979
      %v984 = vmul.f32 %v904, %v979
      %v985 = vmul.f32 %v905, %v979
      %v986 = vmul.f32 %v906, %v979
      %v987 = vmul.f32 %v907, %v979
      %v988 = vmul.f32 %v908, %v979
      %v989 = vmul.f32 %v909, %v979
      %999 = vrot.lane.b32.xlu0 %v981, 64
      %v1000 = vpop.permute.xlu0 %999
      %1001 = vrot.lane.b32.xlu0 %v982, 64
      %v1002 = vpop.permute.xlu0 %1001
      %1003 = vrot.lane.b32.xlu0 %v983, 64
      %v1004 = vpop.permute.xlu0 %1003
      %1005 = vrot.lane.b32.xlu0 %v984, 64
      %v1006 = vpop.permute.xlu0 %1005
      %1007 = vrot.lane.b32.xlu0 %v985, 64
      %v1008 = vpop.permute.xlu0 %1007
      %1009 = vrot.lane.b32.xlu0 %v986, 64
      %v1010 = vpop.permute.xlu0 %1009
      %1011 = vrot.lane.b32.xlu0 %v987, 64
      %v1012 = vpop.permute.xlu0 %1011
      %1013 = vrot.lane.b32.xlu0 %v988, 64
      %v1014 = vpop.permute.xlu0 %1013
      %1015 = vrot.lane.b32.xlu0 %v989, 64
      %v1016 = vpop.permute.xlu0 %1015
      %vm1017 = vcmask 523264
      %v1018 = vsel %vm1017, %v1000, %v1002
      %v1019 = vsel %vm1017, %v1002, %v1004
      %v1020 = vsel %vm1017, %v1004, %v1006
      %v1021 = vsel %vm1017, %v1006, %v1008
      %v1022 = vsel %vm1017, %v1008, %v1010
      %v1023 = vsel %vm1017, %v1010, %v1012
      %v1024 = vsel %vm1017, %v1012, %v1014
      %v1025 = vsel %vm1017, %v1014, %v1016
      %v1035 = vadd.f32 %v968, %v1018
      %v1036 = vadd.f32 %v969, %v1019
      %v1037 = vadd.f32 %v970, %v1020
      %v1038 = vadd.f32 %v971, %v1021
      %v1039 = vadd.f32 %v972, %v1022
      %v1040 = vadd.f32 %v973, %v1023
      %v1041 = vadd.f32 %v974, %v1024
      %v1042 = vadd.f32 %v975, %v1025
      %v1043 = vadd.f32 %v976, %v1016
      %1044 = vset.pattern.permute.xlu0 7
      %1045 = vperm.xlu0 %1044, %v605
      %v1046 = vpop.permute.xlu0 %1045
      %v1048 = vmul.f32 %v901, %v1046
      %v1049 = vmul.f32 %v902, %v1046
      %v1050 = vmul.f32 %v903, %v1046
      %v1051 = vmul.f32 %v904, %v1046
      %v1052 = vmul.f32 %v905, %v1046
      %v1053 = vmul.f32 %v906, %v1046
      %v1054 = vmul.f32 %v907, %v1046
      %v1055 = vmul.f32 %v908, %v1046
      %v1056 = vmul.f32 %v909, %v1046
      %1066 = vrot.lane.b32.xlu0 %v1048, 61
      %v1067 = vpop.permute.xlu0 %1066
      %1068 = vrot.lane.b32.xlu0 %v1049, 61
      %v1069 = vpop.permute.xlu0 %1068
      %1070 = vrot.lane.b32.xlu0 %v1050, 61
      %v1071 = vpop.permute.xlu0 %1070
      %1072 = vrot.lane.b32.xlu0 %v1051, 61
      %v1073 = vpop.permute.xlu0 %1072
      %1074 = vrot.lane.b32.xlu0 %v1052, 61
      %v1075 = vpop.permute.xlu0 %1074
      %1076 = vrot.lane.b32.xlu0 %v1053, 61
      %v1077 = vpop.permute.xlu0 %1076
      %1078 = vrot.lane.b32.xlu0 %v1054, 61
      %v1079 = vpop.permute.xlu0 %1078
      %1080 = vrot.lane.b32.xlu0 %v1055, 61
      %v1081 = vpop.permute.xlu0 %1080
      %1082 = vrot.lane.b32.xlu0 %v1056, 61
      %v1083 = vpop.permute.xlu0 %1082
      %vm1084 = vcmask 498688
      %v1085 = vsel %vm1084, %v1067, %v1069
      %v1086 = vsel %vm1084, %v1069, %v1071
      %v1087 = vsel %vm1084, %v1071, %v1073
      %v1088 = vsel %vm1084, %v1073, %v1075
      %v1089 = vsel %vm1084, %v1075, %v1077
      %v1090 = vsel %vm1084, %v1077, %v1079
      %v1091 = vsel %vm1084, %v1079, %v1081
      %v1092 = vsel %vm1084, %v1081, %v1083
      %v1102 = vadd.f32 %v1035, %v1085
      %v1103 = vadd.f32 %v1036, %v1086
      %v1104 = vadd.f32 %v1037, %v1087
      %v1105 = vadd.f32 %v1038, %v1088
      %v1106 = vadd.f32 %v1039, %v1089
      %v1107 = vadd.f32 %v1040, %v1090
      %v1108 = vadd.f32 %v1041, %v1091
      %v1109 = vadd.f32 %v1042, %v1092
      %v1110 = vadd.f32 %v1043, %v1083
      %1111 = vset.pattern.permute.xlu0 8
      %1112 = vperm.xlu0 %1111, %v605
      %v1113 = vpop.permute.xlu0 %1112
      %v1115 = vmul.f32 %v901, %v1113
      %v1116 = vmul.f32 %v902, %v1113
      %v1117 = vmul.f32 %v903, %v1113
      %v1118 = vmul.f32 %v904, %v1113
      %v1119 = vmul.f32 %v905, %v1113
      %v1120 = vmul.f32 %v906, %v1113
      %v1121 = vmul.f32 %v907, %v1113
      %v1122 = vmul.f32 %v908, %v1113
      %v1123 = vmul.f32 %v909, %v1113
      %1133 = vrot.lane.b32.xlu0 %v1115, 58
      %v1134 = vpop.permute.xlu0 %1133
      %1135 = vrot.lane.b32.xlu0 %v1116, 58
      %v1136 = vpop.permute.xlu0 %1135
      %1137 = vrot.lane.b32.xlu0 %v1117, 58
      %v1138 = vpop.permute.xlu0 %1137
      %1139 = vrot.lane.b32.xlu0 %v1118, 58
      %v1140 = vpop.permute.xlu0 %1139
      %1141 = vrot.lane.b32.xlu0 %v1119, 58
      %v1142 = vpop.permute.xlu0 %1141
      %1143 = vrot.lane.b32.xlu0 %v1120, 58
      %v1144 = vpop.permute.xlu0 %1143
      %1145 = vrot.lane.b32.xlu0 %v1121, 58
      %v1146 = vpop.permute.xlu0 %1145
      %1147 = vrot.lane.b32.xlu0 %v1122, 58
      %v1148 = vpop.permute.xlu0 %1147
      %1149 = vrot.lane.b32.xlu0 %v1123, 58
      %v1150 = vpop.permute.xlu0 %1149
      %vm1151 = vcmask 474112
      %v1152 = vsel %vm1151, %v1134, %v1136
      %v1153 = vsel %vm1151, %v1136, %v1138
      %v1154 = vsel %vm1151, %v1138, %v1140
      %v1155 = vsel %vm1151, %v1140, %v1142
      %v1156 = vsel %vm1151, %v1142, %v1144
      %v1157 = vsel %vm1151, %v1144, %v1146
      %v1158 = vsel %vm1151, %v1146, %v1148
      %v1159 = vsel %vm1151, %v1148, %v1150
      %v1169 = vadd.f32 %v1102, %v1152
      %v1170 = vadd.f32 %v1103, %v1153
      %v1171 = vadd.f32 %v1104, %v1154
      %v1172 = vadd.f32 %v1105, %v1155
      %v1173 = vadd.f32 %v1106, %v1156
      %v1174 = vadd.f32 %v1107, %v1157
      %v1175 = vadd.f32 %v1108, %v1158
      %v1176 = vadd.f32 %v1109, %v1159
      %v1177 = vadd.f32 %v1110, %v1150
      %1179 = vset.pattern.permute.xlu0 0
      %1180 = vperm.xlu0 %1179, %v606
      %v1181 = vpop.permute.xlu0 %1180
      %v1183 = vadd.f32 %v1169, %v1181
      %v1184 = vadd.f32 %v1170, %v1181
      %v1185 = vadd.f32 %v1171, %v1181
      %v1186 = vadd.f32 %v1172, %v1181
      %v1187 = vadd.f32 %v1173, %v1181
      %v1188 = vadd.f32 %v1174, %v1181
      %v1189 = vadd.f32 %v1175, %v1181
      %v1190 = vadd.f32 %v1176, %v1181
      %v1191 = vadd.f32 %v1177, %v1181
      %v1192 = vmax.f32 %v1183, 0.0
      %v1193 = vmax.f32 %v1184, 0.0
      %v1194 = vmax.f32 %v1185, 0.0
      %v1195 = vmax.f32 %v1186, 0.0
      %v1196 = vmax.f32 %v1187, 0.0
      %v1197 = vmax.f32 %v1188, 0.0
      %v1198 = vmax.f32 %v1189, 0.0
      %v1199 = vmax.f32 %v1190, 0.0
      %v1200 = vmax.f32 %v1191, 0.0
      %v1201 = vmin.f32 %v1192, 6.0
      %v1202 = vmin.f32 %v1193, 6.0
      %v1203 = vmin.f32 %v1194, 6.0
      %v1204 = vmin.f32 %v1195, 6.0
      %v1205 = vmin.f32 %v1196, 6.0
      %v1206 = vmin.f32 %v1197, 6.0
      %v1207 = vmin.f32 %v1198, 6.0
      %v1208 = vmin.f32 %v1199, 6.0
      %v1209 = vmin.f32 %v1200, 6.0
      %v1210 = vld [vmem:[%s4 + $0x8] sm:$0xff]
      %v1211 = vld [vmem:[%s5 + $0x8] sm:$0xff]
      %v1212 = vld [vmem:[#allocation2] sm:$0xff]
      %v1213 = vld [vmem:[#allocation2 + $0x8] sm:$0xff]
      %v1214 = vld [vmem:[#allocation2 + $0x10] sm:$0xff]
      %v1215 = vld [vmem:[#allocation2 + $0x18] sm:$0xff]
      %v1216 = vld [vmem:[#allocation2 + $0x20] sm:$0xff]
      %v1217 = vld [vmem:[#allocation2 + $0x28] sm:$0xff]
      %v1218 = vld [vmem:[#allocation2 + $0x30] sm:$0xff]
      %v1219 = vld [vmem:[#allocation2 + $0x38] sm:$0xff]
      %v1220 = vld [vmem:[#allocation2 + $0x40] sm:$0xff]
      %1222 = vset.pattern.permute.xlu0 0
      %1223 = vperm.xlu0 %1222, %v1210
      %v1224 = vpop.permute.xlu0 %1223
      %v1226 = vmul.f32 %v1212, %v1224
      %v1227 = vmul.f32 %v1213, %v1224
      %v1228 = vmul.f32 %v1214, %v1224
      %v1229 = vmul.f32 %v1215, %v1224
      %v1230 = vmul.f32 %v1216, %v1224
      %v1231 = vmul.f32 %v1217, %v1224
      %v1232 = vmul.f32 %v1218, %v1224
      %v1233 = vmul.f32 %v1219, %v1224
      %v1234 = vmul.f32 %v1220, %v1224
      %v1235 = vadd.f32 %v1226, 0.0
      %v1236 = vadd.f32 %v1227, 0.0
      %v1237 = vadd.f32 %v1228, 0.0
      %v1238 = vadd.f32 %v1229, 0.0
      %v1239 = vadd.f32 %v1230, 0.0
      %v1240 = vadd.f32 %v1231, 0.0
      %v1241 = vadd.f32 %v1232, 0.0
      %v1242 = vadd.f32 %v1233, 0.0
      %v1243 = vadd.f32 %v1234, 0.0
      %1244 = vset.pattern.permute.xlu0 1
      %1245 = vperm.xlu0 %1244, %v1210
      %v1246 = vpop.permute.xlu0 %1245
      %v1248 = vmul.f32 %v1212, %v1246
      %v1249 = vmul.f32 %v1213, %v1246
      %v1250 = vmul.f32 %v1214, %v1246
      %v1251 = vmul.f32 %v1215, %v1246
      %v1252 = vmul.f32 %v1216, %v1246
      %v1253 = vmul.f32 %v1217, %v1246
      %v1254 = vmul.f32 %v1218, %v1246
      %v1255 = vmul.f32 %v1219, %v1246
      %v1256 = vmul.f32 %v1220, %v1246
      %1266 = vrot.lane.b32.xlu0 %v1248, 123
      %v1267 = vpop.permute.xlu0 %1266
      %1268 = vrot.lane.b32.xlu0 %v1249, 123
      %v1269 = vpop.permute.xlu0 %1268
      %1270 = vrot.lane.b32.xlu0 %v1250, 123
      %v1271 = vpop.permute.xlu0 %1270
      %1272 = vrot.lane.b32.xlu0 %v1251, 123
      %v1273 = vpop.permute.xlu0 %1272
      %1274 = vrot.lane.b32.xlu0 %v1252, 123
      %v1275 = vpop.permute.xlu0 %1274
      %1276 = vrot.lane.b32.xlu0 %v1253, 123
      %v1277 = vpop.permute.xlu0 %1276
      %1278 = vrot.lane.b32.xlu0 %v1254, 123
      %v1279 = vpop.permute.xlu0 %1278
      %1280 = vrot.lane.b32.xlu0 %v1255, 123
      %v1281 = vpop.permute.xlu0 %1280
      %1282 = vrot.lane.b32.xlu0 %v1256, 123
      %v1283 = vpop.permute.xlu0 %1282
      %vm1284 = vcmask 1006592
      %v1285 = vsel %vm1284, %v1267, %v1269
      %v1286 = vsel %vm1284, %v1269, %v1271
      %v1287 = vsel %vm1284, %v1271, %v1273
      %v1288 = vsel %vm1284, %v1273, %v1275
      %v1289 = vsel %vm1284, %v1275, %v1277
      %v1290 = vsel %vm1284, %v1277, %v1279
      %v1291 = vsel %vm1284, %v1279, %v1281
      %v1292 = vsel %vm1284, %v1281, %v1283
      %v1302 = vadd.f32 %v1235, %v1285
      %v1303 = vadd.f32 %v1236, %v1286
      %v1304 = vadd.f32 %v1237, %v1287
      %v1305 = vadd.f32 %v1238, %v1288
      %v1306 = vadd.f32 %v1239, %v1289
      %v1307 = vadd.f32 %v1240, %v1290
      %v1308 = vadd.f32 %v1241, %v1291
      %v1309 = vadd.f32 %v1242, %v1292
      %v1310 = vadd.f32 %v1243, %v1283
      %1311 = vset.pattern.permute.xlu0 2
      %1312 = vperm.xlu0 %1311, %v1210
      %v1313 = vpop.permute.xlu0 %1312
      %v1315 = vmul.f32 %v1212, %v1313
      %v1316 = vmul.f32 %v1213, %v1313
      %v1317 = vmul.f32 %v1214, %v1313
      %v1318 = vmul.f32 %v1215, %v1313
      %v1319 = vmul.f32 %v1216, %v1313
      %v1320 = vmul.f32 %v1217, %v1313
      %v1321 = vmul.f32 %v1218, %v1313
      %v1322 = vmul.f32 %v1219, %v1313
      %v1323 = vmul.f32 %v1220, %v1313
      %1333 = vrot.lane.b32.xlu0 %v1315, 118
      %v1334 = vpop.permute.xlu0 %1333
      %1335 = vrot.lane.b32.xlu0 %v1316, 118
      %v1336 = vpop.permute.xlu0 %1335
      %1337 = vrot.lane.b32.xlu0 %v1317, 118
      %v1338 = vpop.permute.xlu0 %1337
      %1339 = vrot.lane.b32.xlu0 %v1318, 118
      %v1340 = vpop.permute.xlu0 %1339
      %1341 = vrot.lane.b32.xlu0 %v1319, 118
      %v1342 = vpop.permute.xlu0 %1341
      %1343 = vrot.lane.b32.xlu0 %v1320, 118
      %v1344 = vpop.permute.xlu0 %1343
      %1345 = vrot.lane.b32.xlu0 %v1321, 118
      %v1346 = vpop.permute.xlu0 %1345
      %1347 = vrot.lane.b32.xlu0 %v1322, 118
      %v1348 = vpop.permute.xlu0 %1347
      %1349 = vrot.lane.b32.xlu0 %v1323, 118
      %v1350 = vpop.permute.xlu0 %1349
      %vm1351 = vcmask 965632
      %v1352 = vsel %vm1351, %v1334, %v1336
      %v1353 = vsel %vm1351, %v1336, %v1338
      %v1354 = vsel %vm1351, %v1338, %v1340
      %v1355 = vsel %vm1351, %v1340, %v1342
      %v1356 = vsel %vm1351, %v1342, %v1344
      %v1357 = vsel %vm1351, %v1344, %v1346
      %v1358 = vsel %vm1351, %v1346, %v1348
      %v1359 = vsel %vm1351, %v1348, %v1350
      %v1369 = vadd.f32 %v1302, %v1352
      %v1370 = vadd.f32 %v1303, %v1353
      %v1371 = vadd.f32 %v1304, %v1354
      %v1372 = vadd.f32 %v1305, %v1355
      %v1373 = vadd.f32 %v1306, %v1356
      %v1374 = vadd.f32 %v1307, %v1357
      %v1375 = vadd.f32 %v1308, %v1358
      %v1376 = vadd.f32 %v1309, %v1359
      %v1377 = vadd.f32 %v1310, %v1350
      %1378 = vset.pattern.permute.xlu0 3
      %1379 = vperm.xlu0 %1378, %v1210
      %v1380 = vpop.permute.xlu0 %1379
      %v1382 = vmul.f32 %v607, %v1380
      %v1383 = vmul.f32 %v608, %v1380
      %v1384 = vmul.f32 %v609, %v1380
      %v1385 = vmul.f32 %v610, %v1380
      %v1386 = vmul.f32 %v611, %v1380
      %v1387 = vmul.f32 %v612, %v1380
      %v1388 = vmul.f32 %v613, %v1380
      %v1389 = vmul.f32 %v614, %v1380
      %v1390 = vmul.f32 %v615, %v1380
      %1400 = vrot.lane.b32.xlu0 %v1382, 96
      %v1401 = vpop.permute.xlu0 %1400
      %1402 = vrot.lane.b32.xlu0 %v1383, 96
      %v1403 = vpop.permute.xlu0 %1402
      %1404 = vrot.lane.b32.xlu0 %v1384, 96
      %v1405 = vpop.permute.xlu0 %1404
      %1406 = vrot.lane.b32.xlu0 %v1385, 96
      %v1407 = vpop.permute.xlu0 %1406
      %1408 = vrot.lane.b32.xlu0 %v1386, 96
      %v1409 = vpop.permute.xlu0 %1408
      %1410 = vrot.lane.b32.xlu0 %v1387, 96
      %v1411 = vpop.permute.xlu0 %1410
      %1412 = vrot.lane.b32.xlu0 %v1388, 96
      %v1413 = vpop.permute.xlu0 %1412
      %1414 = vrot.lane.b32.xlu0 %v1389, 96
      %v1415 = vpop.permute.xlu0 %1414
      %1416 = vrot.lane.b32.xlu0 %v1390, 96
      %v1417 = vpop.permute.xlu0 %1416
      %vm1418 = vcmask 785408
      %v1419 = vsel %vm1418, %v1401, %v1403
      %v1420 = vsel %vm1418, %v1403, %v1405
      %v1421 = vsel %vm1418, %v1405, %v1407
      %v1422 = vsel %vm1418, %v1407, %v1409
      %v1423 = vsel %vm1418, %v1409, %v1411
      %v1424 = vsel %vm1418, %v1411, %v1413
      %v1425 = vsel %vm1418, %v1413, %v1415
      %v1426 = vsel %vm1418, %v1415, %v1417
      %v1436 = vadd.f32 %v1369, %v1419
      %v1437 = vadd.f32 %v1370, %v1420
      %v1438 = vadd.f32 %v1371, %v1421
      %v1439 = vadd.f32 %v1372, %v1422
      %v1440 = vadd.f32 %v1373, %v1423
      %v1441 = vadd.f32 %v1374, %v1424
      %v1442 = vadd.f32 %v1375, %v1425
      %v1443 = vadd.f32 %v1376, %v1426
      %v1444 = vadd.f32 %v1377, %v1417
      %1445 = vset.pattern.permute.xlu0 4
      %1446 = vperm.xlu0 %1445, %v1210
      %v1447 = vpop.permute.xlu0 %1446
      %v1449 = vmul.f32 %v608, %v1447
      %v1450 = vmul.f32 %v609, %v1447
      %v1451 = vmul.f32 %v610, %v1447
      %v1452 = vmul.f32 %v611, %v1447
      %v1453 = vmul.f32 %v612, %v1447
      %v1454 = vmul.f32 %v613, %v1447
      %v1455 = vmul.f32 %v614, %v1447
      %v1456 = vmul.f32 %v615, %v1447
      %1465 = vrot.lane.b32.xlu0 %v1449, 91
      %v1466 = vpop.permute.xlu0 %1465
      %1467 = vrot.lane.b32.xlu0 %v1450, 91
      %v1468 = vpop.permute.xlu0 %1467
      %1469 = vrot.lane.b32.xlu0 %v1451, 91
      %v1470 = vpop.permute.xlu0 %1469
      %1471 = vrot.lane.b32.xlu0 %v1452, 91
      %v1472 = vpop.permute.xlu0 %1471
      %1473 = vrot.lane.b32.xlu0 %v1453, 91
      %v1474 = vpop.permute.xlu0 %1473
      %1475 = vrot.lane.b32.xlu0 %v1454, 91
      %v1476 = vpop.permute.xlu0 %1475
      %1477 = vrot.lane.b32.xlu0 %v1455, 91
      %v1478 = vpop.permute.xlu0 %1477
      %1479 = vrot.lane.b32.xlu0 %v1456, 91
      %v1480 = vpop.permute.xlu0 %1479
      %vm1481 = vcmask 744448
      %v1482 = vsel %vm1481, %v1466, %v1468
      %v1483 = vsel %vm1481, %v1468, %v1470
      %v1484 = vsel %vm1481, %v1470, %v1472
      %v1485 = vsel %vm1481, %v1472, %v1474
      %v1486 = vsel %vm1481, %v1474, %v1476
      %v1487 = vsel %vm1481, %v1476, %v1478
      %v1488 = vsel %vm1481, %v1478, %v1480
      %v1498 = vadd.f32 %v1436, %v1466
      %v1499 = vadd.f32 %v1437, %v1482
      %v1500 = vadd.f32 %v1438, %v1483
      %v1501 = vadd.f32 %v1439, %v1484
      %v1502 = vadd.f32 %v1440, %v1485
      %v1503 = vadd.f32 %v1441, %v1486
      %v1504 = vadd.f32 %v1442, %v1487
      %v1505 = vadd.f32 %v1443, %v1488
      %v1506 = vadd.f32 %v1444, %v1480
      %1507 = vset.pattern.permute.xlu0 5
      %1508 = vperm.xlu0 %1507, %v1210
      %v1509 = vpop.permute.xlu0 %1508
      %v1511 = vmul.f32 %v901, %v1509
      %v1512 = vmul.f32 %v902, %v1509
      %v1513 = vmul.f32 %v903, %v1509
      %v1514 = vmul.f32 %v904, %v1509
      %v1515 = vmul.f32 %v905, %v1509
      %v1516 = vmul.f32 %v906, %v1509
      %v1517 = vmul.f32 %v907, %v1509
      %v1518 = vmul.f32 %v908, %v1509
      %v1519 = vmul.f32 %v909, %v1509
      %1529 = vrot.lane.b32.xlu0 %v1511, 86
      %v1530 = vpop.permute.xlu0 %1529
      %1531 = vrot.lane.b32.xlu0 %v1512, 86
      %v1532 = vpop.permute.xlu0 %1531
      %1533 = vrot.lane.b32.xlu0 %v1513, 86
      %v1534 = vpop.permute.xlu0 %1533
      %1535 = vrot.lane.b32.xlu0 %v1514, 86
      %v1536 = vpop.permute.xlu0 %1535
      %1537 = vrot.lane.b32.xlu0 %v1515, 86
      %v1538 = vpop.permute.xlu0 %1537
      %1539 = vrot.lane.b32.xlu0 %v1516, 86
      %v1540 = vpop.permute.xlu0 %1539
      %1541 = vrot.lane.b32.xlu0 %v1517, 86
      %v1542 = vpop.permute.xlu0 %1541
      %1543 = vrot.lane.b32.xlu0 %v1518, 86
      %v1544 = vpop.permute.xlu0 %1543
      %1545 = vrot.lane.b32.xlu0 %v1519, 86
      %v1546 = vpop.permute.xlu0 %1545
      %vm1547 = vcmask 703488
      %v1548 = vsel %vm1547, %v1530, %v1532
      %v1549 = vsel %vm1547, %v1532, %v1534
      %v1550 = vsel %vm1547, %v1534, %v1536
      %v1551 = vsel %vm1547, %v1536, %v1538
      %v1552 = vsel %vm1547, %v1538, %v1540
      %v1553 = vsel %vm1547, %v1540, %v1542
      %v1554 = vsel %vm1547, %v1542, %v1544
      %v1555 = vsel %vm1547, %v1544, %v1546
      %v1565 = vadd.f32 %v1498, %v1530
      %v1566 = vadd.f32 %v1499, %v1548
      %v1567 = vadd.f32 %v1500, %v1549
      %v1568 = vadd.f32 %v1501, %v1550
      %v1569 = vadd.f32 %v1502, %v1551
      %v1570 = vadd.f32 %v1503, %v1552
      %v1571 = vadd.f32 %v1504, %v1553
      %v1572 = vadd.f32 %v1505, %v1554
      %v1573 = vadd.f32 %v1506, %v1555
      %v1574 = vld [vmem:[#allocation2 + $0x18] sm:$0xff]
      %v1575 = vld [vmem:[#allocation2 + $0x20] sm:$0xff]
      %v1576 = vld [vmem:[#allocation2 + $0x28] sm:$0xff]
      %v1577 = vld [vmem:[#allocation2 + $0x30] sm:$0xff]
      %v1578 = vld [vmem:[#allocation2 + $0x38] sm:$0xff]
      %v1579 = vld [vmem:[#allocation2 + $0x40] sm:$0xff]
      %v1580 = vld [vmem:[#allocation2 + $0x48] sm:$0xff]
      %v1581 = vld [vmem:[#allocation2 + $0x50] sm:$0xff]
      %v1582 = vld [vmem:[#allocation2 + $0x58] sm:$0xff]
      %1583 = vset.pattern.permute.xlu0 6
      %1584 = vperm.xlu0 %1583, %v1210
      %v1585 = vpop.permute.xlu0 %1584
      %v1587 = vmul.f32 %v1574, %v1585
      %v1588 = vmul.f32 %v1575, %v1585
      %v1589 = vmul.f32 %v1576, %v1585
      %v1590 = vmul.f32 %v1577, %v1585
      %v1591 = vmul.f32 %v1578, %v1585
      %v1592 = vmul.f32 %v1579, %v1585
      %v1593 = vmul.f32 %v1580, %v1585
      %v1594 = vmul.f32 %v1581, %v1585
      %v1595 = vmul.f32 %v1582, %v1585
      %1605 = vrot.lane.b32.xlu0 %v1587, 64
      %v1606 = vpop.permute.xlu0 %1605
      %1607 = vrot.lane.b32.xlu0 %v1588, 64
      %v1608 = vpop.permute.xlu0 %1607
      %1609 = vrot.lane.b32.xlu0 %v1589, 64
      %v1610 = vpop.permute.xlu0 %1609
      %1611 = vrot.lane.b32.xlu0 %v1590, 64
      %v1612 = vpop.permute.xlu0 %1611
      %1613 = vrot.lane.b32.xlu0 %v1591, 64
      %v1614 = vpop.permute.xlu0 %1613
      %1615 = vrot.lane.b32.xlu0 %v1592, 64
      %v1616 = vpop.permute.xlu0 %1615
      %1617 = vrot.lane.b32.xlu0 %v1593, 64
      %v1618 = vpop.permute.xlu0 %1617
      %1619 = vrot.lane.b32.xlu0 %v1594, 64
      %v1620 = vpop.permute.xlu0 %1619
      %1621 = vrot.lane.b32.xlu0 %v1595, 64
      %v1622 = vpop.permute.xlu0 %1621
      %v1623 = vsel %vm1017, %v1606, %v1608
      %v1624 = vsel %vm1017, %v1608, %v1610
      %v1625 = vsel %vm1017, %v1610, %v1612
      %v1626 = vsel %vm1017, %v1612, %v1614
      %v1627 = vsel %vm1017, %v1614, %v1616
      %v1628 = vsel %vm1017, %v1616, %v1618
      %v1629 = vsel %vm1017, %v1618, %v1620
      %v1630 = vsel %vm1017, %v1620, %v1622
      %v1640 = vadd.f32 %v1565, %v1606
      %v1641 = vadd.f32 %v1566, %v1623
      %v1642 = vadd.f32 %v1567, %v1624
      %v1643 = vadd.f32 %v1568, %v1625
      %v1644 = vadd.f32 %v1569, %v1626
      %v1645 = vadd.f32 %v1570, %v1627
      %v1646 = vadd.f32 %v1571, %v1628
      %v1647 = vadd.f32 %v1572, %v1629
      %v1648 = vadd.f32 %v1573, %v1630
      %1649 = vset.pattern.permute.xlu0 7
      %1650 = vperm.xlu0 %1649, %v1210
      %v1651 = vpop.permute.xlu0 %1650
      %v1653 = vmul.f32 %v1574, %v1651
      %v1654 = vmul.f32 %v1575, %v1651
      %v1655 = vmul.f32 %v1576, %v1651
      %v1656 = vmul.f32 %v1577, %v1651
      %v1657 = vmul.f32 %v1578, %v1651
      %v1658 = vmul.f32 %v1579, %v1651
      %v1659 = vmul.f32 %v1580, %v1651
      %v1660 = vmul.f32 %v1581, %v1651
      %v1661 = vmul.f32 %v1582, %v1651
      %1671 = vrot.lane.b32.xlu0 %v1653, 59
      %v1672 = vpop.permute.xlu0 %1671
      %1673 = vrot.lane.b32.xlu0 %v1654, 59
      %v1674 = vpop.permute.xlu0 %1673
      %1675 = vrot.lane.b32.xlu0 %v1655, 59
      %v1676 = vpop.permute.xlu0 %1675
      %1677 = vrot.lane.b32.xlu0 %v1656, 59
      %v1678 = vpop.permute.xlu0 %1677
      %1679 = vrot.lane.b32.xlu0 %v1657, 59
      %v1680 = vpop.permute.xlu0 %1679
      %1681 = vrot.lane.b32.xlu0 %v1658, 59
      %v1682 = vpop.permute.xlu0 %1681
      %1683 = vrot.lane.b32.xlu0 %v1659, 59
      %v1684 = vpop.permute.xlu0 %1683
      %1685 = vrot.lane.b32.xlu0 %v1660, 59
      %v1686 = vpop.permute.xlu0 %1685
      %1687 = vrot.lane.b32.xlu0 %v1661, 59
      %v1688 = vpop.permute.xlu0 %1687
      %vm1689 = vcmask 482304
      %v1690 = vsel %vm1689, %v1672, %v1674
      %v1691 = vsel %vm1689, %v1674, %v1676
      %v1692 = vsel %vm1689, %v1676, %v1678
      %v1693 = vsel %vm1689, %v1678, %v1680
      %v1694 = vsel %vm1689, %v1680, %v1682
      %v1695 = vsel %vm1689, %v1682, %v1684
      %v1696 = vsel %vm1689, %v1684, %v1686
      %v1697 = vsel %vm1689, %v1686, %v1688
      %v1707 = vadd.f32 %v1640, %v1672
      %v1708 = vadd.f32 %v1641, %v1690
      %v1709 = vadd.f32 %v1642, %v1691
      %v1710 = vadd.f32 %v1643, %v1692
      %v1711 = vadd.f32 %v1644, %v1693
      %v1712 = vadd.f32 %v1645, %v1694
      %v1713 = vadd.f32 %v1646, %v1695
      %v1714 = vadd.f32 %v1647, %v1696
      %v1715 = vadd.f32 %v1648, %v1697
      %1716 = vset.pattern.permute.xlu0 8
      %1717 = vperm.xlu0 %1716, %v1210
      %v1718 = vpop.permute.xlu0 %1717
      %v1720 = vmul.f32 %v1574, %v1718
      %v1721 = vmul.f32 %v1575, %v1718
      %v1722 = vmul.f32 %v1576, %v1718
      %v1723 = vmul.f32 %v1577, %v1718
      %v1724 = vmul.f32 %v1578, %v1718
      %v1725 = vmul.f32 %v1579, %v1718
      %v1726 = vmul.f32 %v1580, %v1718
      %v1727 = vmul.f32 %v1581, %v1718
      %v1728 = vmul.f32 %v1582, %v1718
      %1738 = vrot.lane.b32.xlu0 %v1720, 54
      %v1739 = vpop.permute.xlu0 %1738
      %1740 = vrot.lane.b32.xlu0 %v1721, 54
      %v1741 = vpop.permute.xlu0 %1740
      %1742 = vrot.lane.b32.xlu0 %v1722, 54
      %v1743 = vpop.permute.xlu0 %1742
      %1744 = vrot.lane.b32.xlu0 %v1723, 54
      %v1745 = vpop.permute.xlu0 %1744
      %1746 = vrot.lane.b32.xlu0 %v1724, 54
      %v1747 = vpop.permute.xlu0 %1746
      %1748 = vrot.lane.b32.xlu0 %v1725, 54
      %v1749 = vpop.permute.xlu0 %1748
      %1750 = vrot.lane.b32.xlu0 %v1726, 54
      %v1751 = vpop.permute.xlu0 %1750
      %1752 = vrot.lane.b32.xlu0 %v1727, 54
      %v1753 = vpop.permute.xlu0 %1752
      %1754 = vrot.lane.b32.xlu0 %v1728, 54
      %v1755 = vpop.permute.xlu0 %1754
      %vm1756 = vcmask 441344
      %v1757 = vsel %vm1756, %v1739, %v1741
      %v1758 = vsel %vm1756, %v1741, %v1743
      %v1759 = vsel %vm1756, %v1743, %v1745
      %v1760 = vsel %vm1756, %v1745, %v1747
      %v1761 = vsel %vm1756, %v1747, %v1749
      %v1762 = vsel %vm1756, %v1749, %v1751
      %v1763 = vsel %vm1756, %v1751, %v1753
      %v1764 = vsel %vm1756, %v1753, %v1755
      %v1774 = vadd.f32 %v1707, %v1739
      %v1775 = vadd.f32 %v1708, %v1757
      %v1776 = vadd.f32 %v1709, %v1758
      %v1777 = vadd.f32 %v1710, %v1759
      %v1778 = vadd.f32 %v1711, %v1760
      %v1779 = vadd.f32 %v1712, %v1761
      %v1780 = vadd.f32 %v1713, %v1762
      %v1781 = vadd.f32 %v1714, %v1763
      %v1782 = vadd.f32 %v1715, %v1764
      %1784 = vset.pattern.permute.xlu0 0
      %1785 = vperm.xlu0 %1784, %v1211
      %v1786 = vpop.permute.xlu0 %1785
      %v1788 = vadd.f32 %v1774, %v1786
      %v1789 = vadd.f32 %v1775, %v1786
      %v1790 = vadd.f32 %v1776, %v1786
      %v1791 = vadd.f32 %v1777, %v1786
      %v1792 = vadd.f32 %v1778, %v1786
      %v1793 = vadd.f32 %v1779, %v1786
      %v1794 = vadd.f32 %v1780, %v1786
      %v1795 = vadd.f32 %v1781, %v1786
      %v1796 = vadd.f32 %v1782, %v1786
      %v1797 = vmax.f32 %v1788, 0.0
      %v1798 = vmax.f32 %v1789, 0.0
      %v1799 = vmax.f32 %v1790, 0.0
      %v1800 = vmax.f32 %v1791, 0.0
      %v1801 = vmax.f32 %v1792, 0.0
      %v1802 = vmax.f32 %v1793, 0.0
      %v1803 = vmax.f32 %v1794, 0.0
      %v1804 = vmax.f32 %v1795, 0.0
      %v1805 = vmax.f32 %v1796, 0.0
      %v1806 = vmin.f32 %v1797, 6.0
      %v1807 = vmin.f32 %v1798, 6.0
      %v1808 = vmin.f32 %v1799, 6.0
      %v1809 = vmin.f32 %v1800, 6.0
      %v1810 = vmin.f32 %v1801, 6.0
      %v1811 = vmin.f32 %v1802, 6.0
      %v1812 = vmin.f32 %v1803, 6.0
      %v1813 = vmin.f32 %v1804, 6.0
      %v1814 = vmin.f32 %v1805, 6.0
      %v1815 = vld [vmem:[%s4 + $0x10] sm:$0xff]
      %v1816 = vld [vmem:[%s5 + $0x10] sm:$0xff]
      %1818 = vset.pattern.permute.xlu0 0
      %1819 = vperm.xlu0 %1818, %v1815
      %v1820 = vpop.permute.xlu0 %1819
      %v1822 = vmul.f32 %v1212, %v1820
      %v1823 = vmul.f32 %v1213, %v1820
      %v1824 = vmul.f32 %v1214, %v1820
      %v1825 = vmul.f32 %v1215, %v1820
      %v1826 = vmul.f32 %v1216, %v1820
      %v1827 = vmul.f32 %v1217, %v1820
      %v1828 = vmul.f32 %v1218, %v1820
      %v1829 = vmul.f32 %v1219, %v1820
      %v1830 = vmul.f32 %v1220, %v1820
      %v1831 = vadd.f32 %v1822, 0.0
      %v1832 = vadd.f32 %v1823, 0.0
      %v1833 = vadd.f32 %v1824, 0.0
      %v1834 = vadd.f32 %v1825, 0.0
      %v1835 = vadd.f32 %v1826, 0.0
      %v1836 = vadd.f32 %v1827, 0.0
      %v1837 = vadd.f32 %v1828, 0.0
      %v1838 = vadd.f32 %v1829, 0.0
      %v1839 = vadd.f32 %v1830, 0.0
      %1840 = vset.pattern.permute.xlu0 1
      %1841 = vperm.xlu0 %1840, %v1815
      %v1842 = vpop.permute.xlu0 %1841
      %v1844 = vmul.f32 %v1212, %v1842
      %v1845 = vmul.f32 %v1213, %v1842
      %v1846 = vmul.f32 %v1214, %v1842
      %v1847 = vmul.f32 %v1215, %v1842
      %v1848 = vmul.f32 %v1216, %v1842
      %v1849 = vmul.f32 %v1217, %v1842
      %v1850 = vmul.f32 %v1218, %v1842
      %v1851 = vmul.f32 %v1219, %v1842
      %v1852 = vmul.f32 %v1220, %v1842
      %1862 = vrot.lane.b32.xlu0 %v1844, 121
      %v1863 = vpop.permute.xlu0 %1862
      %1864 = vrot.lane.b32.xlu0 %v1845, 121
      %v1865 = vpop.permute.xlu0 %1864
      %1866 = vrot.lane.b32.xlu0 %v1846, 121
      %v1867 = vpop.permute.xlu0 %1866
      %1868 = vrot.lane.b32.xlu0 %v1847, 121
      %v1869 = vpop.permute.xlu0 %1868
      %1870 = vrot.lane.b32.xlu0 %v1848, 121
      %v1871 = vpop.permute.xlu0 %1870
      %1872 = vrot.lane.b32.xlu0 %v1849, 121
      %v1873 = vpop.permute.xlu0 %1872
      %1874 = vrot.lane.b32.xlu0 %v1850, 121
      %v1875 = vpop.permute.xlu0 %1874
      %1876 = vrot.lane.b32.xlu0 %v1851, 121
      %v1877 = vpop.permute.xlu0 %1876
      %1878 = vrot.lane.b32.xlu0 %v1852, 121
      %v1879 = vpop.permute.xlu0 %1878
      %vm1880 = vcmask 990208
      %v1881 = vsel %vm1880, %v1863, %v1865
      %v1882 = vsel %vm1880, %v1865, %v1867
      %v1883 = vsel %vm1880, %v1867, %v1869
      %v1884 = vsel %vm1880, %v1869, %v1871
      %v1885 = vsel %vm1880, %v1871, %v1873
      %v1886 = vsel %vm1880, %v1873, %v1875
      %v1887 = vsel %vm1880, %v1875, %v1877
      %v1888 = vsel %vm1880, %v1877, %v1879
      %v1898 = vadd.f32 %v1831, %v1881
      %v1899 = vadd.f32 %v1832, %v1882
      %v1900 = vadd.f32 %v1833, %v1883
      %v1901 = vadd.f32 %v1834, %v1884
      %v1902 = vadd.f32 %v1835, %v1885
      %v1903 = vadd.f32 %v1836, %v1886
      %v1904 = vadd.f32 %v1837, %v1887
      %v1905 = vadd.f32 %v1838, %v1888
      %v1906 = vadd.f32 %v1839, %v1879
      %1907 = vset.pattern.permute.xlu0 2
      %1908 = vperm.xlu0 %1907, %v1815
      %v1909 = vpop.permute.xlu0 %1908
      %v1911 = vmul.f32 %v1212, %v1909
      %v1912 = vmul.f32 %v1213, %v1909
      %v1913 = vmul.f32 %v1214, %v1909
      %v1914 = vmul.f32 %v1215, %v1909
      %v1915 = vmul.f32 %v1216, %v1909
      %v1916 = vmul.f32 %v1217, %v1909
      %v1917 = vmul.f32 %v1218, %v1909
      %v1918 = vmul.f32 %v1219, %v1909
      %v1919 = vmul.f32 %v1220, %v1909
      %1929 = vrot.lane.b32.xlu0 %v1911, 114
      %v1930 = vpop.permute.xlu0 %1929
      %1931 = vrot.lane.b32.xlu0 %v1912, 114
      %v1932 = vpop.permute.xlu0 %1931
      %1933 = vrot.lane.b32.xlu0 %v1913, 114
      %v1934 = vpop.permute.xlu0 %1933
      %1935 = vrot.lane.b32.xlu0 %v1914, 114
      %v1936 = vpop.permute.xlu0 %1935
      %1937 = vrot.lane.b32.xlu0 %v1915, 114
      %v1938 = vpop.permute.xlu0 %1937
      %1939 = vrot.lane.b32.xlu0 %v1916, 114
      %v1940 = vpop.permute.xlu0 %1939
      %1941 = vrot.lane.b32.xlu0 %v1917, 114
      %v1942 = vpop.permute.xlu0 %1941
      %1943 = vrot.lane.b32.xlu0 %v1918, 114
      %v1944 = vpop.permute.xlu0 %1943
      %1945 = vrot.lane.b32.xlu0 %v1919, 114
      %v1946 = vpop.permute.xlu0 %1945
      %vm1947 = vcmask 932864
      %v1948 = vsel %vm1947, %v1930, %v1932
      %v1949 = vsel %vm1947, %v1932, %v1934
      %v1950 = vsel %vm1947, %v1934, %v1936
      %v1951 = vsel %vm1947, %v1936, %v1938
      %v1952 = vsel %vm1947, %v1938, %v1940
      %v1953 = vsel %vm1947, %v1940, %v1942
      %v1954 = vsel %vm1947, %v1942, %v1944
      %v1955 = vsel %vm1947, %v1944, %v1946
      %v1965 = vadd.f32 %v1898, %v1948
      %v1966 = vadd.f32 %v1899, %v1949
      %v1967 = vadd.f32 %v1900, %v1950
      %v1968 = vadd.f32 %v1901, %v1951
      %v1969 = vadd.f32 %v1902, %v1952
      %v1970 = vadd.f32 %v1903, %v1953
      %v1971 = vadd.f32 %v1904, %v1954
      %v1972 = vadd.f32 %v1905, %v1955
      %v1973 = vadd.f32 %v1906, %v1946
      %1974 = vset.pattern.permute.xlu0 3
      %1975 = vperm.xlu0 %1974, %v1815
      %v1976 = vpop.permute.xlu0 %1975
      %v1978 = vmul.f32 %v607, %v1976
      %v1979 = vmul.f32 %v608, %v1976
      %v1980 = vmul.f32 %v609, %v1976
      %v1981 = vmul.f32 %v610, %v1976
      %v1982 = vmul.f32 %v611, %v1976
      %v1983 = vmul.f32 %v612, %v1976
      %v1984 = vmul.f32 %v613, %v1976
      %v1985 = vmul.f32 %v614, %v1976
      %v1986 = vmul.f32 %v615, %v1976
      %1996 = vrot.lane.b32.xlu0 %v1978, 32
      %v1997 = vpop.permute.xlu0 %1996
      %1998 = vrot.lane.b32.xlu0 %v1979, 32
      %v1999 = vpop.permute.xlu0 %1998
      %2000 = vrot.lane.b32.xlu0 %v1980, 32
      %v2001 = vpop.permute.xlu0 %2000
      %2002 = vrot.lane.b32.xlu0 %v1981, 32
      %v2003 = vpop.permute.xlu0 %2002
      %2004 = vrot.lane.b32.xlu0 %v1982, 32
      %v2005 = vpop.permute.xlu0 %2004
      %2006 = vrot.lane.b32.xlu0 %v1983, 32
      %v2007 = vpop.permute.xlu0 %2006
      %2008 = vrot.lane.b32.xlu0 %v1984, 32
      %v2009 = vpop.permute.xlu0 %2008
      %2010 = vrot.lane.b32.xlu0 %v1985, 32
      %v2011 = vpop.permute.xlu0 %2010
      %2012 = vrot.lane.b32.xlu0 %v1986, 32
      %v2013 = vpop.permute.xlu0 %2012
      %v2014 = vsel %vm443, %v1997, %v1999
      %v2015 = vsel %vm443, %v1999, %v2001
      %v2016 = vsel %vm443, %v2001, %v2003
      %v2017 = vsel %vm443, %v2003, %v2005
      %v2018 = vsel %vm443, %v2005, %v2007
      %v2019 = vsel %vm443, %v2007, %v2009
      %v2020 = vsel %vm443, %v2009, %v2011
      %v2021 = vsel %vm443, %v2011, %v2013
      %v2031 = vadd.f32 %v1965, %v2014
      %v2032 = vadd.f32 %v1966, %v2015
      %v2033 = vadd.f32 %v1967, %v2016
      %v2034 = vadd.f32 %v1968, %v2017
      %v2035 = vadd.f32 %v1969, %v2018
      %v2036 = vadd.f32 %v1970, %v2019
      %v2037 = vadd.f32 %v1971, %v2020
      %v2038 = vadd.f32 %v1972, %v2021
      %v2039 = vadd.f32 %v1973, %v2013
      %2040 = vset.pattern.permute.xlu0 4
      %2041 = vperm.xlu0 %2040, %v1815
      %v2042 = vpop.permute.xlu0 %2041
      %v2044 = vmul.f32 %v608, %v2042
      %v2045 = vmul.f32 %v609, %v2042
      %v2046 = vmul.f32 %v610, %v2042
      %v2047 = vmul.f32 %v611, %v2042
      %v2048 = vmul.f32 %v612, %v2042
      %v2049 = vmul.f32 %v613, %v2042
      %v2050 = vmul.f32 %v614, %v2042
      %v2051 = vmul.f32 %v615, %v2042
      %2060 = vrot.lane.b32.xlu0 %v2044, 25
      %v2061 = vpop.permute.xlu0 %2060
      %2062 = vrot.lane.b32.xlu0 %v2045, 25
      %v2063 = vpop.permute.xlu0 %2062
      %2064 = vrot.lane.b32.xlu0 %v2046, 25
      %v2065 = vpop.permute.xlu0 %2064
      %2066 = vrot.lane.b32.xlu0 %v2047, 25
      %v2067 = vpop.permute.xlu0 %2066
      %2068 = vrot.lane.b32.xlu0 %v2048, 25
      %v2069 = vpop.permute.xlu0 %2068
      %2070 = vrot.lane.b32.xlu0 %v2049, 25
      %v2071 = vpop.permute.xlu0 %2070
      %2072 = vrot.lane.b32.xlu0 %v2050, 25
      %v2073 = vpop.permute.xlu0 %2072
      %2074 = vrot.lane.b32.xlu0 %v2051, 25
      %v2075 = vpop.permute.xlu0 %2074
      %vm2076 = vcmask 203776
      %v2077 = vsel %vm2076, %v2061, %v2063
      %v2078 = vsel %vm2076, %v2063, %v2065
      %v2079 = vsel %vm2076, %v2065, %v2067
      %v2080 = vsel %vm2076, %v2067, %v2069
      %v2081 = vsel %vm2076, %v2069, %v2071
      %v2082 = vsel %vm2076, %v2071, %v2073
      %v2083 = vsel %vm2076, %v2073, %v2075
      %v2093 = vadd.f32 %v2031, %v2061
      %v2094 = vadd.f32 %v2032, %v2077
      %v2095 = vadd.f32 %v2033, %v2078
      %v2096 = vadd.f32 %v2034, %v2079
      %v2097 = vadd.f32 %v2035, %v2080
      %v2098 = vadd.f32 %v2036, %v2081
      %v2099 = vadd.f32 %v2037, %v2082
      %v2100 = vadd.f32 %v2038, %v2083
      %v2101 = vadd.f32 %v2039, %v2075
      %2102 = vset.pattern.permute.xlu0 5
      %2103 = vperm.xlu0 %2102, %v1815
      %v2104 = vpop.permute.xlu0 %2103
      %v2106 = vmul.f32 %v901, %v2104
      %v2107 = vmul.f32 %v902, %v2104
      %v2108 = vmul.f32 %v903, %v2104
      %v2109 = vmul.f32 %v904, %v2104
      %v2110 = vmul.f32 %v905, %v2104
      %v2111 = vmul.f32 %v906, %v2104
      %v2112 = vmul.f32 %v907, %v2104
      %v2113 = vmul.f32 %v908, %v2104
      %v2114 = vmul.f32 %v909, %v2104
      %2124 = vrot.lane.b32.xlu0 %v2106, 18
      %v2125 = vpop.permute.xlu0 %2124
      %2126 = vrot.lane.b32.xlu0 %v2107, 18
      %v2127 = vpop.permute.xlu0 %2126
      %2128 = vrot.lane.b32.xlu0 %v2108, 18
      %v2129 = vpop.permute.xlu0 %2128
      %2130 = vrot.lane.b32.xlu0 %v2109, 18
      %v2131 = vpop.permute.xlu0 %2130
      %2132 = vrot.lane.b32.xlu0 %v2110, 18
      %v2133 = vpop.permute.xlu0 %2132
      %2134 = vrot.lane.b32.xlu0 %v2111, 18
      %v2135 = vpop.permute.xlu0 %2134
      %2136 = vrot.lane.b32.xlu0 %v2112, 18
      %v2137 = vpop.permute.xlu0 %2136
      %2138 = vrot.lane.b32.xlu0 %v2113, 18
      %v2139 = vpop.permute.xlu0 %2138
      %2140 = vrot.lane.b32.xlu0 %v2114, 18
      %v2141 = vpop.permute.xlu0 %2140
      %vm2142 = vcmask 146432
      %v2143 = vsel %vm2142, %v2125, %v2127
      %v2144 = vsel %vm2142, %v2127, %v2129
      %v2145 = vsel %vm2142, %v2129, %v2131
      %v2146 = vsel %vm2142, %v2131, %v2133
      %v2147 = vsel %vm2142, %v2133, %v2135
      %v2148 = vsel %vm2142, %v2135, %v2137
      %v2149 = vsel %vm2142, %v2137, %v2139
      %v2150 = vsel %vm2142, %v2139, %v2141
      %v2160 = vadd.f32 %v2093, %v2125
      %v2161 = vadd.f32 %v2094, %v2143
      %v2162 = vadd.f32 %v2095, %v2144
      %v2163 = vadd.f32 %v2096, %v2145
      %v2164 = vadd.f32 %v2097, %v2146
      %v2165 = vadd.f32 %v2098, %v2147
      %v2166 = vadd.f32 %v2099, %v2148
      %v2167 = vadd.f32 %v2100, %v2149
      %v2168 = vadd.f32 %v2101, %v2150
      %2169 = vset.pattern.permute.xlu0 6
      %2170 = vperm.xlu0 %2169, %v1815
      %v2171 = vpop.permute.xlu0 %2170
      %v2173 = vmul.f32 %v1574, %v2171
      %v2174 = vmul.f32 %v1575, %v2171
      %v2175 = vmul.f32 %v1576, %v2171
      %v2176 = vmul.f32 %v1577, %v2171
      %v2177 = vmul.f32 %v1578, %v2171
      %v2178 = vmul.f32 %v1579, %v2171
      %v2179 = vmul.f32 %v1580, %v2171
      %v2180 = vmul.f32 %v1581, %v2171
      %v2181 = vmul.f32 %v1582, %v2171
      %2191 = vrot.lane.b32.xlu0 %v2173, 64
      %v2192 = vpop.permute.xlu0 %2191
      %2193 = vrot.lane.b32.xlu0 %v2174, 64
      %v2194 = vpop.permute.xlu0 %2193
      %2195 = vrot.lane.b32.xlu0 %v2175, 64
      %v2196 = vpop.permute.xlu0 %2195
      %2197 = vrot.lane.b32.xlu0 %v2176, 64
      %v2198 = vpop.permute.xlu0 %2197
      %2199 = vrot.lane.b32.xlu0 %v2177, 64
      %v2200 = vpop.permute.xlu0 %2199
      %2201 = vrot.lane.b32.xlu0 %v2178, 64
      %v2202 = vpop.permute.xlu0 %2201
      %2203 = vrot.lane.b32.xlu0 %v2179, 64
      %v2204 = vpop.permute.xlu0 %2203
      %2205 = vrot.lane.b32.xlu0 %v2180, 64
      %v2206 = vpop.permute.xlu0 %2205
      %2207 = vrot.lane.b32.xlu0 %v2181, 64
      %v2208 = vpop.permute.xlu0 %2207
      %v2209 = vsel %vm1017, %v2192, %v2194
      %v2210 = vsel %vm1017, %v2194, %v2196
      %v2211 = vsel %vm1017, %v2196, %v2198
      %v2212 = vsel %vm1017, %v2198, %v2200
      %v2213 = vsel %vm1017, %v2200, %v2202
      %v2214 = vsel %vm1017, %v2202, %v2204
      %v2215 = vsel %vm1017, %v2204, %v2206
      %v2216 = vsel %vm1017, %v2206, %v2208
      %v2226 = vadd.f32 %v2160, %v2209
      %v2227 = vadd.f32 %v2161, %v2210
      %v2228 = vadd.f32 %v2162, %v2211
      %v2229 = vadd.f32 %v2163, %v2212
      %v2230 = vadd.f32 %v2164, %v2213
      %v2231 = vadd.f32 %v2165, %v2214
      %v2232 = vadd.f32 %v2166, %v2215
      %v2233 = vadd.f32 %v2167, %v2216
      %v2234 = vadd.f32 %v2168, %v2208
      %2235 = vset.pattern.permute.xlu0 7
      %2236 = vperm.xlu0 %2235, %v1815
      %v2237 = vpop.permute.xlu0 %2236
      %v2239 = vmul.f32 %v1574, %v2237
      %v2240 = vmul.f32 %v1575, %v2237
      %v2241 = vmul.f32 %v1576, %v2237
      %v2242 = vmul.f32 %v1577, %v2237
      %v2243 = vmul.f32 %v1578, %v2237
      %v2244 = vmul.f32 %v1579, %v2237
      %v2245 = vmul.f32 %v1580, %v2237
      %v2246 = vmul.f32 %v1581, %v2237
      %v2247 = vmul.f32 %v1582, %v2237
      %2257 = vrot.lane.b32.xlu0 %v2239, 57
      %v2258 = vpop.permute.xlu0 %2257
      %2259 = vrot.lane.b32.xlu0 %v2240, 57
      %v2260 = vpop.permute.xlu0 %2259
      %2261 = vrot.lane.b32.xlu0 %v2241, 57
      %v2262 = vpop.permute.xlu0 %2261
      %2263 = vrot.lane.b32.xlu0 %v2242, 57
      %v2264 = vpop.permute.xlu0 %2263
      %2265 = vrot.lane.b32.xlu0 %v2243, 57
      %v2266 = vpop.permute.xlu0 %2265
      %2267 = vrot.lane.b32.xlu0 %v2244, 57
      %v2268 = vpop.permute.xlu0 %2267
      %2269 = vrot.lane.b32.xlu0 %v2245, 57
      %v2270 = vpop.permute.xlu0 %2269
      %2271 = vrot.lane.b32.xlu0 %v2246, 57
      %v2272 = vpop.permute.xlu0 %2271
      %2273 = vrot.lane.b32.xlu0 %v2247, 57
      %v2274 = vpop.permute.xlu0 %2273
      %vm2275 = vcmask 465920
      %v2276 = vsel %vm2275, %v2258, %v2260
      %v2277 = vsel %vm2275, %v2260, %v2262
      %v2278 = vsel %vm2275, %v2262, %v2264
      %v2279 = vsel %vm2275, %v2264, %v2266
      %v2280 = vsel %vm2275, %v2266, %v2268
      %v2281 = vsel %vm2275, %v2268, %v2270
      %v2282 = vsel %vm2275, %v2270, %v2272
      %v2283 = vsel %vm2275, %v2272, %v2274
      %v2293 = vadd.f32 %v2226, %v2276
      %v2294 = vadd.f32 %v2227, %v2277
      %v2295 = vadd.f32 %v2228, %v2278
      %v2296 = vadd.f32 %v2229, %v2279
      %v2297 = vadd.f32 %v2230, %v2280
      %v2298 = vadd.f32 %v2231, %v2281
      %v2299 = vadd.f32 %v2232, %v2282
      %v2300 = vadd.f32 %v2233, %v2283
      %v2301 = vadd.f32 %v2234, %v2274
      %2302 = vset.pattern.permute.xlu0 8
      %2303 = vperm.xlu0 %2302, %v1815
      %v2304 = vpop.permute.xlu0 %2303
      %v2306 = vmul.f32 %v1574, %v2304
      %v2307 = vmul.f32 %v1575, %v2304
      %v2308 = vmul.f32 %v1576, %v2304
      %v2309 = vmul.f32 %v1577, %v2304
      %v2310 = vmul.f32 %v1578, %v2304
      %v2311 = vmul.f32 %v1579, %v2304
      %v2312 = vmul.f32 %v1580, %v2304
      %v2313 = vmul.f32 %v1581, %v2304
      %v2314 = vmul.f32 %v1582, %v2304
      %2324 = vrot.lane.b32.xlu0 %v2306, 50
      %v2325 = vpop.permute.xlu0 %2324
      %2326 = vrot.lane.b32.xlu0 %v2307, 50
      %v2327 = vpop.permute.xlu0 %2326
      %2328 = vrot.lane.b32.xlu0 %v2308, 50
      %v2329 = vpop.permute.xlu0 %2328
      %2330 = vrot.lane.b32.xlu0 %v2309, 50
      %v2331 = vpop.permute.xlu0 %2330
      %2332 = vrot.lane.b32.xlu0 %v2310, 50
      %v2333 = vpop.permute.xlu0 %2332
      %2334 = vrot.lane.b32.xlu0 %v2311, 50
      %v2335 = vpop.permute.xlu0 %2334
      %2336 = vrot.lane.b32.xlu0 %v2312, 50
      %v2337 = vpop.permute.xlu0 %2336
      %2338 = vrot.lane.b32.xlu0 %v2313, 50
      %v2339 = vpop.permute.xlu0 %2338
      %2340 = vrot.lane.b32.xlu0 %v2314, 50
      %v2341 = vpop.permute.xlu0 %2340
      %vm2342 = vcmask 408576
      %v2343 = vsel %vm2342, %v2325, %v2327
      %v2344 = vsel %vm2342, %v2327, %v2329
      %v2345 = vsel %vm2342, %v2329, %v2331
      %v2346 = vsel %vm2342, %v2331, %v2333
      %v2347 = vsel %vm2342, %v2333, %v2335
      %v2348 = vsel %vm2342, %v2335, %v2337
      %v2349 = vsel %vm2342, %v2337, %v2339
      %v2350 = vsel %vm2342, %v2339, %v2341
      %v2360 = vadd.f32 %v2293, %v2343
      %v2361 = vadd.f32 %v2294, %v2344
      %v2362 = vadd.f32 %v2295, %v2345
      %v2363 = vadd.f32 %v2296, %v2346
      %v2364 = vadd.f32 %v2297, %v2347
      %v2365 = vadd.f32 %v2298, %v2348
      %v2366 = vadd.f32 %v2299, %v2349
      %v2367 = vadd.f32 %v2300, %v2350
      %v2368 = vadd.f32 %v2301, %v2341
      %2370 = vset.pattern.permute.xlu0 0
      %2371 = vperm.xlu0 %2370, %v1816
      %v2372 = vpop.permute.xlu0 %2371
      %v2374 = vadd.f32 %v2360, %v2372
      %v2375 = vadd.f32 %v2361, %v2372
      %v2376 = vadd.f32 %v2362, %v2372
      %v2377 = vadd.f32 %v2363, %v2372
      %v2378 = vadd.f32 %v2364, %v2372
      %v2379 = vadd.f32 %v2365, %v2372
      %v2380 = vadd.f32 %v2366, %v2372
      %v2381 = vadd.f32 %v2367, %v2372
      %v2382 = vadd.f32 %v2368, %v2372
      %v2383 = vmax.f32 %v2374, 0.0
      %v2384 = vmax.f32 %v2375, 0.0
      %v2385 = vmax.f32 %v2376, 0.0
      %v2386 = vmax.f32 %v2377, 0.0
      %v2387 = vmax.f32 %v2378, 0.0
      %v2388 = vmax.f32 %v2379, 0.0
      %v2389 = vmax.f32 %v2380, 0.0
      %v2390 = vmax.f32 %v2381, 0.0
      %v2391 = vmax.f32 %v2382, 0.0
      %v2392 = vmin.f32 %v2383, 6.0
      %v2393 = vmin.f32 %v2384, 6.0
      %v2394 = vmin.f32 %v2385, 6.0
      %v2395 = vmin.f32 %v2386, 6.0
      %v2396 = vmin.f32 %v2387, 6.0
      %v2397 = vmin.f32 %v2388, 6.0
      %v2398 = vmin.f32 %v2389, 6.0
      %v2399 = vmin.f32 %v2390, 6.0
      %v2400 = vmin.f32 %v2391, 6.0
      %2410 = vrot.lane.b32.xlu0 %v1806, 66
      %v2411 = vpop.permute.xlu0 %2410
      %2412 = vrot.lane.b32.xlu0 %v1807, 66
      %v2413 = vpop.permute.xlu0 %2412
      %2414 = vrot.lane.b32.xlu0 %v1808, 66
      %v2415 = vpop.permute.xlu0 %2414
      %2416 = vrot.lane.b32.xlu0 %v1809, 66
      %v2417 = vpop.permute.xlu0 %2416
      %2418 = vrot.lane.b32.xlu0 %v1810, 66
      %v2419 = vpop.permute.xlu0 %2418
      %2420 = vrot.lane.b32.xlu0 %v1811, 66
      %v2421 = vpop.permute.xlu0 %2420
      %2422 = vrot.lane.b32.xlu0 %v1812, 66
      %v2423 = vpop.permute.xlu0 %2422
      %2424 = vrot.lane.b32.xlu0 %v1813, 66
      %v2425 = vpop.permute.xlu0 %2424
      %2426 = vrot.lane.b32.xlu0 %v1814, 66
      %v2427 = vpop.permute.xlu0 %2426
      %vm2428 = vcmask 539648
      %v2429 = vsel %vm2428, %v2411, %v2413
      %v2430 = vsel %vm2428, %v2413, %v2415
      %v2431 = vsel %vm2428, %v2415, %v2417
      %v2432 = vsel %vm2428, %v2417, %v2419
      %v2433 = vsel %vm2428, %v2419, %v2421
      %v2434 = vsel %vm2428, %v2421, %v2423
      %v2435 = vsel %vm2428, %v2423, %v2425
      %v2436 = vsel %vm2428, %v2425, %v2427
      %2455 = vrot.lane.b32.xlu0 %v2392, 4
      %v2456 = vpop.permute.xlu0 %2455
      %2457 = vrot.lane.b32.xlu0 %v2393, 4
      %v2458 = vpop.permute.xlu0 %2457
      %2459 = vrot.lane.b32.xlu0 %v2394, 4
      %v2460 = vpop.permute.xlu0 %2459
      %2461 = vrot.lane.b32.xlu0 %v2395, 4
      %v2462 = vpop.permute.xlu0 %2461
      %2463 = vrot.lane.b32.xlu0 %v2396, 4
      %v2464 = vpop.permute.xlu0 %2463
      %2465 = vrot.lane.b32.xlu0 %v2397, 4
      %v2466 = vpop.permute.xlu0 %2465
      %2467 = vrot.lane.b32.xlu0 %v2398, 4
      %v2468 = vpop.permute.xlu0 %2467
      %2469 = vrot.lane.b32.xlu0 %v2399, 4
      %v2470 = vpop.permute.xlu0 %2469
      %2471 = vrot.lane.b32.xlu0 %v2400, 4
      %v2472 = vpop.permute.xlu0 %2471
      %vm2473 = vcmask 31744
      %v2474 = vsel %vm2473, %v2456, %v2458
      %v2475 = vsel %vm2473, %v2458, %v2460
      %v2476 = vsel %vm2473, %v2460, %v2462
      %v2477 = vsel %vm2473, %v2462, %v2464
      %v2478 = vsel %vm2473, %v2464, %v2466
      %v2479 = vsel %vm2473, %v2466, %v2468
      %v2480 = vsel %vm2473, %v2468, %v2470
      %v2481 = vsel %vm2473, %v2470, %v2472
      %v2491 = vld [vmem:[%s6] sm:$0xf]
      %v2492 = vld [vmem:[%s6 + $0x4] sm:$0xf]
      %v2493 = vld [vmem:[%s6 + $0x8] sm:$0xf]
      %v2494 = vld [vmem:[%s6 + $0xc] sm:$0xf]
      %v2495 = vld [vmem:[%s6 + $0x10] sm:$0xf]
      %v2496 = vld [vmem:[%s6 + $0x14] sm:$0xf]
      %v2497 = vld [vmem:[%s6 + $0x18] sm:$0xf]
      %v2498 = vld [vmem:[%s6 + $0x1c] sm:$0xf]
      %v2499 = vld [vmem:[%s6 + $0x20] sm:$0xf]
      %v2500 = vld [vmem:[%s6 + $0x24] sm:$0xf]
      %v2501 = vld [vmem:[%s6 + $0x28] sm:$0xf]
      %v2502 = vld [vmem:[%s6 + $0x2c] sm:$0xf]
      %v2503 = vpack.c.bf16 %v2429, %v1201
      %v2504 = vpack.c.bf16 %v2430, %v1202
      %v2505 = vpack.c.bf16 %v2431, %v1203
      %v2506 = vpack.c.bf16 %v2432, %v1204
      %v2507 = vpack.c.bf16 %v2433, %v1205
      %v2508 = vpack.c.bf16 %v2434, %v1206
      %v2509 = vpack.c.bf16 %v2435, %v1207
      %v2510 = vpack.c.bf16 %v2436, %v1208
      %v2511 = vpack.c.bf16 %v2427, %v1209
      %v2512 = vpack.c.bf16 %v2456, %v2456
      %v2513 = vpack.c.bf16 %v2474, %v2474
      %v2514 = vpack.c.bf16 %v2475, %v2475
      %v2515 = vpack.c.bf16 %v2476, %v2476
      %v2516 = vpack.c.bf16 %v2477, %v2477
      %v2517 = vpack.c.bf16 %v2478, %v2478
      %v2518 = vpack.c.bf16 %v2479, %v2479
      %v2519 = vpack.c.bf16 %v2480, %v2480
      %v2520 = vpack.c.bf16 %v2481, %v2481
      %v2521 = vld [vmem:[%s7] sm:$0xff]
      %v2522 = vld [vmem:[%s7 + $0x8] sm:$0xff]
      %v2523 = vld [vmem:[%s7 + $0x10] sm:$0xff]
      %v2524 = vld [vmem:[%s7 + $0x18] sm:$0xff]
      %v2525 = vld [vmem:[%s7 + $0x20] sm:$0xff]
      %v2526 = vld [vmem:[%s7 + $0x28] sm:$0xff]
      %v2527 = vld [vmem:[%s7 + $0x30] sm:$0xff]
      %v2528 = vld [vmem:[%s7 + $0x38] sm:$0xff]
      %v2529 = vld [vmem:[%s7 + $0x40] sm:$0xff]
      %v2530 = vld [vmem:[%s7 + $0x48] sm:$0xff]
      %v2531 = vld [vmem:[%s7 + $0x50] sm:$0xff]
      %v2532 = vld [vmem:[%s7 + $0x58] sm:$0xff]
      %2534 = vset.pattern.permute.xlu0 0
      %2535 = vperm.xlu0 %2534, %v2521
      %v2536 = vpop.permute.xlu0 %2535
      %2539 = vset.pattern.permute.xlu0 0
      %2540 = vperm.xlu0 %2539, %v2522
      %v2541 = vpop.permute.xlu0 %2540
      %2544 = vset.pattern.permute.xlu0 0
      %2545 = vperm.xlu0 %2544, %v2523
      %v2546 = vpop.permute.xlu0 %2545
      %2549 = vset.pattern.permute.xlu0 0
      %2550 = vperm.xlu0 %2549, %v2524
      %v2551 = vpop.permute.xlu0 %2550
      %2554 = vset.pattern.permute.xlu0 0
      %2555 = vperm.xlu0 %2554, %v2525
      %v2556 = vpop.permute.xlu0 %2555
      %2559 = vset.pattern.permute.xlu0 0
      %2560 = vperm.xlu0 %2559, %v2526
      %v2561 = vpop.permute.xlu0 %2560
      %2564 = vset.pattern.permute.xlu0 0
      %2565 = vperm.xlu0 %2564, %v2527
      %v2566 = vpop.permute.xlu0 %2565
      %2569 = vset.pattern.permute.xlu0 0
      %2570 = vperm.xlu0 %2569, %v2528
      %v2571 = vpop.permute.xlu0 %2570
      %2574 = vset.pattern.permute.xlu0 0
      %2575 = vperm.xlu0 %2574, %v2529
      %v2576 = vpop.permute.xlu0 %2575
      %2579 = vset.pattern.permute.xlu0 0
      %2580 = vperm.xlu0 %2579, %v2530
      %v2581 = vpop.permute.xlu0 %2580
      %2584 = vset.pattern.permute.xlu0 0
      %2585 = vperm.xlu0 %2584, %v2531
      %v2586 = vpop.permute.xlu0 %2585
      %2589 = vset.pattern.permute.xlu0 0
      %2590 = vperm.xlu0 %2589, %v2532
      %v2591 = vpop.permute.xlu0 %2590
      %v2605 = vunpack.c.l.b16 %v2491
      %v2606 = vunpack.c.l.b16 %v2492
      %v2607 = vunpack.c.l.b16 %v2493
      %v2608 = vunpack.c.l.b16 %v2494
      %v2609 = vunpack.c.l.b16 %v2495
      %v2610 = vunpack.c.l.b16 %v2496
      %v2611 = vunpack.c.l.b16 %v2497
      %v2612 = vunpack.c.l.b16 %v2498
      %v2613 = vunpack.c.l.b16 %v2499
      %v2614 = vunpack.c.l.b16 %v2500
      %v2615 = vunpack.c.l.b16 %v2501
      %v2616 = vunpack.c.l.b16 %v2502
      %v2617 = vpack.c.b16 %v2606, %v2605
      %v2618 = vpack.c.b16 %v2608, %v2607
      %v2619 = vpack.c.b16 %v2610, %v2609
      %v2620 = vpack.c.b16 %v2612, %v2611
      %v2621 = vpack.c.b16 %v2614, %v2613
      %v2622 = vpack.c.b16 %v2616, %v2615
      %2641 = vrot.lane.b32.xlu0 %v2503, 99
      %v2642 = vpop.permute.xlu0 %2641
      %2643 = vrot.lane.b32.xlu0 %v2504, 99
      %v2644 = vpop.permute.xlu0 %2643
      %2645 = vrot.lane.b32.xlu0 %v2505, 99
      %v2646 = vpop.permute.xlu0 %2645
      %2647 = vrot.lane.b32.xlu0 %v2506, 99
      %v2648 = vpop.permute.xlu0 %2647
      %2649 = vrot.lane.b32.xlu0 %v2507, 99
      %v2650 = vpop.permute.xlu0 %2649
      %2651 = vrot.lane.b32.xlu0 %v2508, 99
      %v2652 = vpop.permute.xlu0 %2651
      %2653 = vrot.lane.b32.xlu0 %v2509, 99
      %v2654 = vpop.permute.xlu0 %2653
      %2655 = vrot.lane.b32.xlu0 %v2510, 99
      %v2656 = vpop.permute.xlu0 %2655
      %2657 = vrot.lane.b32.xlu0 %v2511, 99
      %v2658 = vpop.permute.xlu0 %2657
      %2659 = vrot.lane.b32.xlu0 %v2512, 99
      %v2660 = vpop.permute.xlu0 %2659
      %2661 = vrot.lane.b32.xlu0 %v2513, 99
      %v2662 = vpop.permute.xlu0 %2661
      %2663 = vrot.lane.b32.xlu0 %v2514, 99
      %v2664 = vpop.permute.xlu0 %2663
      %2665 = vrot.lane.b32.xlu0 %v2515, 99
      %v2666 = vpop.permute.xlu0 %2665
      %2667 = vrot.lane.b32.xlu0 %v2516, 99
      %v2668 = vpop.permute.xlu0 %2667
      %2669 = vrot.lane.b32.xlu0 %v2517, 99
      %v2670 = vpop.permute.xlu0 %2669
      %2671 = vrot.lane.b32.xlu0 %v2518, 99
      %v2672 = vpop.permute.xlu0 %2671
      %2673 = vrot.lane.b32.xlu0 %v2519, 99
      %v2674 = vpop.permute.xlu0 %2673
      %2675 = vrot.lane.b32.xlu0 %v2520, 99
      %v2676 = vpop.permute.xlu0 %2675
      %vm2677 = vcmask 809984
      %v2678 = vsel %vm2677, %v2642, %v2644
      %v2679 = vsel %vm2677, %v2644, %v2646
      %v2680 = vsel %vm2677, %v2646, %v2648
      %v2681 = vsel %vm2677, %v2648, %v2650
      %v2682 = vsel %vm2677, %v2650, %v2652
      %v2683 = vsel %vm2677, %v2652, %v2654
      %v2684 = vsel %vm2677, %v2654, %v2656
      %v2685 = vsel %vm2677, %v2656, %v2658
      %v2686 = vsel %vm2677, %v2660, %v2662
      %v2687 = vsel %vm2677, %v2662, %v2664
      %v2688 = vsel %vm2677, %v2664, %v2666
      %v2689 = vsel %vm2677, %v2666, %v2668
      %v2690 = vsel %vm2677, %v2668, %v2670
      %v2691 = vsel %vm2677, %v2670, %v2672
      %v2692 = vsel %vm2677, %v2672, %v2674
      %v2693 = vsel %vm2677, %v2674, %v2676
      %vm2702 = vcmask 195584
      %v2704 = vsel %vm2702, %v2617, 0
      %v2707 = vsel %vm2702, %v2618, 0
      %v2710 = vsel %vm2702, %v2619, 0
      %v2713 = vsel %vm2702, %v2620, 0
      %v2716 = vsel %vm2702, %v2621, 0
      %v2719 = vsel %vm2702, %v2622, 0
      %vm2721 = vcmask 1043456
      %v2723 = vsel %vm2721, %v2686, 0
      %v2726 = vsel %vm2721, %v2687, 0
      %v2729 = vsel %vm2721, %v2688, 0
      %v2732 = vsel %vm2721, %v2689, 0
      %v2735 = vsel %vm2721, %v2690, 0
      %v2738 = vsel %vm2721, %v2691, 0
      %v2741 = vsel %vm2721, %v2692, 0
      %v2744 = vsel %vm2721, %v2693, 0
      %2746 = vmatpush.bf16.msra.mxu0 0
      %2747 = vmatpush.bf16.msra.mxu0 0
      %2748 = vmatpush.bf16.msra.mxu0 0
      %2749 = vmatpush.bf16.msra.mxu0 0
      %2750 = vmatpush.bf16.msra.mxu0 0
      %2751 = vmatpush.bf16.msra.mxu0 0
      %2752 = vmatpush.bf16.msra.mxu0 %v2723
      %2753 = vmatpush.bf16.msra.mxu0 %v2678
      %2754 = vmatmul.bf16.gmra.mxu0 %v2704
      %v2755 = vpop.f32.mrf.mxu0
      %v2756 = vadd.f32 %v2536, %v2755
      %v2757 = vpop.f32.mrf.mxu0
      %v2758 = vadd.f32 %v2541, %v2757
      %2759 = vmatmul.bf16.gmra.mxu0 %v2707
      %v2760 = vpop.f32.mrf.mxu0
      %v2761 = vadd.f32 %v2546, %v2760
      %v2762 = vpop.f32.mrf.mxu0
      %v2763 = vadd.f32 %v2551, %v2762
      %2764 = vmatmul.bf16.gmra.mxu0 %v2710
      %v2765 = vpop.f32.mrf.mxu0
      %v2766 = vadd.f32 %v2556, %v2765
      %v2767 = vpop.f32.mrf.mxu0
      %v2768 = vadd.f32 %v2561, %v2767
      %2769 = vmatmul.bf16.gmra.mxu0 %v2713
      %v2770 = vpop.f32.mrf.mxu0
      %v2771 = vadd.f32 %v2566, %v2770
      %v2772 = vpop.f32.mrf.mxu0
      %v2773 = vadd.f32 %v2571, %v2772
      %2774 = vmatmul.bf16.gmra.mxu0 %v2716
      %v2775 = vpop.f32.mrf.mxu0
      %v2776 = vadd.f32 %v2576, %v2775
      %v2777 = vpop.f32.mrf.mxu0
      %v2778 = vadd.f32 %v2581, %v2777
      %2779 = vmatmul.bf16.gmra.mxu0 %v2719
      %v2780 = vpop.f32.mrf.mxu0
      %v2781 = vadd.f32 %v2586, %v2780
      %v2782 = vpop.f32.mrf.mxu0
      %v2783 = vadd.f32 %v2591, %v2782
      %2784 = vdwg.mxu0
      %2785 = vmatpush.bf16.msra.mxu0 0
      %2786 = vmatpush.bf16.msra.mxu0 0
      %2787 = vmatpush.bf16.msra.mxu0 0
      %2788 = vmatpush.bf16.msra.mxu0 0
      %2789 = vmatpush.bf16.msra.mxu0 0
      %2790 = vmatpush.bf16.msra.mxu0 0
      %2791 = vmatpush.bf16.msra.mxu0 %v2726
      %2792 = vmatpush.bf16.msra.mxu0 %v2679
      %2793 = vmatmul.bf16.gmra.mxu0 %v2704
      %v2794 = vpop.f32.mrf.mxu0
      %v2795 = vadd.f32 %v2536, %v2794
      %v2796 = vpop.f32.mrf.mxu0
      %v2797 = vadd.f32 %v2541, %v2796
      %2798 = vmatmul.bf16.gmra.mxu0 %v2707
      %v2799 = vpop.f32.mrf.mxu0
      %v2800 = vadd.f32 %v2546, %v2799
      %v2801 = vpop.f32.mrf.mxu0
      %v2802 = vadd.f32 %v2551, %v2801
      %2803 = vmatmul.bf16.gmra.mxu0 %v2710
      %v2804 = vpop.f32.mrf.mxu0
      %v2805 = vadd.f32 %v2556, %v2804
      %v2806 = vpop.f32.mrf.mxu0
      %v2807 = vadd.f32 %v2561, %v2806
      %2808 = vmatmul.bf16.gmra.mxu0 %v2713
      %v2809 = vpop.f32.mrf.mxu0
      %v2810 = vadd.f32 %v2566, %v2809
      %v2811 = vpop.f32.mrf.mxu0
      %v2812 = vadd.f32 %v2571, %v2811
      %2813 = vmatmul.bf16.gmra.mxu0 %v2716
      %v2814 = vpop.f32.mrf.mxu0
      %v2815 = vadd.f32 %v2576, %v2814
      %v2816 = vpop.f32.mrf.mxu0
      %v2817 = vadd.f32 %v2581, %v2816
      %2818 = vmatmul.bf16.gmra.mxu0 %v2719
      %v2819 = vpop.f32.mrf.mxu0
      %v2820 = vadd.f32 %v2586, %v2819
      %v2821 = vpop.f32.mrf.mxu0
      %v2822 = vadd.f32 %v2591, %v2821
      %2823 = vdwg.mxu0
      %2824 = vmatpush.bf16.msra.mxu0 0
      %2825 = vmatpush.bf16.msra.mxu0 0
      %2826 = vmatpush.bf16.msra.mxu0 0
      %2827 = vmatpush.bf16.msra.mxu0 0
      %2828 = vmatpush.bf16.msra.mxu0 0
      %2829 = vmatpush.bf16.msra.mxu0 0
      %2830 = vmatpush.bf16.msra.mxu0 %v2729
      %2831 = vmatpush.bf16.msra.mxu0 %v2680
      %2832 = vmatmul.bf16.gmra.mxu0 %v2704
      %v2833 = vpop.f32.mrf.mxu0
      %v2834 = vadd.f32 %v2536, %v2833
      %v2835 = vpop.f32.mrf.mxu0
      %v2836 = vadd.f32 %v2541, %v2835
      %2837 = vmatmul.bf16.gmra.mxu0 %v2707
      %v2838 = vpop.f32.mrf.mxu0
      %v2839 = vadd.f32 %v2546, %v2838
      %v2840 = vpop.f32.mrf.mxu0
      %v2841 = vadd.f32 %v2551, %v2840
      %2842 = vmatmul.bf16.gmra.mxu0 %v2710
      %v2843 = vpop.f32.mrf.mxu0
      %v2844 = vadd.f32 %v2556, %v2843
      %v2845 = vpop.f32.mrf.mxu0
      %v2846 = vadd.f32 %v2561, %v2845
      %2847 = vmatmul.bf16.gmra.mxu0 %v2713
      %v2848 = vpop.f32.mrf.mxu0
      %v2849 = vadd.f32 %v2566, %v2848
      %v2850 = vpop.f32.mrf.mxu0
      %v2851 = vadd.f32 %v2571, %v2850
      %2852 = vmatmul.bf16.gmra.mxu0 %v2716
      %v2853 = vpop.f32.mrf.mxu0
      %v2854 = vadd.f32 %v2576, %v2853
      %v2855 = vpop.f32.mrf.mxu0
      %v2856 = vadd.f32 %v2581, %v2855
      %2857 = vmatmul.bf16.gmra.mxu0 %v2719
      %v2858 = vpop.f32.mrf.mxu0
      %v2859 = vadd.f32 %v2586, %v2858
      %v2860 = vpop.f32.mrf.mxu0
      %v2861 = vadd.f32 %v2591, %v2860
      %2862 = vdwg.mxu0
      %2863 = vmatpush.bf16.msra.mxu0 0
      %2864 = vmatpush.bf16.msra.mxu0 0
      %2865 = vmatpush.bf16.msra.mxu0 0
      %2866 = vmatpush.bf16.msra.mxu0 0
      %2867 = vmatpush.bf16.msra.mxu0 0
      %2868 = vmatpush.bf16.msra.mxu0 0
      %2869 = vmatpush.bf16.msra.mxu0 %v2732
      %2870 = vmatpush.bf16.msra.mxu0 %v2681
      %2871 = vmatmul.bf16.gmra.mxu0 %v2704
      %v2872 = vpop.f32.mrf.mxu0
      %v2873 = vadd.f32 %v2536, %v2872
      %v2874 = vpop.f32.mrf.mxu0
      %v2875 = vadd.f32 %v2541, %v2874
      %2876 = vmatmul.bf16.gmra.mxu0 %v2707
      %v2877 = vpop.f32.mrf.mxu0
      %v2878 = vadd.f32 %v2546, %v2877
      %v2879 = vpop.f32.mrf.mxu0
      %v2880 = vadd.f32 %v2551, %v2879
      %2881 = vmatmul.bf16.gmra.mxu0 %v2710
      %v2882 = vpop.f32.mrf.mxu0
      %v2883 = vadd.f32 %v2556, %v2882
      %v2884 = vpop.f32.mrf.mxu0
      %v2885 = vadd.f32 %v2561, %v2884
      %2886 = vmatmul.bf16.gmra.mxu0 %v2713
      %v2887 = vpop.f32.mrf.mxu0
      %v2888 = vadd.f32 %v2566, %v2887
      %v2889 = vpop.f32.mrf.mxu0
      %v2890 = vadd.f32 %v2571, %v2889
      %2891 = vmatmul.bf16.gmra.mxu0 %v2716
      %v2892 = vpop.f32.mrf.mxu0
      %v2893 = vadd.f32 %v2576, %v2892
      %v2894 = vpop.f32.mrf.mxu0
      %v2895 = vadd.f32 %v2581, %v2894
      %2896 = vmatmul.bf16.gmra.mxu0 %v2719
      %v2897 = vpop.f32.mrf.mxu0
      %v2898 = vadd.f32 %v2586, %v2897
      %v2899 = vpop.f32.mrf.mxu0
      %v2900 = vadd.f32 %v2591, %v2899
      %2901 = vdwg.mxu0
      %2902 = vmatpush.bf16.msra.mxu0 0
      %2903 = vmatpush.bf16.msra.mxu0 0
      %2904 = vmatpush.bf16.msra.mxu0 0
      %2905 = vmatpush.bf16.msra.mxu0 0
      %2906 = vmatpush.bf16.msra.mxu0 0
      %2907 = vmatpush.bf16.msra.mxu0 0
      %2908 = vmatpush.bf16.msra.mxu0 %v2735
      %2909 = vmatpush.bf16.msra.mxu0 %v2682
      %2910 = vmatmul.bf16.gmra.mxu0 %v2704
      %v2911 = vpop.f32.mrf.mxu0
      %v2912 = vadd.f32 %v2536, %v2911
      %v2913 = vpop.f32.mrf.mxu0
      %v2914 = vadd.f32 %v2541, %v2913
      %2915 = vmatmul.bf16.gmra.mxu0 %v2707
      %v2916 = vpop.f32.mrf.mxu0
      %v2917 = vadd.f32 %v2546, %v2916
      %v2918 = vpop.f32.mrf.mxu0
      %v2919 = vadd.f32 %v2551, %v2918
      %2920 = vmatmul.bf16.gmra.mxu0 %v2710
      %v2921 = vpop.f32.mrf.mxu0
      %v2922 = vadd.f32 %v2556, %v2921
      %v2923 = vpop.f32.mrf.mxu0
      %v2924 = vadd.f32 %v2561, %v2923
      %2925 = vmatmul.bf16.gmra.mxu0 %v2713
      %v2926 = vpop.f32.mrf.mxu0
      %v2927 = vadd.f32 %v2566, %v2926
      %v2928 = vpop.f32.mrf.mxu0
      %v2929 = vadd.f32 %v2571, %v2928
      %2930 = vmatmul.bf16.gmra.mxu0 %v2716
      %v2931 = vpop.f32.mrf.mxu0
      %v2932 = vadd.f32 %v2576, %v2931
      %v2933 = vpop.f32.mrf.mxu0
      %v2934 = vadd.f32 %v2581, %v2933
      %2935 = vmatmul.bf16.gmra.mxu0 %v2719
      %v2936 = vpop.f32.mrf.mxu0
      %v2937 = vadd.f32 %v2586, %v2936
      %v2938 = vpop.f32.mrf.mxu0
      %v2939 = vadd.f32 %v2591, %v2938
      %2940 = vdwg.mxu0
      %2941 = vmatpush.bf16.msra.mxu0 0
      %2942 = vmatpush.bf16.msra.mxu0 0
      %2943 = vmatpush.bf16.msra.mxu0 0
      %2944 = vmatpush.bf16.msra.mxu0 0
      %2945 = vmatpush.bf16.msra.mxu0 0
      %2946 = vmatpush.bf16.msra.mxu0 0
      %2947 = vmatpush.bf16.msra.mxu0 %v2738
      %2948 = vmatpush.bf16.msra.mxu0 %v2683
      %2949 = vmatmul.bf16.gmra.mxu0 %v2704
      %v2950 = vpop.f32.mrf.mxu0
      %v2951 = vadd.f32 %v2536, %v2950
      %v2952 = vpop.f32.mrf.mxu0
      %v2953 = vadd.f32 %v2541, %v2952
      %2954 = vmatmul.bf16.gmra.mxu0 %v2707
      %v2955 = vpop.f32.mrf.mxu0
      %v2956 = vadd.f32 %v2546, %v2955
      %v2957 = vpop.f32.mrf.mxu0
      %v2958 = vadd.f32 %v2551, %v2957
      %2959 = vmatmul.bf16.gmra.mxu0 %v2710
      %v2960 = vpop.f32.mrf.mxu0
      %v2961 = vadd.f32 %v2556, %v2960
      %v2962 = vpop.f32.mrf.mxu0
      %v2963 = vadd.f32 %v2561, %v2962
      %2964 = vmatmul.bf16.gmra.mxu0 %v2713
      %v2965 = vpop.f32.mrf.mxu0
      %v2966 = vadd.f32 %v2566, %v2965
      %v2967 = vpop.f32.mrf.mxu0
      %v2968 = vadd.f32 %v2571, %v2967
      %2969 = vmatmul.bf16.gmra.mxu0 %v2716
      %v2970 = vpop.f32.mrf.mxu0
      %v2971 = vadd.f32 %v2576, %v2970
      %v2972 = vpop.f32.mrf.mxu0
      %v2973 = vadd.f32 %v2581, %v2972
      %2974 = vmatmul.bf16.gmra.mxu0 %v2719
      %v2975 = vpop.f32.mrf.mxu0
      %v2976 = vadd.f32 %v2586, %v2975
      %v2977 = vpop.f32.mrf.mxu0
      %v2978 = vadd.f32 %v2591, %v2977
      %2979 = vdwg.mxu0
      %2980 = vmatpush.bf16.msra.mxu0 0
      %2981 = vmatpush.bf16.msra.mxu0 0
      %2982 = vmatpush.bf16.msra.mxu0 0
      %2983 = vmatpush.bf16.msra.mxu0 0
      %2984 = vmatpush.bf16.msra.mxu0 0
      %2985 = vmatpush.bf16.msra.mxu0 0
      %2986 = vmatpush.bf16.msra.mxu0 %v2741
      %2987 = vmatpush.bf16.msra.mxu0 %v2684
      %2988 = vmatmul.bf16.gmra.mxu0 %v2704
      %v2989 = vpop.f32.mrf.mxu0
      %v2990 = vadd.f32 %v2536, %v2989
      %v2991 = vpop.f32.mrf.mxu0
      %v2992 = vadd.f32 %v2541, %v2991
      %2993 = vmatmul.bf16.gmra.mxu0 %v2707
      %v2994 = vpop.f32.mrf.mxu0
      %v2995 = vadd.f32 %v2546, %v2994
      %v2996 = vpop.f32.mrf.mxu0
      %v2997 = vadd.f32 %v2551, %v2996
      %2998 = vmatmul.bf16.gmra.mxu0 %v2710
      %v2999 = vpop.f32.mrf.mxu0
      %v3000 = vadd.f32 %v2556, %v2999
      %v3001 = vpop.f32.mrf.mxu0
      %v3002 = vadd.f32 %v2561, %v3001
      %3003 = vmatmul.bf16.gmra.mxu0 %v2713
      %v3004 = vpop.f32.mrf.mxu0
      %v3005 = vadd.f32 %v2566, %v3004
      %v3006 = vpop.f32.mrf.mxu0
      %v3007 = vadd.f32 %v2571, %v3006
      %3008 = vmatmul.bf16.gmra.mxu0 %v2716
      %v3009 = vpop.f32.mrf.mxu0
      %v3010 = vadd.f32 %v2576, %v3009
      %v3011 = vpop.f32.mrf.mxu0
      %v3012 = vadd.f32 %v2581, %v3011
      %3013 = vmatmul.bf16.gmra.mxu0 %v2719
      %v3014 = vpop.f32.mrf.mxu0
      %v3015 = vadd.f32 %v2586, %v3014
      %v3016 = vpop.f32.mrf.mxu0
      %v3017 = vadd.f32 %v2591, %v3016
      %3018 = vdwg.mxu0
      %3019 = vmatpush.bf16.msra.mxu0 0
      %3020 = vmatpush.bf16.msra.mxu0 0
      %3021 = vmatpush.bf16.msra.mxu0 0
      %3022 = vmatpush.bf16.msra.mxu0 0
      %3023 = vmatpush.bf16.msra.mxu0 0
      %3024 = vmatpush.bf16.msra.mxu0 0
      %3025 = vmatpush.bf16.msra.mxu0 %v2744
      %3026 = vmatpush.bf16.msra.mxu0 %v2685
      %3027 = vmatmul.bf16.gmra.mxu0 %v2704
      %v3028 = vpop.f32.mrf.mxu0
      %v3029 = vadd.f32 %v2536, %v3028
      %v3030 = vpop.f32.mrf.mxu0
      %v3031 = vadd.f32 %v2541, %v3030
      %3032 = vmatmul.bf16.gmra.mxu0 %v2707
      %v3033 = vpop.f32.mrf.mxu0
      %v3034 = vadd.f32 %v2546, %v3033
      %v3035 = vpop.f32.mrf.mxu0
      %v3036 = vadd.f32 %v2551, %v3035
      %3037 = vmatmul.bf16.gmra.mxu0 %v2710
      %v3038 = vpop.f32.mrf.mxu0
      %v3039 = vadd.f32 %v2556, %v3038
      %v3040 = vpop.f32.mrf.mxu0
      %v3041 = vadd.f32 %v2561, %v3040
      %3042 = vmatmul.bf16.gmra.mxu0 %v2713
      %v3043 = vpop.f32.mrf.mxu0
      %v3044 = vadd.f32 %v2566, %v3043
      %v3045 = vpop.f32.mrf.mxu0
      %v3046 = vadd.f32 %v2571, %v3045
      %3047 = vmatmul.bf16.gmra.mxu0 %v2716
      %v3048 = vpop.f32.mrf.mxu0
      %v3049 = vadd.f32 %v2576, %v3048
      %v3050 = vpop.f32.mrf.mxu0
      %v3051 = vadd.f32 %v2581, %v3050
      %3052 = vmatmul.bf16.gmra.mxu0 %v2719
      %v3053 = vpop.f32.mrf.mxu0
      %v3054 = vadd.f32 %v2586, %v3053
      %v3055 = vpop.f32.mrf.mxu0
      %v3056 = vadd.f32 %v2591, %v3055
      %3057 = vdwg.mxu0
      %v3058 = vmax.f32 %v2756, 0.0
      %v3059 = vmax.f32 %v2795, 0.0
      %v3060 = vmax.f32 %v2834, 0.0
      %v3061 = vmax.f32 %v2873, 0.0
      %v3062 = vmax.f32 %v2912, 0.0
      %v3063 = vmax.f32 %v2951, 0.0
      %v3064 = vmax.f32 %v2990, 0.0
      %v3065 = vmax.f32 %v3029, 0.0
      %v3066 = vmax.f32 %v2758, 0.0
      %v3067 = vmax.f32 %v2797, 0.0
      %v3068 = vmax.f32 %v2836, 0.0
      %v3069 = vmax.f32 %v2875, 0.0
      %v3070 = vmax.f32 %v2914, 0.0
      %v3071 = vmax.f32 %v2953, 0.0
      %v3072 = vmax.f32 %v2992, 0.0
      %v3073 = vmax.f32 %v3031, 0.0
      %v3074 = vmax.f32 %v2761, 0.0
      %v3075 = vmax.f32 %v2800, 0.0
      %v3076 = vmax.f32 %v2839, 0.0
      %v3077 = vmax.f32 %v2878, 0.0
      %v3078 = vmax.f32 %v2917, 0.0
      %v3079 = vmax.f32 %v2956, 0.0
      %v3080 = vmax.f32 %v2995, 0.0
      %v3081 = vmax.f32 %v3034, 0.0
      %v3082 = vmax.f32 %v2763, 0.0
      %v3083 = vmax.f32 %v2802, 0.0
      %v3084 = vmax.f32 %v2841, 0.0
      %v3085 = vmax.f32 %v2880, 0.0
      %v3086 = vmax.f32 %v2919, 0.0
      %v3087 = vmax.f32 %v2958, 0.0
      %v3088 = vmax.f32 %v2997, 0.0
      %v3089 = vmax.f32 %v3036, 0.0
      %v3090 = vmax.f32 %v2766, 0.0
      %v3091 = vmax.f32 %v2805, 0.0
      %v3092 = vmax.f32 %v2844, 0.0
      %v3093 = vmax.f32 %v2883, 0.0
      %v3094 = vmax.f32 %v2922, 0.0
      %v3095 = vmax.f32 %v2961, 0.0
      %v3096 = vmax.f32 %v3000, 0.0
      %v3097 = vmax.f32 %v3039, 0.0
      %v3098 = vmax.f32 %v2768, 0.0
      %v3099 = vmax.f32 %v2807, 0.0
      %v3100 = vmax.f32 %v2846, 0.0
      %v3101 = vmax.f32 %v2885, 0.0
      %v3102 = vmax.f32 %v2924, 0.0
      %v3103 = vmax.f32 %v2963, 0.0
      %v3104 = vmax.f32 %v3002, 0.0
      %v3105 = vmax.f32 %v3041, 0.0
      %v3106 = vmax.f32 %v2771, 0.0
      %v3107 = vmax.f32 %v2810, 0.0
      %v3108 = vmax.f32 %v2849, 0.0
      %v3109 = vmax.f32 %v2888, 0.0
      %v3110 = vmax.f32 %v2927, 0.0
      %v3111 = vmax.f32 %v2966, 0.0
      %v3112 = vmax.f32 %v3005, 0.0
      %v3113 = vmax.f32 %v3044, 0.0
      %v3114 = vmax.f32 %v2773, 0.0
      %v3115 = vmax.f32 %v2812, 0.0
      %v3116 = vmax.f32 %v2851, 0.0
      %v3117 = vmax.f32 %v2890, 0.0
      %v3118 = vmax.f32 %v2929, 0.0
      %v3119 = vmax.f32 %v2968, 0.0
      %v3120 = vmax.f32 %v3007, 0.0
      %v3121 = vmax.f32 %v3046, 0.0
      %v3122 = vmax.f32 %v2776, 0.0
      %v3123 = vmax.f32 %v2815, 0.0
      %v3124 = vmax.f32 %v2854, 0.0
      %v3125 = vmax.f32 %v2893, 0.0
      %v3126 = vmax.f32 %v2932, 0.0
      %v3127 = vmax.f32 %v2971, 0.0
      %v3128 = vmax.f32 %v3010, 0.0
      %v3129 = vmax.f32 %v3049, 0.0
      %v3130 = vmax.f32 %v2778, 0.0
      %v3131 = vmax.f32 %v2817, 0.0
      %v3132 = vmax.f32 %v2856, 0.0
      %v3133 = vmax.f32 %v2895, 0.0
      %v3134 = vmax.f32 %v2934, 0.0
      %v3135 = vmax.f32 %v2973, 0.0
      %v3136 = vmax.f32 %v3012, 0.0
      %v3137 = vmax.f32 %v3051, 0.0
      %v3138 = vmax.f32 %v2781, 0.0
      %v3139 = vmax.f32 %v2820, 0.0
      %v3140 = vmax.f32 %v2859, 0.0
      %v3141 = vmax.f32 %v2898, 0.0
      %v3142 = vmax.f32 %v2937, 0.0
      %v3143 = vmax.f32 %v2976, 0.0
      %v3144 = vmax.f32 %v3015, 0.0
      %v3145 = vmax.f32 %v3054, 0.0
      %v3146 = vmax.f32 %v2783, 0.0
      %v3147 = vmax.f32 %v2822, 0.0
      %v3148 = vmax.f32 %v2861, 0.0
      %v3149 = vmax.f32 %v2900, 0.0
      %v3150 = vmax.f32 %v2939, 0.0
      %v3151 = vmax.f32 %v2978, 0.0
      %v3152 = vmax.f32 %v3017, 0.0
      %v3153 = vmax.f32 %v3056, 0.0
      %v3154 = vmin.f32 %v3058, 6.0
      %v3155 = vmin.f32 %v3059, 6.0
      %v3156 = vmin.f32 %v3060, 6.0
      %v3157 = vmin.f32 %v3061, 6.0
      %v3158 = vmin.f32 %v3062, 6.0
      %v3159 = vmin.f32 %v3063, 6.0
      %v3160 = vmin.f32 %v3064, 6.0
      %v3161 = vmin.f32 %v3065, 6.0
      %v3162 = vmin.f32 %v3066, 6.0
      %v3163 = vmin.f32 %v3067, 6.0
      %v3164 = vmin.f32 %v3068, 6.0
      %v3165 = vmin.f32 %v3069, 6.0
      %v3166 = vmin.f32 %v3070, 6.0
      %v3167 = vmin.f32 %v3071, 6.0
      %v3168 = vmin.f32 %v3072, 6.0
      %v3169 = vmin.f32 %v3073, 6.0
      %v3170 = vmin.f32 %v3074, 6.0
      %v3171 = vmin.f32 %v3075, 6.0
      %v3172 = vmin.f32 %v3076, 6.0
      %v3173 = vmin.f32 %v3077, 6.0
      %v3174 = vmin.f32 %v3078, 6.0
      %v3175 = vmin.f32 %v3079, 6.0
      %v3176 = vmin.f32 %v3080, 6.0
      %v3177 = vmin.f32 %v3081, 6.0
      %v3178 = vmin.f32 %v3082, 6.0
      %v3179 = vmin.f32 %v3083, 6.0
      %v3180 = vmin.f32 %v3084, 6.0
      %v3181 = vmin.f32 %v3085, 6.0
      %v3182 = vmin.f32 %v3086, 6.0
      %v3183 = vmin.f32 %v3087, 6.0
      %v3184 = vmin.f32 %v3088, 6.0
      %v3185 = vmin.f32 %v3089, 6.0
      %v3186 = vmin.f32 %v3090, 6.0
      %v3187 = vmin.f32 %v3091, 6.0
      %v3188 = vmin.f32 %v3092, 6.0
      %v3189 = vmin.f32 %v3093, 6.0
      %v3190 = vmin.f32 %v3094, 6.0
      %v3191 = vmin.f32 %v3095, 6.0
      %v3192 = vmin.f32 %v3096, 6.0
      %v3193 = vmin.f32 %v3097, 6.0
      %v3194 = vmin.f32 %v3098, 6.0
      %v3195 = vmin.f32 %v3099, 6.0
      %v3196 = vmin.f32 %v3100, 6.0
      %v3197 = vmin.f32 %v3101, 6.0
      %v3198 = vmin.f32 %v3102, 6.0
      %v3199 = vmin.f32 %v3103, 6.0
      %v3200 = vmin.f32 %v3104, 6.0
      %v3201 = vmin.f32 %v3105, 6.0
      %v3202 = vmin.f32 %v3106, 6.0
      %v3203 = vmin.f32 %v3107, 6.0
      %v3204 = vmin.f32 %v3108, 6.0
      %v3205 = vmin.f32 %v3109, 6.0
      %v3206 = vmin.f32 %v3110, 6.0
      %v3207 = vmin.f32 %v3111, 6.0
      %v3208 = vmin.f32 %v3112, 6.0
      %v3209 = vmin.f32 %v3113, 6.0
      %v3210 = vmin.f32 %v3114, 6.0
      %v3211 = vmin.f32 %v3115, 6.0
      %v3212 = vmin.f32 %v3116, 6.0
      %v3213 = vmin.f32 %v3117, 6.0
      %v3214 = vmin.f32 %v3118, 6.0
      %v3215 = vmin.f32 %v3119, 6.0
      %v3216 = vmin.f32 %v3120, 6.0
      %v3217 = vmin.f32 %v3121, 6.0
      %v3218 = vmin.f32 %v3122, 6.0
      %v3219 = vmin.f32 %v3123, 6.0
      %v3220 = vmin.f32 %v3124, 6.0
      %v3221 = vmin.f32 %v3125, 6.0
      %v3222 = vmin.f32 %v3126, 6.0
      %v3223 = vmin.f32 %v3127, 6.0
      %v3224 = vmin.f32 %v3128, 6.0
      %v3225 = vmin.f32 %v3129, 6.0
      %v3226 = vmin.f32 %v3130, 6.0
      %v3227 = vmin.f32 %v3131, 6.0
      %v3228 = vmin.f32 %v3132, 6.0
      %v3229 = vmin.f32 %v3133, 6.0
      %v3230 = vmin.f32 %v3134, 6.0
      %v3231 = vmin.f32 %v3135, 6.0
      %v3232 = vmin.f32 %v3136, 6.0
      %v3233 = vmin.f32 %v3137, 6.0
      %v3234 = vmin.f32 %v3138, 6.0
      %v3235 = vmin.f32 %v3139, 6.0
      %v3236 = vmin.f32 %v3140, 6.0
      %v3237 = vmin.f32 %v3141, 6.0
      %v3238 = vmin.f32 %v3142, 6.0
      %v3239 = vmin.f32 %v3143, 6.0
      %v3240 = vmin.f32 %v3144, 6.0
      %v3241 = vmin.f32 %v3145, 6.0
      %v3242 = vmin.f32 %v3146, 6.0
      %v3243 = vmin.f32 %v3147, 6.0
      %v3244 = vmin.f32 %v3148, 6.0
      %v3245 = vmin.f32 %v3149, 6.0
      %v3246 = vmin.f32 %v3150, 6.0
      %v3247 = vmin.f32 %v3151, 6.0
      %v3248 = vmin.f32 %v3152, 6.0
      %v3249 = vmin.f32 %v3153, 6.0
      %v3250 = vadd.f32 %v3154, %v3186
      %v3251 = vadd.f32 %v3155, %v3187
      %v3252 = vadd.f32 %v3156, %v3188
      %v3253 = vadd.f32 %v3157, %v3189
      %v3254 = vadd.f32 %v3158, %v3190
      %v3255 = vadd.f32 %v3159, %v3191
      %v3256 = vadd.f32 %v3160, %v3192
      %v3257 = vadd.f32 %v3161, %v3193
      %v3258 = vadd.f32 %v3162, %v3194
      %v3259 = vadd.f32 %v3163, %v3195
      %v3260 = vadd.f32 %v3164, %v3196
      %v3261 = vadd.f32 %v3165, %v3197
      %v3262 = vadd.f32 %v3166, %v3198
      %v3263 = vadd.f32 %v3167, %v3199
      %v3264 = vadd.f32 %v3168, %v3200
      %v3265 = vadd.f32 %v3169, %v3201
      %v3266 = vadd.f32 %v3170, %v3202
      %v3267 = vadd.f32 %v3171, %v3203
      %v3268 = vadd.f32 %v3172, %v3204
      %v3269 = vadd.f32 %v3173, %v3205
      %v3270 = vadd.f32 %v3174, %v3206
      %v3271 = vadd.f32 %v3175, %v3207
      %v3272 = vadd.f32 %v3176, %v3208
      %v3273 = vadd.f32 %v3177, %v3209
      %v3274 = vadd.f32 %v3178, %v3210
      %v3275 = vadd.f32 %v3179, %v3211
      %v3276 = vadd.f32 %v3180, %v3212
      %v3277 = vadd.f32 %v3181, %v3213
      %v3278 = vadd.f32 %v3182, %v3214
      %v3279 = vadd.f32 %v3183, %v3215
      %v3280 = vadd.f32 %v3184, %v3216
      %v3281 = vadd.f32 %v3185, %v3217
      %v3282 = vadd.f32 %v3250, %v3218
      %v3283 = vadd.f32 %v3251, %v3219
      %v3284 = vadd.f32 %v3252, %v3220
      %v3285 = vadd.f32 %v3253, %v3221
      %v3286 = vadd.f32 %v3254, %v3222
      %v3287 = vadd.f32 %v3255, %v3223
      %v3288 = vadd.f32 %v3256, %v3224
      %v3289 = vadd.f32 %v3257, %v3225
      %v3290 = vadd.f32 %v3258, %v3226
      %v3291 = vadd.f32 %v3259, %v3227
      %v3292 = vadd.f32 %v3260, %v3228
      %v3293 = vadd.f32 %v3261, %v3229
      %v3294 = vadd.f32 %v3262, %v3230
      %v3295 = vadd.f32 %v3263, %v3231
      %v3296 = vadd.f32 %v3264, %v3232
      %v3297 = vadd.f32 %v3265, %v3233
      %v3298 = vadd.f32 %v3266, %v3234
      %v3299 = vadd.f32 %v3267, %v3235
      %v3300 = vadd.f32 %v3268, %v3236
      %v3301 = vadd.f32 %v3269, %v3237
      %v3302 = vadd.f32 %v3270, %v3238
      %v3303 = vadd.f32 %v3271, %v3239
      %v3304 = vadd.f32 %v3272, %v3240
      %v3305 = vadd.f32 %v3273, %v3241
      %v3306 = vadd.f32 %v3274, %v3242
      %v3307 = vadd.f32 %v3275, %v3243
      %v3308 = vadd.f32 %v3276, %v3244
      %v3309 = vadd.f32 %v3277, %v3245
      %v3310 = vadd.f32 %v3278, %v3246
      %v3311 = vadd.f32 %v3279, %v3247
      %v3312 = vadd.f32 %v3280, %v3248
      %v3313 = vadd.f32 %v3281, %v3249
      %v3314 = vld [vmem:[%s8] sm:$0xf]
      %v3315 = vld [vmem:[%s8 + $0x4] sm:$0xf]
      %v3316 = vld [vmem:[%s8 + $0x8] sm:$0xf]
      %v3317 = vld [vmem:[%s8 + $0xc] sm:$0xf]
      %v3318 = vpack.c.bf16 %v3290, %v3282
      %v3319 = vpack.c.bf16 %v3291, %v3283
      %v3320 = vpack.c.bf16 %v3292, %v3284
      %v3321 = vpack.c.bf16 %v3293, %v3285
      %v3322 = vpack.c.bf16 %v3294, %v3286
      %v3323 = vpack.c.bf16 %v3295, %v3287
      %v3324 = vpack.c.bf16 %v3296, %v3288
      %v3325 = vpack.c.bf16 %v3297, %v3289
      %v3326 = vpack.c.bf16 %v3306, %v3298
      %v3327 = vpack.c.bf16 %v3307, %v3299
      %v3328 = vpack.c.bf16 %v3308, %v3300
      %v3329 = vpack.c.bf16 %v3309, %v3301
      %v3330 = vpack.c.bf16 %v3310, %v3302
      %v3331 = vpack.c.bf16 %v3311, %v3303
      %v3332 = vpack.c.bf16 %v3312, %v3304
      %v3333 = vpack.c.bf16 %v3313, %v3305
      %v3334 = vld [vmem:[%s9] sm:$0xff]
      %v3335 = vld [vmem:[%s9 + $0x8] sm:$0xff]
      %v3336 = vld [vmem:[%s9 + $0x10] sm:$0xff]
      %v3337 = vld [vmem:[%s9 + $0x18] sm:$0xff]
      %3339 = vset.pattern.permute.xlu0 0
      %3340 = vperm.xlu0 %3339, %v3334
      %v3341 = vpop.permute.xlu0 %3340
      %3344 = vset.pattern.permute.xlu0 0
      %3345 = vperm.xlu0 %3344, %v3335
      %v3346 = vpop.permute.xlu0 %3345
      %3349 = vset.pattern.permute.xlu0 0
      %3350 = vperm.xlu0 %3349, %v3336
      %v3351 = vpop.permute.xlu0 %3350
      %3354 = vset.pattern.permute.xlu0 0
      %3355 = vperm.xlu0 %3354, %v3337
      %v3356 = vpop.permute.xlu0 %3355
      %v3362 = vunpack.c.l.b16 %v3314
      %v3363 = vunpack.c.l.b16 %v3315
      %v3364 = vunpack.c.l.b16 %v3316
      %v3365 = vunpack.c.l.b16 %v3317
      %v3366 = vpack.c.b16 %v3363, %v3362
      %v3367 = vpack.c.b16 %v3365, %v3364
      %v3369 = vsel %vm443, %v3366, 0
      %v3372 = vsel %vm443, %v3367, 0
      %3374 = vmatpush.bf16.msra.mxu0 0
      %3375 = vmatpush.bf16.msra.mxu0 0
      %3376 = vmatpush.bf16.msra.mxu0 0
      %3377 = vmatpush.bf16.msra.mxu0 0
      %3378 = vmatpush.bf16.msra.mxu0 0
      %3379 = vmatpush.bf16.msra.mxu0 0
      %3380 = vmatpush.bf16.msra.mxu0 %v3326
      %3381 = vmatpush.bf16.msra.mxu0 %v3318
      %3382 = vmatmul.bf16.gmra.mxu0 %v3369
      %v3383 = vpop.f32.mrf.mxu0
      %v3384 = vadd.f32 %v3341, %v3383
      %v3385 = vpop.f32.mrf.mxu0
      %v3386 = vadd.f32 %v3346, %v3385
      %3387 = vmatmul.bf16.gmra.mxu0 %v3372
      %v3388 = vpop.f32.mrf.mxu0
      %v3389 = vadd.f32 %v3351, %v3388
      %v3390 = vpop.f32.mrf.mxu0
      %v3391 = vadd.f32 %v3356, %v3390
      %3392 = vdwg.mxu0
      %3393 = vmatpush.bf16.msra.mxu0 0
      %3394 = vmatpush.bf16.msra.mxu0 0
      %3395 = vmatpush.bf16.msra.mxu0 0
      %3396 = vmatpush.bf16.msra.mxu0 0
      %3397 = vmatpush.bf16.msra.mxu0 0
      %3398 = vmatpush.bf16.msra.mxu0 0
      %3399 = vmatpush.bf16.msra.mxu0 %v3327
      %3400 = vmatpush.bf16.msra.mxu0 %v3319
      %3401 = vmatmul.bf16.gmra.mxu0 %v3369
      %v3402 = vpop.f32.mrf.mxu0
      %v3403 = vadd.f32 %v3341, %v3402
      %v3404 = vpop.f32.mrf.mxu0
      %v3405 = vadd.f32 %v3346, %v3404
      %3406 = vmatmul.bf16.gmra.mxu0 %v3372
      %v3407 = vpop.f32.mrf.mxu0
      %v3408 = vadd.f32 %v3351, %v3407
      %v3409 = vpop.f32.mrf.mxu0
      %v3410 = vadd.f32 %v3356, %v3409
      %3411 = vdwg.mxu0
      %3412 = vmatpush.bf16.msra.mxu0 0
      %3413 = vmatpush.bf16.msra.mxu0 0
      %3414 = vmatpush.bf16.msra.mxu0 0
      %3415 = vmatpush.bf16.msra.mxu0 0
      %3416 = vmatpush.bf16.msra.mxu0 0
      %3417 = vmatpush.bf16.msra.mxu0 0
      %3418 = vmatpush.bf16.msra.mxu0 %v3328
      %3419 = vmatpush.bf16.msra.mxu0 %v3320
      %3420 = vmatmul.bf16.gmra.mxu0 %v3369
      %v3421 = vpop.f32.mrf.mxu0
      %v3422 = vadd.f32 %v3341, %v3421
      %v3423 = vpop.f32.mrf.mxu0
      %v3424 = vadd.f32 %v3346, %v3423
      %3425 = vmatmul.bf16.gmra.mxu0 %v3372
      %v3426 = vpop.f32.mrf.mxu0
      %v3427 = vadd.f32 %v3351, %v3426
      %v3428 = vpop.f32.mrf.mxu0
      %v3429 = vadd.f32 %v3356, %v3428
      %3430 = vdwg.mxu0
      %3431 = vmatpush.bf16.msra.mxu0 0
      %3432 = vmatpush.bf16.msra.mxu0 0
      %3433 = vmatpush.bf16.msra.mxu0 0
      %3434 = vmatpush.bf16.msra.mxu0 0
      %3435 = vmatpush.bf16.msra.mxu0 0
      %3436 = vmatpush.bf16.msra.mxu0 0
      %3437 = vmatpush.bf16.msra.mxu0 %v3329
      %3438 = vmatpush.bf16.msra.mxu0 %v3321
      %3439 = vmatmul.bf16.gmra.mxu0 %v3369
      %v3440 = vpop.f32.mrf.mxu0
      %v3441 = vadd.f32 %v3341, %v3440
      %v3442 = vpop.f32.mrf.mxu0
      %v3443 = vadd.f32 %v3346, %v3442
      %3444 = vmatmul.bf16.gmra.mxu0 %v3372
      %v3445 = vpop.f32.mrf.mxu0
      %v3446 = vadd.f32 %v3351, %v3445
      %v3447 = vpop.f32.mrf.mxu0
      %v3448 = vadd.f32 %v3356, %v3447
      %3449 = vdwg.mxu0
      %3450 = vmatpush.bf16.msra.mxu0 0
      %3451 = vmatpush.bf16.msra.mxu0 0
      %3452 = vmatpush.bf16.msra.mxu0 0
      %3453 = vmatpush.bf16.msra.mxu0 0
      %3454 = vmatpush.bf16.msra.mxu0 0
      %3455 = vmatpush.bf16.msra.mxu0 0
      %3456 = vmatpush.bf16.msra.mxu0 %v3330
      %3457 = vmatpush.bf16.msra.mxu0 %v3322
      %3458 = vmatmul.bf16.gmra.mxu0 %v3369
      %v3459 = vpop.f32.mrf.mxu0
      %v3460 = vadd.f32 %v3341, %v3459
      %v3461 = vpop.f32.mrf.mxu0
      %v3462 = vadd.f32 %v3346, %v3461
      %3463 = vmatmul.bf16.gmra.mxu0 %v3372
      %v3464 = vpop.f32.mrf.mxu0
      %v3465 = vadd.f32 %v3351, %v3464
      %v3466 = vpop.f32.mrf.mxu0
      %v3467 = vadd.f32 %v3356, %v3466
      %3468 = vdwg.mxu0
      %3469 = vmatpush.bf16.msra.mxu0 0
      %3470 = vmatpush.bf16.msra.mxu0 0
      %3471 = vmatpush.bf16.msra.mxu0 0
      %3472 = vmatpush.bf16.msra.mxu0 0
      %3473 = vmatpush.bf16.msra.mxu0 0
      %3474 = vmatpush.bf16.msra.mxu0 0
      %3475 = vmatpush.bf16.msra.mxu0 %v3331
      %3476 = vmatpush.bf16.msra.mxu0 %v3323
      %3477 = vmatmul.bf16.gmra.mxu0 %v3369
      %v3478 = vpop.f32.mrf.mxu0
      %v3479 = vadd.f32 %v3341, %v3478
      %v3480 = vpop.f32.mrf.mxu0
      %v3481 = vadd.f32 %v3346, %v3480
      %3482 = vmatmul.bf16.gmra.mxu0 %v3372
      %v3483 = vpop.f32.mrf.mxu0
      %v3484 = vadd.f32 %v3351, %v3483
      %v3485 = vpop.f32.mrf.mxu0
      %v3486 = vadd.f32 %v3356, %v3485
      %3487 = vdwg.mxu0
      %3488 = vmatpush.bf16.msra.mxu0 0
      %3489 = vmatpush.bf16.msra.mxu0 0
      %3490 = vmatpush.bf16.msra.mxu0 0
      %3491 = vmatpush.bf16.msra.mxu0 0
      %3492 = vmatpush.bf16.msra.mxu0 0
      %3493 = vmatpush.bf16.msra.mxu0 0
      %3494 = vmatpush.bf16.msra.mxu0 %v3332
      %3495 = vmatpush.bf16.msra.mxu0 %v3324
      %3496 = vmatmul.bf16.gmra.mxu0 %v3369
      %v3497 = vpop.f32.mrf.mxu0
      %v3498 = vadd.f32 %v3341, %v3497
      %v3499 = vpop.f32.mrf.mxu0
      %v3500 = vadd.f32 %v3346, %v3499
      %3501 = vmatmul.bf16.gmra.mxu0 %v3372
      %v3502 = vpop.f32.mrf.mxu0
      %v3503 = vadd.f32 %v3351, %v3502
      %v3504 = vpop.f32.mrf.mxu0
      %v3505 = vadd.f32 %v3356, %v3504
      %3506 = vdwg.mxu0
      %3507 = vmatpush.bf16.msra.mxu0 0
      %3508 = vmatpush.bf16.msra.mxu0 0
      %3509 = vmatpush.bf16.msra.mxu0 0
      %3510 = vmatpush.bf16.msra.mxu0 0
      %3511 = vmatpush.bf16.msra.mxu0 0
      %3512 = vmatpush.bf16.msra.mxu0 0
      %3513 = vmatpush.bf16.msra.mxu0 %v3333
      %3514 = vmatpush.bf16.msra.mxu0 %v3325
      %3515 = vmatmul.bf16.gmra.mxu0 %v3369
      %v3516 = vpop.f32.mrf.mxu0
      %v3517 = vadd.f32 %v3341, %v3516
      %v3518 = vpop.f32.mrf.mxu0
      %v3519 = vadd.f32 %v3346, %v3518
      %3520 = vmatmul.bf16.gmra.mxu0 %v3372
      %v3521 = vpop.f32.mrf.mxu0
      %v3522 = vadd.f32 %v3351, %v3521
      %v3523 = vpop.f32.mrf.mxu0
      %v3524 = vadd.f32 %v3356, %v3523
      %3525 = vdwg.mxu0
      %v3526 = vmax.f32 %v3384, 0.0
      %v3527 = vmax.f32 %v3403, 0.0
      %v3528 = vmax.f32 %v3422, 0.0
      %v3529 = vmax.f32 %v3441, 0.0
      %v3530 = vmax.f32 %v3460, 0.0
      %v3531 = vmax.f32 %v3479, 0.0
      %v3532 = vmax.f32 %v3498, 0.0
      %v3533 = vmax.f32 %v3517, 0.0
      %v3534 = vmax.f32 %v3386, 0.0
      %v3535 = vmax.f32 %v3405, 0.0
      %v3536 = vmax.f32 %v3424, 0.0
      %v3537 = vmax.f32 %v3443, 0.0
      %v3538 = vmax.f32 %v3462, 0.0
      %v3539 = vmax.f32 %v3481, 0.0
      %v3540 = vmax.f32 %v3500, 0.0
      %v3541 = vmax.f32 %v3519, 0.0
      %v3542 = vmax.f32 %v3389, 0.0
      %v3543 = vmax.f32 %v3408, 0.0
      %v3544 = vmax.f32 %v3427, 0.0
      %v3545 = vmax.f32 %v3446, 0.0
      %v3546 = vmax.f32 %v3465, 0.0
      %v3547 = vmax.f32 %v3484, 0.0
      %v3548 = vmax.f32 %v3503, 0.0
      %v3549 = vmax.f32 %v3522, 0.0
      %v3550 = vmax.f32 %v3391, 0.0
      %v3551 = vmax.f32 %v3410, 0.0
      %v3552 = vmax.f32 %v3429, 0.0
      %v3553 = vmax.f32 %v3448, 0.0
      %v3554 = vmax.f32 %v3467, 0.0
      %v3555 = vmax.f32 %v3486, 0.0
      %v3556 = vmax.f32 %v3505, 0.0
      %v3557 = vmax.f32 %v3524, 0.0
      %v3558 = vmin.f32 %v3526, 6.0
      %v3559 = vmin.f32 %v3527, 6.0
      %v3560 = vmin.f32 %v3528, 6.0
      %v3561 = vmin.f32 %v3529, 6.0
      %v3562 = vmin.f32 %v3530, 6.0
      %v3563 = vmin.f32 %v3531, 6.0
      %v3564 = vmin.f32 %v3532, 6.0
      %v3565 = vmin.f32 %v3533, 6.0
      %v3566 = vmin.f32 %v3534, 6.0
      %v3567 = vmin.f32 %v3535, 6.0
      %v3568 = vmin.f32 %v3536, 6.0
      %v3569 = vmin.f32 %v3537, 6.0
      %v3570 = vmin.f32 %v3538, 6.0
      %v3571 = vmin.f32 %v3539, 6.0
      %v3572 = vmin.f32 %v3540, 6.0
      %v3573 = vmin.f32 %v3541, 6.0
      %v3574 = vmin.f32 %v3542, 6.0
      %v3575 = vmin.f32 %v3543, 6.0
      %v3576 = vmin.f32 %v3544, 6.0
      %v3577 = vmin.f32 %v3545, 6.0
      %v3578 = vmin.f32 %v3546, 6.0
      %v3579 = vmin.f32 %v3547, 6.0
      %v3580 = vmin.f32 %v3548, 6.0
      %v3581 = vmin.f32 %v3549, 6.0
      %v3582 = vmin.f32 %v3550, 6.0
      %v3583 = vmin.f32 %v3551, 6.0
      %v3584 = vmin.f32 %v3552, 6.0
      %v3585 = vmin.f32 %v3553, 6.0
      %v3586 = vmin.f32 %v3554, 6.0
      %v3587 = vmin.f32 %v3555, 6.0
      %v3588 = vmin.f32 %v3556, 6.0
      %v3589 = vmin.f32 %v3557, 6.0
      %v3590 = vmul.f32 %v3558, %v388
      %v3591 = vmul.f32 %v3559, %v389
      %v3592 = vmul.f32 %v3560, %v390
      %v3593 = vmul.f32 %v3561, %v391
      %v3594 = vmul.f32 %v3562, %v392
      %v3595 = vmul.f32 %v3563, %v393
      %v3596 = vmul.f32 %v3564, %v394
      %v3597 = vmul.f32 %v3565, %v395
      %v3598 = vmul.f32 %v3566, %v396
      %v3599 = vmul.f32 %v3567, %v397
      %v3600 = vmul.f32 %v3568, %v398
      %v3601 = vmul.f32 %v3569, %v399
      %v3602 = vmul.f32 %v3570, %v400
      %v3603 = vmul.f32 %v3571, %v401
      %v3604 = vmul.f32 %v3572, %v402
      %v3605 = vmul.f32 %v3573, %v403
      %v3606 = vmul.f32 %v3574, %v404
      %v3607 = vmul.f32 %v3575, %v405
      %v3608 = vmul.f32 %v3576, %v406
      %v3609 = vmul.f32 %v3577, %v407
      %v3610 = vmul.f32 %v3578, %v408
      %v3611 = vmul.f32 %v3579, %v409
      %v3612 = vmul.f32 %v3580, %v410
      %v3613 = vmul.f32 %v3581, %v411
      %v3614 = vmul.f32 %v3582, %v412
      %v3615 = vmul.f32 %v3583, %v413
      %v3616 = vmul.f32 %v3584, %v414
      %v3617 = vmul.f32 %v3585, %v415
      %v3618 = vmul.f32 %v3586, %v416
      %v3619 = vmul.f32 %v3587, %v417
      %v3620 = vmul.f32 %v3588, %v418
      %v3621 = vmul.f32 %v3589, %v419
      %v3622 = vpack.c.bf16 %v3598, %v3590
      %v3623 = vpack.c.bf16 %v3599, %v3591
      %v3624 = vpack.c.bf16 %v3600, %v3592
      %v3625 = vpack.c.bf16 %v3601, %v3593
      %v3626 = vpack.c.bf16 %v3602, %v3594
      %v3627 = vpack.c.bf16 %v3603, %v3595
      %v3628 = vpack.c.bf16 %v3604, %v3596
      %v3629 = vpack.c.bf16 %v3605, %v3597
      %v3630 = vpack.c.bf16 %v3614, %v3606
      %v3631 = vpack.c.bf16 %v3615, %v3607
      %v3632 = vpack.c.bf16 %v3616, %v3608
      %v3633 = vpack.c.bf16 %v3617, %v3609
      %v3634 = vpack.c.bf16 %v3618, %v3610
      %v3635 = vpack.c.bf16 %v3619, %v3611
      %v3636 = vpack.c.bf16 %v3620, %v3612
      %v3637 = vpack.c.bf16 %v3621, %v3613
      %v3638 = vld [vmem:[%s10] sm:$0xf]
      %v3639 = vld [vmem:[%s10 + $0x4] sm:$0xf]
      %v3640 = vld [vmem:[%s10 + $0x8] sm:$0xf]
      %v3641 = vld [vmem:[%s10 + $0xc] sm:$0xf]
      %v3642 = vld [vmem:[%s10 + $0x10] sm:$0xf]
      %v3643 = vld [vmem:[%s10 + $0x14] sm:$0xf]
      %v3644 = vld [vmem:[%s10 + $0x18] sm:$0xf]
      %v3645 = vld [vmem:[%s10 + $0x1c] sm:$0xf]
      %v3646 = vld [vmem:[%s10 + $0x20] sm:$0xf]
      %v3647 = vld [vmem:[%s10 + $0x24] sm:$0xf]
      %v3648 = vld [vmem:[%s10 + $0x28] sm:$0xf]
      %v3649 = vld [vmem:[%s10 + $0x2c] sm:$0xf]
      %v3650 = vld [vmem:[%s10 + $0x30] sm:$0xf]
      %v3651 = vld [vmem:[%s10 + $0x34] sm:$0xf]
      %v3652 = vld [vmem:[%s10 + $0x38] sm:$0xf]
      %v3653 = vld [vmem:[%s10 + $0x3c] sm:$0xf]
      %v3654 = vld [vmem:[%s10 + $0x40] sm:$0xf]
      %v3655 = vld [vmem:[%s10 + $0x44] sm:$0xf]
      %v3656 = vld [vmem:[%s10 + $0x48] sm:$0xf]
      %v3657 = vld [vmem:[%s10 + $0x4c] sm:$0xf]
      %v3658 = vld [vmem:[%s10 + $0x50] sm:$0xf]
      %v3659 = vld [vmem:[%s10 + $0x54] sm:$0xf]
      %v3660 = vld [vmem:[%s10 + $0x58] sm:$0xf]
      %v3661 = vld [vmem:[%s10 + $0x5c] sm:$0xf]
      %v3662 = vld [vmem:[%s10 + $0x60] sm:$0xf]
      %v3663 = vld [vmem:[%s10 + $0x64] sm:$0xf]
      %v3664 = vld [vmem:[%s10 + $0x68] sm:$0xf]
      %v3665 = vld [vmem:[%s10 + $0x6c] sm:$0xf]
      %v3666 = vld [vmem:[%s10 + $0x70] sm:$0xf]
      %v3667 = vld [vmem:[%s10 + $0x74] sm:$0xf]
      %v3668 = vld [vmem:[%s10 + $0x78] sm:$0xf]
      %v3669 = vld [vmem:[%s10 + $0x7c] sm:$0xf]
      %v3670 = vld [vmem:[%s10 + $0x80] sm:$0xf]
      %v3671 = vld [vmem:[%s10 + $0x84] sm:$0xf]
      %v3672 = vld [vmem:[%s10 + $0x88] sm:$0xf]
      %v3673 = vld [vmem:[%s10 + $0x8c] sm:$0xf]
      %v3674 = vld [vmem:[%s10 + $0x90] sm:$0xf]
      %v3675 = vld [vmem:[%s10 + $0x94] sm:$0xf]
      %v3676 = vld [vmem:[%s10 + $0x98] sm:$0xf]
      %v3677 = vld [vmem:[%s10 + $0x9c] sm:$0xf]
      %v3678 = vld [vmem:[%s10 + $0xa0] sm:$0xf]
      %v3679 = vld [vmem:[%s10 + $0xa4] sm:$0xf]
      %v3680 = vld [vmem:[%s10 + $0xa8] sm:$0xf]
      %v3681 = vld [vmem:[%s10 + $0xac] sm:$0xf]
      %v3682 = vld [vmem:[%s10 + $0xb0] sm:$0xf]
      %v3683 = vld [vmem:[%s10 + $0xb4] sm:$0xf]
      %v3684 = vld [vmem:[%s10 + $0xb8] sm:$0xf]
      %v3685 = vld [vmem:[%s10 + $0xbc] sm:$0xf]
      %v3686 = vld [vmem:[%s10 + $0xc0] sm:$0xf]
      %v3687 = vld [vmem:[%s10 + $0xc4] sm:$0xf]
      %v3688 = vld [vmem:[%s10 + $0xc8] sm:$0xf]
      %v3689 = vld [vmem:[%s10 + $0xcc] sm:$0xf]
      %v3690 = vld [vmem:[%s10 + $0xd0] sm:$0xf]
      %v3691 = vld [vmem:[%s10 + $0xd4] sm:$0xf]
      %v3692 = vld [vmem:[%s10 + $0xd8] sm:$0xf]
      %v3693 = vld [vmem:[%s10 + $0xdc] sm:$0xf]
      %v3694 = vld [vmem:[%s10 + $0xe0] sm:$0xf]
      %v3695 = vld [vmem:[%s10 + $0xe4] sm:$0xf]
      %v3696 = vld [vmem:[%s10 + $0xe8] sm:$0xf]
      %v3697 = vld [vmem:[%s10 + $0xec] sm:$0xf]
      %v3698 = vld [vmem:[%s10 + $0xf0] sm:$0xf]
      %v3699 = vld [vmem:[%s10 + $0xf4] sm:$0xf]
      %v3700 = vld [vmem:[%s10 + $0xf8] sm:$0xf]
      %v3701 = vld [vmem:[%s10 + $0xfc] sm:$0xf]
      %v3702 = vld [vmem:[%s10 + $0x100] sm:$0xf]
      %v3703 = vld [vmem:[%s10 + $0x104] sm:$0xf]
      %v3704 = vld [vmem:[%s10 + $0x108] sm:$0xf]
      %v3705 = vld [vmem:[%s10 + $0x10c] sm:$0xf]
      %v3706 = vld [vmem:[%s10 + $0x110] sm:$0xf]
      %v3707 = vld [vmem:[%s10 + $0x114] sm:$0xf]
      %v3708 = vld [vmem:[%s10 + $0x118] sm:$0xf]
      %v3709 = vld [vmem:[%s10 + $0x11c] sm:$0xf]
      %v3710 = vld [vmem:[%s10 + $0x120] sm:$0xf]
      %v3711 = vld [vmem:[%s10 + $0x124] sm:$0xf]
      %v3712 = vld [vmem:[%s10 + $0x128] sm:$0xf]
      %v3713 = vld [vmem:[%s10 + $0x12c] sm:$0xf]
      %v3714 = vld [vmem:[%s10 + $0x130] sm:$0xf]
      %v3715 = vld [vmem:[%s10 + $0x134] sm:$0xf]
      %v3716 = vld [vmem:[%s10 + $0x138] sm:$0xf]
      %v3717 = vld [vmem:[%s10 + $0x13c] sm:$0xf]
      %v3718 = vld [vmem:[%s10 + $0x140] sm:$0xf]
      %v3719 = vld [vmem:[%s10 + $0x144] sm:$0xf]
      %v3720 = vld [vmem:[%s10 + $0x148] sm:$0xf]
      %v3721 = vld [vmem:[%s10 + $0x14c] sm:$0xf]
      %v3722 = vld [vmem:[%s10 + $0x150] sm:$0xf]
      %v3723 = vld [vmem:[%s10 + $0x154] sm:$0xf]
      %v3724 = vld [vmem:[%s10 + $0x158] sm:$0xf]
      %v3725 = vld [vmem:[%s10 + $0x15c] sm:$0xf]
      %v3726 = vld [vmem:[%s10 + $0x160] sm:$0xf]
      %v3727 = vld [vmem:[%s10 + $0x164] sm:$0xf]
      %v3728 = vld [vmem:[%s10 + $0x168] sm:$0xf]
      %v3729 = vld [vmem:[%s10 + $0x16c] sm:$0xf]
      %v3730 = vld [vmem:[%s10 + $0x170] sm:$0xf]
      %v3731 = vld [vmem:[%s10 + $0x174] sm:$0xf]
      %v3732 = vld [vmem:[%s10 + $0x178] sm:$0xf]
      %v3733 = vld [vmem:[%s10 + $0x17c] sm:$0xf]
      %v3734 = vld [vmem:[%s10 + $0x180] sm:$0xf]
      %v3735 = vld [vmem:[%s10 + $0x184] sm:$0xf]
      %v3736 = vld [vmem:[%s10 + $0x188] sm:$0xf]
      %v3737 = vld [vmem:[%s10 + $0x18c] sm:$0xf]
      %v3738 = vld [vmem:[%s10 + $0x190] sm:$0xf]
      %v3739 = vld [vmem:[%s10 + $0x194] sm:$0xf]
      %v3740 = vld [vmem:[%s10 + $0x198] sm:$0xf]
      %v3741 = vld [vmem:[%s10 + $0x19c] sm:$0xf]
      %v3742 = vld [vmem:[%s10 + $0x1a0] sm:$0xf]
      %v3743 = vld [vmem:[%s10 + $0x1a4] sm:$0xf]
      %v3744 = vld [vmem:[%s10 + $0x1a8] sm:$0xf]
      %v3745 = vld [vmem:[%s10 + $0x1ac] sm:$0xf]
      %v3746 = vld [vmem:[%s10 + $0x1b0] sm:$0xf]
      %v3747 = vld [vmem:[%s10 + $0x1b4] sm:$0xf]
      %v3748 = vld [vmem:[%s10 + $0x1b8] sm:$0xf]
      %v3749 = vld [vmem:[%s10 + $0x1bc] sm:$0xf]
      %v3750 = vld [vmem:[%s10 + $0x1c0] sm:$0xf]
      %v3751 = vld [vmem:[%s10 + $0x1c4] sm:$0xf]
      %v3752 = vld [vmem:[%s10 + $0x1c8] sm:$0xf]
      %v3753 = vld [vmem:[%s10 + $0x1cc] sm:$0xf]
      %v3754 = vld [vmem:[%s10 + $0x1d0] sm:$0xf]
      %v3755 = vld [vmem:[%s10 + $0x1d4] sm:$0xf]
      %v3756 = vld [vmem:[%s10 + $0x1d8] sm:$0xf]
      %v3757 = vld [vmem:[%s10 + $0x1dc] sm:$0xf]
      %v3758 = vld [vmem:[%s10 + $0x1e0] sm:$0xf]
      %v3759 = vld [vmem:[%s10 + $0x1e4] sm:$0xf]
      %v3760 = vld [vmem:[%s10 + $0x1e8] sm:$0xf]
      %v3761 = vld [vmem:[%s10 + $0x1ec] sm:$0xf]
      %v3762 = vld [vmem:[%s10 + $0x1f0] sm:$0xf]
      %v3763 = vld [vmem:[%s10 + $0x1f4] sm:$0xf]
      %v3764 = vld [vmem:[%s10 + $0x1f8] sm:$0xf]
      %v3765 = vld [vmem:[%s10 + $0x1fc] sm:$0xf]
      %v3894 = vunpack.c.l.b16 %v3638
      %v3895 = vunpack.c.l.b16 %v3639
      %v3896 = vunpack.c.l.b16 %v3640
      %v3897 = vunpack.c.l.b16 %v3641
      %v3898 = vunpack.c.l.b16 %v3642
      %v3899 = vunpack.c.l.b16 %v3643
      %v3900 = vunpack.c.l.b16 %v3644
      %v3901 = vunpack.c.l.b16 %v3645
      %v3902 = vunpack.c.l.b16 %v3646
      %v3903 = vunpack.c.l.b16 %v3647
      %v3904 = vunpack.c.l.b16 %v3648
      %v3905 = vunpack.c.l.b16 %v3649
      %v3906 = vunpack.c.l.b16 %v3650
      %v3907 = vunpack.c.l.b16 %v3651
      %v3908 = vunpack.c.l.b16 %v3652
      %v3909 = vunpack.c.l.b16 %v3653
      %v3910 = vunpack.c.l.b16 %v3654
      %v3911 = vunpack.c.l.b16 %v3655
      %v3912 = vunpack.c.l.b16 %v3656
      %v3913 = vunpack.c.l.b16 %v3657
      %v3914 = vunpack.c.l.b16 %v3658
      %v3915 = vunpack.c.l.b16 %v3659
      %v3916 = vunpack.c.l.b16 %v3660
      %v3917 = vunpack.c.l.b16 %v3661
      %v3918 = vunpack.c.l.b16 %v3662
      %v3919 = vunpack.c.l.b16 %v3663
      %v3920 = vunpack.c.l.b16 %v3664
      %v3921 = vunpack.c.l.b16 %v3665
      %v3922 = vunpack.c.l.b16 %v3666
      %v3923 = vunpack.c.l.b16 %v3667
      %v3924 = vunpack.c.l.b16 %v3668
      %v3925 = vunpack.c.l.b16 %v3669
      %v3926 = vunpack.c.l.b16 %v3670
      %v3927 = vunpack.c.l.b16 %v3671
      %v3928 = vunpack.c.l.b16 %v3672
      %v3929 = vunpack.c.l.b16 %v3673
      %v3930 = vunpack.c.l.b16 %v3674
      %v3931 = vunpack.c.l.b16 %v3675
      %v3932 = vunpack.c.l.b16 %v3676
      %v3933 = vunpack.c.l.b16 %v3677
      %v3934 = vunpack.c.l.b16 %v3678
      %v3935 = vunpack.c.l.b16 %v3679
      %v3936 = vunpack.c.l.b16 %v3680
      %v3937 = vunpack.c.l.b16 %v3681
      %v3938 = vunpack.c.l.b16 %v3682
      %v3939 = vunpack.c.l.b16 %v3683
      %v3940 = vunpack.c.l.b16 %v3684
      %v3941 = vunpack.c.l.b16 %v3685
      %v3942 = vunpack.c.l.b16 %v3686
      %v3943 = vunpack.c.l.b16 %v3687
      %v3944 = vunpack.c.l.b16 %v3688
      %v3945 = vunpack.c.l.b16 %v3689
      %v3946 = vunpack.c.l.b16 %v3690
      %v3947 = vunpack.c.l.b16 %v3691
      %v3948 = vunpack.c.l.b16 %v3692
      %v3949 = vunpack.c.l.b16 %v3693
      %v3950 = vunpack.c.l.b16 %v3694
      %v3951 = vunpack.c.l.b16 %v3695
      %v3952 = vunpack.c.l.b16 %v3696
      %v3953 = vunpack.c.l.b16 %v3697
      %v3954 = vunpack.c.l.b16 %v3698
      %v3955 = vunpack.c.l.b16 %v3699
      %v3956 = vunpack.c.l.b16 %v3700
      %v3957 = vunpack.c.l.b16 %v3701
      %v3958 = vunpack.c.l.b16 %v3702
      %v3959 = vunpack.c.l.b16 %v3703
      %v3960 = vunpack.c.l.b16 %v3704
      %v3961 = vunpack.c.l.b16 %v3705
      %v3962 = vunpack.c.l.b16 %v3706
      %v3963 = vunpack.c.l.b16 %v3707
      %v3964 = vunpack.c.l.b16 %v3708
      %v3965 = vunpack.c.l.b16 %v3709
      %v3966 = vunpack.c.l.b16 %v3710
      %v3967 = vunpack.c.l.b16 %v3711
      %v3968 = vunpack.c.l.b16 %v3712
      %v3969 = vunpack.c.l.b16 %v3713
      %v3970 = vunpack.c.l.b16 %v3714
      %v3971 = vunpack.c.l.b16 %v3715
      %v3972 = vunpack.c.l.b16 %v3716
      %v3973 = vunpack.c.l.b16 %v3717
      %v3974 = vunpack.c.l.b16 %v3718
      %v3975 = vunpack.c.l.b16 %v3719
      %v3976 = vunpack.c.l.b16 %v3720
      %v3977 = vunpack.c.l.b16 %v3721
      %v3978 = vunpack.c.l.b16 %v3722
      %v3979 = vunpack.c.l.b16 %v3723
      %v3980 = vunpack.c.l.b16 %v3724
      %v3981 = vunpack.c.l.b16 %v3725
      %v3982 = vunpack.c.l.b16 %v3726
      %v3983 = vunpack.c.l.b16 %v3727
      %v3984 = vunpack.c.l.b16 %v3728
      %v3985 = vunpack.c.l.b16 %v3729
      %v3986 = vunpack.c.l.b16 %v3730
      %v3987 = vunpack.c.l.b16 %v3731
      %v3988 = vunpack.c.l.b16 %v3732
      %v3989 = vunpack.c.l.b16 %v3733
      %v3990 = vunpack.c.l.b16 %v3734
      %v3991 = vunpack.c.l.b16 %v3735
      %v3992 = vunpack.c.l.b16 %v3736
      %v3993 = vunpack.c.l.b16 %v3737
      %v3994 = vunpack.c.l.b16 %v3738
      %v3995 = vunpack.c.l.b16 %v3739
      %v3996 = vunpack.c.l.b16 %v3740
      %v3997 = vunpack.c.l.b16 %v3741
      %v3998 = vunpack.c.l.b16 %v3742
      %v3999 = vunpack.c.l.b16 %v3743
      %v4000 = vunpack.c.l.b16 %v3744
      %v4001 = vunpack.c.l.b16 %v3745
      %v4002 = vunpack.c.l.b16 %v3746
      %v4003 = vunpack.c.l.b16 %v3747
      %v4004 = vunpack.c.l.b16 %v3748
      %v4005 = vunpack.c.l.b16 %v3749
      %v4006 = vunpack.c.l.b16 %v3750
      %v4007 = vunpack.c.l.b16 %v3751
      %v4008 = vunpack.c.l.b16 %v3752
      %v4009 = vunpack.c.l.b16 %v3753
      %v4010 = vunpack.c.l.b16 %v3754
      %v4011 = vunpack.c.l.b16 %v3755
      %v4012 = vunpack.c.l.b16 %v3756
      %v4013 = vunpack.c.l.b16 %v3757
      %v4014 = vunpack.c.l.b16 %v3758
      %v4015 = vunpack.c.l.b16 %v3759
      %v4016 = vunpack.c.l.b16 %v3760
      %v4017 = vunpack.c.l.b16 %v3761
      %v4018 = vunpack.c.l.b16 %v3762
      %v4019 = vunpack.c.l.b16 %v3763
      %v4020 = vunpack.c.l.b16 %v3764
      %v4021 = vunpack.c.l.b16 %v3765
      %v4022 = vpack.c.b16 %v3895, %v3894
      %v4023 = vpack.c.b16 %v3897, %v3896
      %v4024 = vpack.c.b16 %v3899, %v3898
      %v4025 = vpack.c.b16 %v3901, %v3900
      %v4026 = vpack.c.b16 %v3903, %v3902
      %v4027 = vpack.c.b16 %v3905, %v3904
      %v4028 = vpack.c.b16 %v3907, %v3906
      %v4029 = vpack.c.b16 %v3909, %v3908
      %v4030 = vpack.c.b16 %v3911, %v3910
      %v4031 = vpack.c.b16 %v3913, %v3912
      %v4032 = vpack.c.b16 %v3915, %v3914
      %v4033 = vpack.c.b16 %v3917, %v3916
      %v4034 = vpack.c.b16 %v3919, %v3918
      %v4035 = vpack.c.b16 %v3921, %v3920
      %v4036 = vpack.c.b16 %v3923, %v3922
      %v4037 = vpack.c.b16 %v3925, %v3924
      %v4038 = vpack.c.b16 %v3927, %v3926
      %v4039 = vpack.c.b16 %v3929, %v3928
      %v4040 = vpack.c.b16 %v3931, %v3930
      %v4041 = vpack.c.b16 %v3933, %v3932
      %v4042 = vpack.c.b16 %v3935, %v3934
      %v4043 = vpack.c.b16 %v3937, %v3936
      %v4044 = vpack.c.b16 %v3939, %v3938
      %v4045 = vpack.c.b16 %v3941, %v3940
      %v4046 = vpack.c.b16 %v3943, %v3942
      %v4047 = vpack.c.b16 %v3945, %v3944
      %v4048 = vpack.c.b16 %v3947, %v3946
      %v4049 = vpack.c.b16 %v3949, %v3948
      %v4050 = vpack.c.b16 %v3951, %v3950
      %v4051 = vpack.c.b16 %v3953, %v3952
      %v4052 = vpack.c.b16 %v3955, %v3954
      %v4053 = vpack.c.b16 %v3957, %v3956
      %v4054 = vpack.c.b16 %v3959, %v3958
      %v4055 = vpack.c.b16 %v3961, %v3960
      %v4056 = vpack.c.b16 %v3963, %v3962
      %v4057 = vpack.c.b16 %v3965, %v3964
      %v4058 = vpack.c.b16 %v3967, %v3966
      %v4059 = vpack.c.b16 %v3969, %v3968
      %v4060 = vpack.c.b16 %v3971, %v3970
      %v4061 = vpack.c.b16 %v3973, %v3972
      %v4062 = vpack.c.b16 %v3975, %v3974
      %v4063 = vpack.c.b16 %v3977, %v3976
      %v4064 = vpack.c.b16 %v3979, %v3978
      %v4065 = vpack.c.b16 %v3981, %v3980
      %v4066 = vpack.c.b16 %v3983, %v3982
      %v4067 = vpack.c.b16 %v3985, %v3984
      %v4068 = vpack.c.b16 %v3987, %v3986
      %v4069 = vpack.c.b16 %v3989, %v3988
      %v4070 = vpack.c.b16 %v3991, %v3990
      %v4071 = vpack.c.b16 %v3993, %v3992
      %v4072 = vpack.c.b16 %v3995, %v3994
      %v4073 = vpack.c.b16 %v3997, %v3996
      %v4074 = vpack.c.b16 %v3999, %v3998
      %v4075 = vpack.c.b16 %v4001, %v4000
      %v4076 = vpack.c.b16 %v4003, %v4002
      %v4077 = vpack.c.b16 %v4005, %v4004
      %v4078 = vpack.c.b16 %v4007, %v4006
      %v4079 = vpack.c.b16 %v4009, %v4008
      %v4080 = vpack.c.b16 %v4011, %v4010
      %v4081 = vpack.c.b16 %v4013, %v4012
      %v4082 = vpack.c.b16 %v4015, %v4014
      %v4083 = vpack.c.b16 %v4017, %v4016
      %v4084 = vpack.c.b16 %v4019, %v4018
      %v4085 = vpack.c.b16 %v4021, %v4020
      %4150 = vmatpush.bf16.msra.mxu0 %v4029
      %4151 = vmatpush.bf16.msra.mxu0 %v4028
      %4152 = vmatpush.bf16.msra.mxu0 %v4027
      %4153 = vmatpush.bf16.msra.mxu0 %v4026
      %4154 = vmatpush.bf16.msra.mxu0 %v4025
      %4155 = vmatpush.bf16.msra.mxu0 %v4024
      %4156 = vmatpush.bf16.msra.mxu0 %v4023
      %4157 = vmatpush.bf16.msra.mxu0 %v4022
      %4158 = vmatmul.bf16.gmra.mxu0 %v3622
      %v4159 = vpop.f32.mrf.mxu0
      %v4160 = vadd.f32 0.0, %v4159
      %v4161 = vpop.f32.mrf.mxu0
      %v4162 = vadd.f32 0.0, %v4161
      %4163 = vmatmul.bf16.gmra.mxu0 %v3630
      %v4164 = vpop.f32.mrf.mxu0
      %v4165 = vadd.f32 0.0, %v4164
      %v4166 = vpop.f32.mrf.mxu0
      %v4167 = vadd.f32 0.0, %v4166
      %4168 = vdwg.mxu0
      %4169 = vmatpush.bf16.msra.mxu0 %v4037
      %4170 = vmatpush.bf16.msra.mxu0 %v4036
      %4171 = vmatpush.bf16.msra.mxu0 %v4035
      %4172 = vmatpush.bf16.msra.mxu0 %v4034
      %4173 = vmatpush.bf16.msra.mxu0 %v4033
      %4174 = vmatpush.bf16.msra.mxu0 %v4032
      %4175 = vmatpush.bf16.msra.mxu0 %v4031
      %4176 = vmatpush.bf16.msra.mxu0 %v4030
      %4177 = vmatmul.bf16.gmra.mxu0 %v3623
      %v4178 = vpop.f32.mrf.mxu0
      %v4179 = vadd.f32 %v4160, %v4178
      %v4180 = vpop.f32.mrf.mxu0
      %v4181 = vadd.f32 %v4162, %v4180
      %4182 = vmatmul.bf16.gmra.mxu0 %v3631
      %v4183 = vpop.f32.mrf.mxu0
      %v4184 = vadd.f32 %v4165, %v4183
      %v4185 = vpop.f32.mrf.mxu0
      %v4186 = vadd.f32 %v4167, %v4185
      %4187 = vdwg.mxu0
      %4188 = vmatpush.bf16.msra.mxu0 %v4045
      %4189 = vmatpush.bf16.msra.mxu0 %v4044
      %4190 = vmatpush.bf16.msra.mxu0 %v4043
      %4191 = vmatpush.bf16.msra.mxu0 %v4042
      %4192 = vmatpush.bf16.msra.mxu0 %v4041
      %4193 = vmatpush.bf16.msra.mxu0 %v4040
      %4194 = vmatpush.bf16.msra.mxu0 %v4039
      %4195 = vmatpush.bf16.msra.mxu0 %v4038
      %4196 = vmatmul.bf16.gmra.mxu0 %v3624
      %v4197 = vpop.f32.mrf.mxu0
      %v4198 = vadd.f32 %v4179, %v4197
      %v4199 = vpop.f32.mrf.mxu0
      %v4200 = vadd.f32 %v4181, %v4199
      %4201 = vmatmul.bf16.gmra.mxu0 %v3632
      %v4202 = vpop.f32.mrf.mxu0
      %v4203 = vadd.f32 %v4184, %v4202
      %v4204 = vpop.f32.mrf.mxu0
      %v4205 = vadd.f32 %v4186, %v4204
      %4206 = vdwg.mxu0
      %4207 = vmatpush.bf16.msra.mxu0 %v4053
      %4208 = vmatpush.bf16.msra.mxu0 %v4052
      %4209 = vmatpush.bf16.msra.mxu0 %v4051
      %4210 = vmatpush.bf16.msra.mxu0 %v4050
      %4211 = vmatpush.bf16.msra.mxu0 %v4049
      %4212 = vmatpush.bf16.msra.mxu0 %v4048
      %4213 = vmatpush.bf16.msra.mxu0 %v4047
      %4214 = vmatpush.bf16.msra.mxu0 %v4046
      %4215 = vmatmul.bf16.gmra.mxu0 %v3625
      %v4216 = vpop.f32.mrf.mxu0
      %v4217 = vadd.f32 %v4198, %v4216
      %v4218 = vpop.f32.mrf.mxu0
      %v4219 = vadd.f32 %v4200, %v4218
      %4220 = vmatmul.bf16.gmra.mxu0 %v3633
      %v4221 = vpop.f32.mrf.mxu0
      %v4222 = vadd.f32 %v4203, %v4221
      %v4223 = vpop.f32.mrf.mxu0
      %v4224 = vadd.f32 %v4205, %v4223
      %4225 = vdwg.mxu0
      %4226 = vmatpush.bf16.msra.mxu0 %v4061
      %4227 = vmatpush.bf16.msra.mxu0 %v4060
      %4228 = vmatpush.bf16.msra.mxu0 %v4059
      %4229 = vmatpush.bf16.msra.mxu0 %v4058
      %4230 = vmatpush.bf16.msra.mxu0 %v4057
      %4231 = vmatpush.bf16.msra.mxu0 %v4056
      %4232 = vmatpush.bf16.msra.mxu0 %v4055
      %4233 = vmatpush.bf16.msra.mxu0 %v4054
      %4234 = vmatmul.bf16.gmra.mxu0 %v3626
      %v4235 = vpop.f32.mrf.mxu0
      %v4236 = vadd.f32 %v4217, %v4235
      %v4237 = vpop.f32.mrf.mxu0
      %v4238 = vadd.f32 %v4219, %v4237
      %4239 = vmatmul.bf16.gmra.mxu0 %v3634
      %v4240 = vpop.f32.mrf.mxu0
      %v4241 = vadd.f32 %v4222, %v4240
      %v4242 = vpop.f32.mrf.mxu0
      %v4243 = vadd.f32 %v4224, %v4242
      %4244 = vdwg.mxu0
      %4245 = vmatpush.bf16.msra.mxu0 %v4069
      %4246 = vmatpush.bf16.msra.mxu0 %v4068
      %4247 = vmatpush.bf16.msra.mxu0 %v4067
      %4248 = vmatpush.bf16.msra.mxu0 %v4066
      %4249 = vmatpush.bf16.msra.mxu0 %v4065
      %4250 = vmatpush.bf16.msra.mxu0 %v4064
      %4251 = vmatpush.bf16.msra.mxu0 %v4063
      %4252 = vmatpush.bf16.msra.mxu0 %v4062
      %4253 = vmatmul.bf16.gmra.mxu0 %v3627
      %v4254 = vpop.f32.mrf.mxu0
      %v4255 = vadd.f32 %v4236, %v4254
      %v4256 = vpop.f32.mrf.mxu0
      %v4257 = vadd.f32 %v4238, %v4256
      %4258 = vmatmul.bf16.gmra.mxu0 %v3635
      %v4259 = vpop.f32.mrf.mxu0
      %v4260 = vadd.f32 %v4241, %v4259
      %v4261 = vpop.f32.mrf.mxu0
      %v4262 = vadd.f32 %v4243, %v4261
      %4263 = vdwg.mxu0
      %4264 = vmatpush.bf16.msra.mxu0 %v4077
      %4265 = vmatpush.bf16.msra.mxu0 %v4076
      %4266 = vmatpush.bf16.msra.mxu0 %v4075
      %4267 = vmatpush.bf16.msra.mxu0 %v4074
      %4268 = vmatpush.bf16.msra.mxu0 %v4073
      %4269 = vmatpush.bf16.msra.mxu0 %v4072
      %4270 = vmatpush.bf16.msra.mxu0 %v4071
      %4271 = vmatpush.bf16.msra.mxu0 %v4070
      %4272 = vmatmul.bf16.gmra.mxu0 %v3628
      %v4273 = vpop.f32.mrf.mxu0
      %v4274 = vadd.f32 %v4255, %v4273
      %v4275 = vpop.f32.mrf.mxu0
      %v4276 = vadd.f32 %v4257, %v4275
      %4277 = vmatmul.bf16.gmra.mxu0 %v3636
      %v4278 = vpop.f32.mrf.mxu0
      %v4279 = vadd.f32 %v4260, %v4278
      %v4280 = vpop.f32.mrf.mxu0
      %v4281 = vadd.f32 %v4262, %v4280
      %4282 = vdwg.mxu0
      %4283 = vmatpush.bf16.msra.mxu0 %v4085
      %4284 = vmatpush.bf16.msra.mxu0 %v4084
      %4285 = vmatpush.bf16.msra.mxu0 %v4083
      %4286 = vmatpush.bf16.msra.mxu0 %v4082
      %4287 = vmatpush.bf16.msra.mxu0 %v4081
      %4288 = vmatpush.bf16.msra.mxu0 %v4080
      %4289 = vmatpush.bf16.msra.mxu0 %v4079
      %4290 = vmatpush.bf16.msra.mxu0 %v4078
      %4291 = vmatmul.bf16.gmra.mxu0 %v3629
      %v4292 = vpop.f32.mrf.mxu0
      %v4293 = vadd.f32 %v4274, %v4292
      %v4294 = vpop.f32.mrf.mxu0
      %v4295 = vadd.f32 %v4276, %v4294
      %4296 = vmatmul.bf16.gmra.mxu0 %v3637
      %v4297 = vpop.f32.mrf.mxu0
      %v4298 = vadd.f32 %v4279, %v4297
      %v4299 = vpop.f32.mrf.mxu0
      %v4300 = vadd.f32 %v4281, %v4299
      %4301 = vdwg.mxu0
      %vm4302 = vcmask 130048
      %4303 = vst.msk [vmem:[%s386] sm:$0xff] %vm4302, %v4293
      %4304 = vst.msk [vmem:[%s386 + $0x8] sm:$0xff] %vm4302, %v4295
      %4305 = vst.msk [vmem:[%s386 + $0x10] sm:$0xff] %vm4302, %v4298
      %4306 = vst.msk [vmem:[%s386 + $0x18] sm:$0xff] %vm4302, %v4300
      %p4307 = scmp.lt.s32.totalorder %s22, 1
      %s4308 = scalar_select %p4307, %s22, 1
      %s4309 = smul.addr %s4308, 4
      %s4310 = smul.addr %s4309, 8
      %s4311 = scalar_lea.vmem %s11, %s4310
      // Predicated region
      $region65: #{tpu_custom_call.1} parent=63 // pred_check
        %p4312 = pneg %p276
      $region66: #{tpu_custom_call.1} parent=63 // pred_check_branch
        %4314 = sbr.rel (%p4312) target = $region68
      $region67: #{tpu_custom_call.1} parent=63 // pred_region
        _
      $region68: #{tpu_custom_call.1} parent=63 // pred_fallthru
        _
    $region64: #{tpu_custom_call.1} parent=5 // pred_fallthru
      _
    %p4315 = scmp.le.s32.totalorder 2, %s17
    // Predicated region
    $region69: #{tpu_custom_call.1} parent=5 // pred_check
      %p4316 = pneg %p4315
    $region70: #{tpu_custom_call.1} parent=5 // pred_check_branch
      %4318 = sbr.rel (%p4316) target = $region72
    $region71: #{tpu_custom_call.1} parent=5 // pred_region
      %s4319 = ssub.s32 %s17, 2
      // Predicated region
      $region73: #{tpu_custom_call.1} parent=71 // pred_check
        %p4320 = pneg %p282
      $region74: #{tpu_custom_call.1} parent=71 // pred_check_branch
        %4322 = sbr.rel (%p4320) target = $region76
      $region75: #{tpu_custom_call.1} parent=71 // pred_region
        %p4323 = scmp.lt.s32.totalorder %s23, 1
        %s4324 = scalar_select %p4323, %s23, 1
        %s4325 = smul.addr %s4324, 4
        %s4326 = smul.addr %s4325, 8
        %s4327 = scalar_lea.vmem %s11, %s4326
      $region76: #{tpu_custom_call.1} parent=71 // pred_fallthru
        _
    $region72: #{tpu_custom_call.1} parent=5 // pred_fallthru
      _
  $region6: #{tpu_custom_call.1} parent=0 // loop_footer
    %s21 = sadd.s32 1, %s17
  $region7: #{tpu_custom_call.1} parent=0 // loop_footer_branch
    %16 = sbr.rel target = $region3
  $region8: #{tpu_custom_call.1} parent=0 // loop_exit
    _

</llo_original>
